<compile_context>
chip_gen: v5e
topology: v5e:2x2
jax: 0.10.0
libtpu: 0.0.40
codegen_flags: <defaults>
</compile_context>

<pallas_src>
import functools

import numpy as np
import jax
import jax.numpy as jnp
from jax import lax
from jax.experimental import pallas as pl
from jax.experimental.pallas import tpu as pltpu

C_PAD = 8     # every channel dim is padded to one f32 sublane tile
KSZ = 3       # ConvTranspose2d kernel size
PADDING = 1   # ConvTranspose2d padding


def _fold_layer_params(w, b, gamma, beta, mean, var, eps):
    """PyTorch ConvTranspose2d weight (Cin, Cout, 3, 3) + BN(eval) -> fused matmul form.

    The BN scale is folded into the conv weight so the in-kernel epilogue is
    a single add + ReLU.
    """
    cin, cout = w.shape[0], w.shape[1]
    scale = (gamma / jnp.sqrt(var + eps)).astype(jnp.float32)
    wf = jnp.flip(w, axis=(2, 3)).astype(jnp.float32) * scale[None, :, None, None]
    wf_p = jnp.zeros((C_PAD, C_PAD, KSZ, KSZ), jnp.float32).at[:cin, :cout].set(wf)
    # W9[co, (3*ky + kx)*8 + ci] = scale[co] * w[ci, co, 2-ky, 2-kx]
    w9 = wf_p.transpose(1, 2, 3, 0).reshape(C_PAD, KSZ * KSZ * C_PAD)
    shift = beta + (b - mean) * scale
    sh_p = jnp.zeros((C_PAD, 1), jnp.float32).at[:cout, 0].set(shift)
    return w9, sh_p


def _decoder_kernel(meta, x_ref, *refs):
    """Fully fused 5-layer decoder for one batch element (stays on-chip)."""
    o_ref, pad_ref = refs[-2], refs[-1]
    const_refs = refs[:-2]

    a = x_ref[0]                                   # (8, H0*W0), lane-dense value
    ri = 0
    for lm in meta:
        d_ref = None
        if lm["stride"] > 1:
            d_ref = const_refs[ri]
            ri += 1
        w9_ref = const_refs[ri]
        sh_ref = const_refs[ri + 1]
        ri += 2

        wp, l_out, p_cols = lm["wp"], lm["l_out"], lm["p_cols"]
        h_in, w_in, w_wide = lm["h_in"], lm["w_in"], lm["w_in_wide"]
        pad_lo, stride = lm["pad_lo"], lm["stride"]
        k_pad, tail = lm["k_pad"], lm["tail"]

        # ---- build the zero-dilated + padded image in the VMEM scratch -----
        pad_ref[:, :p_cols] = jnp.zeros((C_PAD, p_cols), jnp.float32)

        if d_ref is not None and tail > 0:
            # guard lanes so the last row slice of width k_pad stays in-bounds;
            # the extra lanes are multiplied by all-zero rows of D.
            a_ext = jnp.concatenate(
                [a, jnp.zeros((C_PAD, tail), jnp.float32)], axis=1)
        else:
            a_ext = a

        for iy in range(h_in):                      # <= 16 row writes per layer
            dst = (pad_lo + iy * stride) * wp
            if d_ref is None:
                # stride 1: plain shifted row copy (stale columns dropped by slice)
                pad_ref[:, dst + pad_lo: dst + pad_lo + w_in] = \
                    a[:, iy * w_wide: iy * w_wide + w_in]
            else:
                # stride 2: tiny width-dilation 0/1 matmul (8, k_pad) @ (k_pad, wp);
                # stale / guard columns hit all-zero rows of D.
                row = a_ext[:, iy * w_wide: iy * w_wide + k_pad]
                pad_ref[:, dst: dst + wp] = jnp.dot(
                    row, d_ref[...], preferred_element_type=jnp.float32)

        # ---- 3x3 conv as 3 ky-group matmuls (K = 24) ------------------------
        acc = jnp.zeros((C_PAD, l_out), jnp.float32)
        for ky in range(KSZ):
            x3 = jnp.concatenate(
                [pad_ref[:, ky * wp + kx: ky * wp + kx + l_out] for kx in range(KSZ)],
                axis=0)                                                     # (24, L)
            acc = acc + jnp.dot(
                w9_ref[:, ky * KSZ * C_PAD:(ky + 1) * KSZ * C_PAD], x3,
                preferred_element_type=jnp.float32)                        # (8, L)

        # folded conv-bias + BatchNorm(eval) + ReLU epilogue
        a = jnp.maximum(acc + sh_ref[...], 0.0)

    o_ref[0] = a        # full 8-sublane slab (unmasked store); cropped in wrapper


def decoder_medium_forward(x_nchw, params, eps=1e-5):
    """params: 5 tuples (w, b, gamma, beta, mean, var, stride, output_padding);
    w is the PyTorch ConvTranspose2d weight of shape (Cin, Cout, 3, 3)."""
    n, c0, h0, w0 = x_nchw.shape
    assert c0 <= C_PAD

    # channels-first, spatially flattened, channel-padded input layout
    x_flat = jnp.zeros((n, C_PAD, h0 * w0), jnp.float32)
    x_flat = x_flat.at[:, :c0, :].set(x_nchw.reshape(n, c0, h0 * w0).astype(jnp.float32))

    meta = []
    inputs = [x_flat]
    in_specs = [pl.BlockSpec((1, C_PAD, h0 * w0), lambda i: (i, 0, 0))]

    h_in, w_in, w_wide = h0, w0, w0
    c_out_final = None
    max_pcols = 0
    for (wt, b, gamma, beta, mean, var, stride, out_pad) in params:
        pad_lo = KSZ - 1 - PADDING
        pad_hi = pad_lo + out_pad
        hp = (h_in - 1) * stride + 1 + pad_lo + pad_hi
        wp = (w_in - 1) * stride + 1 + pad_lo + pad_hi
        ho, wo = hp - (KSZ - 1), wp - (KSZ - 1)
        p_cols = (hp + 1) * wp        # one extra guard row for the tap-shifted slices
        max_pcols = max(max_pcols, p_cols)

        k_pad = -(-w_wide // 8) * 8   # contracting dim of the tiny dilation matmul
        tail = k_pad - w_wide
        w9, sh = _fold_layer_params(wt, b, gamma, beta, mean, var, eps)
        meta.append(dict(stride=stride, pad_lo=pad_lo, wp=wp, p_cols=p_cols,
                         l_out=ho * wp, h_in=h_in, w_in=w_in, w_in_wide=w_wide,
                         k_pad=k_pad, tail=tail))

        if stride > 1:
            # tiny width-dilation matrix: valid columns only; stale (ix >= w_in)
            # and guard (ix >= w_wide) rows stay zero.
            d = np.zeros((k_pad, wp), np.float32)
            for ix in range(w_in):
                d[ix, pad_lo + ix * stride] = 1.0
            d = jnp.asarray(d)
            inputs.append(d)
            in_specs.append(pl.BlockSpec(d.shape, lambda i: (0, 0)))

        inputs += [w9, sh]
        in_specs += [pl.BlockSpec(w9.shape, lambda i: (0, 0)),
                     pl.BlockSpec(sh.shape, lambda i: (0, 0))]

        h_in, w_in, w_wide = ho, wo, wp
        c_out_final = wt.shape[1]

    l_out = meta[-1]["l_out"]
    out_wide = pl.pallas_call(
        functools.partial(_decoder_kernel, meta),
        out_shape=jax.ShapeDtypeStruct((n, C_PAD, l_out), jnp.float32),
        grid=(n,),
        in_specs=in_specs,
        out_specs=pl.BlockSpec((1, C_PAD, l_out), lambda i: (i, 0, 0)),
        scratch_shapes=[pltpu.VMEM((C_PAD, max_pcols), jnp.float32)],
        compiler_params=pltpu.CompilerParams(
            dimension_semantics=("parallel",)),
    )(*inputs)

    # (N, 8, Ho, Wp) wide layout -> crop padded channels + stale columns -> NCHW
    out = out_wide.reshape(n, C_PAD, h_in, w_wide)
    return out[:, :c_out_final, :, :w_in]


def _ref_layer(x_nhwc, w_t, conv_bias, gamma, beta, mean, var,
               *, stride, output_padding, padding=1, eps=1e-5):
    """Pure-JAX reference (lax.conv_general_dilated) for correctness check."""
    k = 3
    w_hwio = jnp.flip(w_t, axis=(2, 3)).transpose(2, 3, 0, 1)
    pad_lo = k - 1 - padding
    pad_hi = k - 1 - padding + output_padding
    y = lax.conv_general_dilated(
        x_nhwc, w_hwio, window_strides=(1, 1),
        padding=((pad_lo, pad_hi), (pad_lo, pad_hi)),
        lhs_dilation=(stride, stride),
        dimension_numbers=("NHWC", "HWIO", "NHWC"))
    y = y + conv_bias
    y = (y - mean) / jnp.sqrt(var + eps) * gamma + beta
    return jnp.maximum(y, 0.0)


if __name__ == "__main__":
    key = jax.random.PRNGKey(0)

    deconv_channels = [8, 8, 4]
    # (cin, cout, stride, output_padding) for deconv1..deconv5
    layer_cfg = [
        (deconv_channels[0], deconv_channels[1], 2, 1),
        (deconv_channels[1], deconv_channels[1], 1, 0),
        (deconv_channels[1], deconv_channels[2], 2, 1),
        (deconv_channels[2], deconv_channels[2], 1, 0),
        (deconv_channels[2], 3, 2, 1),
    ]

    params = []
    for (cin, cout, s, op) in layer_cfg:
        key, k1, k2, k3, k4, k5, k6 = jax.random.split(key, 7)
        w = 0.1 * jax.random.normal(k1, (cin, cout, 3, 3), jnp.float32)  # ConvTranspose2d weight
        b = 0.1 * jax.random.normal(k2, (cout,), jnp.float32)            # ConvTranspose2d bias
        gamma = 1.0 + 0.1 * jax.random.normal(k3, (cout,), jnp.float32)  # BN weight
        beta = 0.1 * jax.random.normal(k4, (cout,), jnp.float32)         # BN bias
        mean = 0.1 * jax.random.normal(k5, (cout,), jnp.float32)         # BN running_mean
        var = jax.random.uniform(k6, (cout,), jnp.float32, minval=0.5, maxval=1.5)  # running_var
        params.append((w, b, gamma, beta, mean, var, s, op))

    key, kx = jax.random.split(key)
    x_nchw = jax.random.normal(kx, (2, deconv_channels[0], 4, 4), jnp.float32)

    # Pallas path (single fused kernel)
    out = decoder_medium_forward(x_nchw, params)
    out = jax.block_until_ready(out)

    # Pure-JAX reference path
    y_ref = jnp.transpose(x_nchw, (0, 2, 3, 1))
    for (w, b, g, be, m, v, s, op) in params:
        y_ref = _ref_layer(y_ref, w, b, g, be, m, v, stride=s, output_padding=op)
    y_ref = jnp.transpose(y_ref, (0, 3, 1, 2))

    assert out.shape == (2, 3, 32, 32), out.shape
    max_err = float(jnp.max(jnp.abs(out - y_ref)))
    assert max_err < 5e-4, f"mismatch vs reference: {max_err}"
    print("KERNEL_OK")
</pallas_src>

<mosaic_0001>
module attributes {stable_mosaic.version = 11 : i64} {
  func.func @_decoder_kernel(%arg0: i32, %arg1: memref<1x8x16xf32, #tpu.memory_space<vmem>>, %arg2: memref<8x10xf32, #tpu.memory_space<vmem>>, %arg3: memref<8x72xf32, #tpu.memory_space<vmem>>, %arg4: memref<8x1xf32, #tpu.memory_space<vmem>>, %arg5: memref<8x72xf32, #tpu.memory_space<vmem>>, %arg6: memref<8x1xf32, #tpu.memory_space<vmem>>, %arg7: memref<16x18xf32, #tpu.memory_space<vmem>>, %arg8: memref<8x72xf32, #tpu.memory_space<vmem>>, %arg9: memref<8x1xf32, #tpu.memory_space<vmem>>, %arg10: memref<8x72xf32, #tpu.memory_space<vmem>>, %arg11: memref<8x1xf32, #tpu.memory_space<vmem>>, %arg12: memref<24x34xf32, #tpu.memory_space<vmem>>, %arg13: memref<8x72xf32, #tpu.memory_space<vmem>>, %arg14: memref<8x1xf32, #tpu.memory_space<vmem>>, %arg15: memref<1x8x1088xf32, #tpu.memory_space<vmem>>, %arg16: memref<8x1190xf32, #tpu.memory_space<vmem>>) attributes {dimension_semantics = [#tpu.dimension_semantics<parallel>], iteration_bounds = array<i64: 2>, scalar_prefetch = 0 : i64, scratch_operands = 1 : i64, tpu.core_type = #tpu.core_type<tc>, window_params = [{transform_indices = @transform_0, window_bounds = array<i64: 1, 8, 16>}, {pipeline_mode = #tpu.pipeline_mode<synchronous>, transform_indices = @transform_1, window_bounds = array<i64: 8, 10>}, {pipeline_mode = #tpu.pipeline_mode<synchronous>, transform_indices = @transform_2, window_bounds = array<i64: 8, 72>}, {pipeline_mode = #tpu.pipeline_mode<synchronous>, transform_indices = @transform_3, window_bounds = array<i64: 8, 1>}, {pipeline_mode = #tpu.pipeline_mode<synchronous>, transform_indices = @transform_4, window_bounds = array<i64: 8, 72>}, {pipeline_mode = #tpu.pipeline_mode<synchronous>, transform_indices = @transform_5, window_bounds = array<i64: 8, 1>}, {pipeline_mode = #tpu.pipeline_mode<synchronous>, transform_indices = @transform_6, window_bounds = array<i64: 16, 18>}, {pipeline_mode = #tpu.pipeline_mode<synchronous>, transform_indices = @transform_7, window_bounds = array<i64: 8, 72>}, {pipeline_mode = #tpu.pipeline_mode<synchronous>, transform_indices = @transform_8, window_bounds = array<i64: 8, 1>}, {pipeline_mode = #tpu.pipeline_mode<synchronous>, transform_indices = @transform_9, window_bounds = array<i64: 8, 72>}, {pipeline_mode = #tpu.pipeline_mode<synchronous>, transform_indices = @transform_10, window_bounds = array<i64: 8, 1>}, {pipeline_mode = #tpu.pipeline_mode<synchronous>, transform_indices = @transform_11, window_bounds = array<i64: 24, 34>}, {pipeline_mode = #tpu.pipeline_mode<synchronous>, transform_indices = @transform_12, window_bounds = array<i64: 8, 72>}, {pipeline_mode = #tpu.pipeline_mode<synchronous>, transform_indices = @transform_13, window_bounds = array<i64: 8, 1>}, {transform_indices = @transform_14, window_bounds = array<i64: 1, 8, 1088>}]} {
    %c0 = arith.constant 0 : index
    %c0_0 = arith.constant 0 : index
    %c0_1 = arith.constant 0 : index
    %0 = vector.load %arg1[%c0, %c0_0, %c0_1] : memref<1x8x16xf32, #tpu.memory_space<vmem>>, vector<1x8x16xf32>
    %1 = vector.shape_cast %0 : vector<1x8x16xf32> to vector<8x16xf32>
    %cst = arith.constant 0.000000e+00 : f32
    %2 = vector.broadcast %cst : f32 to vector<8x110xf32>
    %c0_2 = arith.constant 0 : index
    %c0_3 = arith.constant 0 : index
    %3 = vector.load %arg16[%c0_2, %c0_3] : memref<8x1190xf32, #tpu.memory_space<vmem>>, vector<8x110xf32>
    tpu.vector_store %arg16[%c0_2, %c0_3], %2 {strides = array<i32>} : memref<8x1190xf32, #tpu.memory_space<vmem>>, vector<8x110xf32>,
    %cst_4 = arith.constant 0.000000e+00 : f32
    %4 = vector.broadcast %cst_4 : f32 to vector<8x4xf32>
    %5 = tpu.concatenate %1, %4 in 1 : vector<8x16xf32>, vector<8x4xf32> -> vector<8x20xf32>
    %6 = vector.extract_strided_slice %5 {offsets = [0, 0], sizes = [8, 8], strides = [1, 1]} : vector<8x20xf32> to vector<8x8xf32>
    %c0_5 = arith.constant 0 : index
    %c0_6 = arith.constant 0 : index
    %7 = vector.load %arg2[%c0_5, %c0_6] : memref<8x10xf32, #tpu.memory_space<vmem>>, vector<8x10xf32>
    %cst_7 = arith.constant dense<0.000000e+00> : vector<8x10xf32>
    %8 = tpu.matmul %6, %7, %cst_7 {dimension_numbers = #tpu.dot_dimension_numbers<[1], [0], [0], [1], [0, 0, 1, 1], [], []>} : vector<8x8xf32>, vector<8x10xf32>, vector<8x10xf32> -> vector<8x10xf32>
    %c0_8 = arith.constant 0 : index
    %c10 = arith.constant 10 : index
    %9 = vector.load %arg16[%c0_8, %c10] : memref<8x1190xf32, #tpu.memory_space<vmem>>, vector<8x10xf32>
    tpu.vector_store %arg16[%c0_8, %c10], %8 {strides = array<i32>} : memref<8x1190xf32, #tpu.memory_space<vmem>>, vector<8x10xf32>,
    %10 = vector.extract_strided_slice %5 {offsets = [0, 4], sizes = [8, 8], strides = [1, 1]} : vector<8x20xf32> to vector<8x8xf32>
    %c0_9 = arith.constant 0 : index
    %c0_10 = arith.constant 0 : index
    %11 = vector.load %arg2[%c0_9, %c0_10] : memref<8x10xf32, #tpu.memory_space<vmem>>, vector<8x10xf32>
    %cst_11 = arith.constant dense<0.000000e+00> : vector<8x10xf32>
    %12 = tpu.matmul %10, %11, %cst_11 {dimension_numbers = #tpu.dot_dimension_numbers<[1], [0], [0], [1], [0, 0, 1, 1], [], []>} : vector<8x8xf32>, vector<8x10xf32>, vector<8x10xf32> -> vector<8x10xf32>
    %c0_12 = arith.constant 0 : index
    %c30 = arith.constant 30 : index
    %13 = vector.load %arg16[%c0_12, %c30] : memref<8x1190xf32, #tpu.memory_space<vmem>>, vector<8x10xf32>
    tpu.vector_store %arg16[%c0_12, %c30], %12 {strides = array<i32>} : memref<8x1190xf32, #tpu.memory_space<vmem>>, vector<8x10xf32>,
    %14 = vector.extract_strided_slice %5 {offsets = [0, 8], sizes = [8, 8], strides = [1, 1]} : vector<8x20xf32> to vector<8x8xf32>
    %c0_13 = arith.constant 0 : index
    %c0_14 = arith.constant 0 : index
    %15 = vector.load %arg2[%c0_13, %c0_14] : memref<8x10xf32, #tpu.memory_space<vmem>>, vector<8x10xf32>
    %cst_15 = arith.constant dense<0.000000e+00> : vector<8x10xf32>
    %16 = tpu.matmul %14, %15, %cst_15 {dimension_numbers = #tpu.dot_dimension_numbers<[1], [0], [0], [1], [0, 0, 1, 1], [], []>} : vector<8x8xf32>, vector<8x10xf32>, vector<8x10xf32> -> vector<8x10xf32>
    %c0_16 = arith.constant 0 : index
    %c50 = arith.constant 50 : index
    %17 = vector.load %arg16[%c0_16, %c50] : memref<8x1190xf32, #tpu.memory_space<vmem>>, vector<8x10xf32>
    tpu.vector_store %arg16[%c0_16, %c50], %16 {strides = array<i32>} : memref<8x1190xf32, #tpu.memory_space<vmem>>, vector<8x10xf32>,
    %18 = vector.extract_strided_slice %5 {offsets = [0, 12], sizes = [8, 8], strides = [1, 1]} : vector<8x20xf32> to vector<8x8xf32>
    %c0_17 = arith.constant 0 : index
    %c0_18 = arith.constant 0 : index
    %19 = vector.load %arg2[%c0_17, %c0_18] : memref<8x10xf32, #tpu.memory_space<vmem>>, vector<8x10xf32>
    %cst_19 = arith.constant dense<0.000000e+00> : vector<8x10xf32>
    %20 = tpu.matmul %18, %19, %cst_19 {dimension_numbers = #tpu.dot_dimension_numbers<[1], [0], [0], [1], [0, 0, 1, 1], [], []>} : vector<8x8xf32>, vector<8x10xf32>, vector<8x10xf32> -> vector<8x10xf32>
    %c0_20 = arith.constant 0 : index
    %c70 = arith.constant 70 : index
    %21 = vector.load %arg16[%c0_20, %c70] : memref<8x1190xf32, #tpu.memory_space<vmem>>, vector<8x10xf32>
    tpu.vector_store %arg16[%c0_20, %c70], %20 {strides = array<i32>} : memref<8x1190xf32, #tpu.memory_space<vmem>>, vector<8x10xf32>,
    %cst_21 = arith.constant 0.000000e+00 : f32
    %22 = vector.broadcast %cst_21 : f32 to vector<8x80xf32>
    %c0_22 = arith.constant 0 : index
    %c0_23 = arith.constant 0 : index
    %23 = vector.load %arg16[%c0_22, %c0_23] : memref<8x1190xf32, #tpu.memory_space<vmem>>, vector<8x80xf32>
    %c0_24 = arith.constant 0 : index
    %c1 = arith.constant 1 : index
    %24 = vector.load %arg16[%c0_24, %c1] : memref<8x1190xf32, #tpu.memory_space<vmem>>, vector<8x80xf32>
    %c0_25 = arith.constant 0 : index
    %c2 = arith.constant 2 : index
    %25 = vector.load %arg16[%c0_25, %c2] : memref<8x1190xf32, #tpu.memory_space<vmem>>, vector<8x80xf32>
    %26 = tpu.concatenate %23, %24, %25 in 0 : vector<8x80xf32>, vector<8x80xf32>, vector<8x80xf32> -> vector<24x80xf32>
    %c0_26 = arith.constant 0 : index
    %c0_27 = arith.constant 0 : index
    %27 = vector.load %arg3[%c0_26, %c0_27] : memref<8x72xf32, #tpu.memory_space<vmem>>, vector<8x24xf32>
    %cst_28 = arith.constant dense<0.000000e+00> : vector<8x80xf32>
    %28 = tpu.matmul %27, %26, %cst_28 {dimension_numbers = #tpu.dot_dimension_numbers<[1], [0], [0], [1], [0, 0, 1, 1], [], []>} : vector<8x24xf32>, vector<24x80xf32>, vector<8x80xf32> -> vector<8x80xf32>
    %29 = arith.addf %22, %28 : vector<8x80xf32>
    %c0_29 = arith.constant 0 : index
    %c10_30 = arith.constant 10 : index
    %30 = vector.load %arg16[%c0_29, %c10_30] : memref<8x1190xf32, #tpu.memory_space<vmem>>, vector<8x80xf32>
    %c0_31 = arith.constant 0 : index
    %c11 = arith.constant 11 : index
    %31 = vector.load %arg16[%c0_31, %c11] : memref<8x1190xf32, #tpu.memory_space<vmem>>, vector<8x80xf32>
    %c0_32 = arith.constant 0 : index
    %c12 = arith.constant 12 : index
    %32 = vector.load %arg16[%c0_32, %c12] : memref<8x1190xf32, #tpu.memory_space<vmem>>, vector<8x80xf32>
    %33 = tpu.concatenate %30, %31, %32 in 0 : vector<8x80xf32>, vector<8x80xf32>, vector<8x80xf32> -> vector<24x80xf32>
    %c0_33 = arith.constant 0 : index
    %c24 = arith.constant 24 : index
    %34 = vector.load %arg3[%c0_33, %c24] : memref<8x72xf32, #tpu.memory_space<vmem>>, vector<8x24xf32>
    %cst_34 = arith.constant dense<0.000000e+00> : vector<8x80xf32>
    %35 = tpu.matmul %34, %33, %cst_34 {dimension_numbers = #tpu.dot_dimension_numbers<[1], [0], [0], [1], [0, 0, 1, 1], [], []>} : vector<8x24xf32>, vector<24x80xf32>, vector<8x80xf32> -> vector<8x80xf32>
    %36 = arith.addf %29, %35 : vector<8x80xf32>
    %c0_35 = arith.constant 0 : index
    %c20 = arith.constant 20 : index
    %37 = vector.load %arg16[%c0_35, %c20] : memref<8x1190xf32, #tpu.memory_space<vmem>>, vector<8x80xf32>
    %c0_36 = arith.constant 0 : index
    %c21 = arith.constant 21 : index
    %38 = vector.load %arg16[%c0_36, %c21] : memref<8x1190xf32, #tpu.memory_space<vmem>>, vector<8x80xf32>
    %c0_37 = arith.constant 0 : index
    %c22 = arith.constant 22 : index
    %39 = vector.load %arg16[%c0_37, %c22] : memref<8x1190xf32, #tpu.memory_space<vmem>>, vector<8x80xf32>
    %40 = tpu.concatenate %37, %38, %39 in 0 : vector<8x80xf32>, vector<8x80xf32>, vector<8x80xf32> -> vector<24x80xf32>
    %c0_38 = arith.constant 0 : index
    %c48 = arith.constant 48 : index
    %41 = vector.load %arg3[%c0_38, %c48] : memref<8x72xf32, #tpu.memory_space<vmem>>, vector<8x24xf32>
    %cst_39 = arith.constant dense<0.000000e+00> : vector<8x80xf32>
    %42 = tpu.matmul %41, %40, %cst_39 {dimension_numbers = #tpu.dot_dimension_numbers<[1], [0], [0], [1], [0, 0, 1, 1], [], []>} : vector<8x24xf32>, vector<24x80xf32>, vector<8x80xf32> -> vector<8x80xf32>
    %43 = arith.addf %36, %42 : vector<8x80xf32>
    %c0_40 = arith.constant 0 : index
    %c0_41 = arith.constant 0 : index
    %44 = vector.load %arg4[%c0_40, %c0_41] : memref<8x1xf32, #tpu.memory_space<vmem>>, vector<8x1xf32>
    %45 = vector.broadcast %44 : vector<8x1xf32> to vector<8x80xf32>
    %46 = arith.addf %43, %45 : vector<8x80xf32>
    %cst_42 = arith.constant 0.000000e+00 : f32
    %47 = vector.broadcast %cst_42 : f32 to vector<8x80xf32>
    %48 = arith.maximumf %46, %47 : vector<8x80xf32>
    %cst_43 = arith.constant 0.000000e+00 : f32
    %49 = vector.broadcast %cst_43 : f32 to vector<8x110xf32>
    %c0_44 = arith.constant 0 : index
    %c0_45 = arith.constant 0 : index
    %50 = vector.load %arg16[%c0_44, %c0_45] : memref<8x1190xf32, #tpu.memory_space<vmem>>, vector<8x110xf32>
    tpu.vector_store %arg16[%c0_44, %c0_45], %49 {strides = array<i32>} : memref<8x1190xf32, #tpu.memory_space<vmem>>, vector<8x110xf32>,
    %51 = vector.extract_strided_slice %48 {offsets = [0, 0], sizes = [8, 8], strides = [1, 1]} : vector<8x80xf32> to vector<8x8xf32>
    %c0_46 = arith.constant 0 : index
    %c11_47 = arith.constant 11 : index
    %52 = vector.load %arg16[%c0_46, %c11_47] : memref<8x1190xf32, #tpu.memory_space<vmem>>, vector<8x8xf32>
    tpu.vector_store %arg16[%c0_46, %c11_47], %51 {strides = array<i32>} : memref<8x1190xf32, #tpu.memory_space<vmem>>, vector<8x8xf32>,
    %53 = vector.extract_strided_slice %48 {offsets = [0, 10], sizes = [8, 8], strides = [1, 1]} : vector<8x80xf32> to vector<8x8xf32>
    %c0_48 = arith.constant 0 : index
    %c21_49 = arith.constant 21 : index
    %54 = vector.load %arg16[%c0_48, %c21_49] : memref<8x1190xf32, #tpu.memory_space<vmem>>, vector<8x8xf32>
    tpu.vector_store %arg16[%c0_48, %c21_49], %53 {strides = array<i32>} : memref<8x1190xf32, #tpu.memory_space<vmem>>, vector<8x8xf32>,
    %55 = vector.extract_strided_slice %48 {offsets = [0, 20], sizes = [8, 8], strides = [1, 1]} : vector<8x80xf32> to vector<8x8xf32>
    %c0_50 = arith.constant 0 : index
    %c31 = arith.constant 31 : index
    %56 = vector.load %arg16[%c0_50, %c31] : memref<8x1190xf32, #tpu.memory_space<vmem>>, vector<8x8xf32>
    tpu.vector_store %arg16[%c0_50, %c31], %55 {strides = array<i32>} : memref<8x1190xf32, #tpu.memory_space<vmem>>, vector<8x8xf32>,
    %57 = vector.extract_strided_slice %48 {offsets = [0, 30], sizes = [8, 8], strides = [1, 1]} : vector<8x80xf32> to vector<8x8xf32>
    %c0_51 = arith.constant 0 : index
    %c41 = arith.constant 41 : index
    %58 = vector.load %arg16[%c0_51, %c41] : memref<8x1190xf32, #tpu.memory_space<vmem>>, vector<8x8xf32>
    tpu.vector_store %arg16[%c0_51, %c41], %57 {strides = array<i32>} : memref<8x1190xf32, #tpu.memory_space<vmem>>, vector<8x8xf32>,
    %59 = vector.extract_strided_slice %48 {offsets = [0, 40], sizes = [8, 8], strides = [1, 1]} : vector<8x80xf32> to vector<8x8xf32>
    %c0_52 = arith.constant 0 : index
    %c51 = arith.constant 51 : index
    %60 = vector.load %arg16[%c0_52, %c51] : memref<8x1190xf32, #tpu.memory_space<vmem>>, vector<8x8xf32>
    tpu.vector_store %arg16[%c0_52, %c51], %59 {strides = array<i32>} : memref<8x1190xf32, #tpu.memory_space<vmem>>, vector<8x8xf32>,
    %61 = vector.extract_strided_slice %48 {offsets = [0, 50], sizes = [8, 8], strides = [1, 1]} : vector<8x80xf32> to vector<8x8xf32>
    %c0_53 = arith.constant 0 : index
    %c61 = arith.constant 61 : index
    %62 = vector.load %arg16[%c0_53, %c61] : memref<8x1190xf32, #tpu.memory_space<vmem>>, vector<8x8xf32>
    tpu.vector_store %arg16[%c0_53, %c61], %61 {strides = array<i32>} : memref<8x1190xf32, #tpu.memory_space<vmem>>, vector<8x8xf32>,
    %63 = vector.extract_strided_slice %48 {offsets = [0, 60], sizes = [8, 8], strides = [1, 1]} : vector<8x80xf32> to vector<8x8xf32>
    %c0_54 = arith.constant 0 : index
    %c71 = arith.constant 71 : index
    %64 = vector.load %arg16[%c0_54, %c71] : memref<8x1190xf32, #tpu.memory_space<vmem>>, vector<8x8xf32>
    tpu.vector_store %arg16[%c0_54, %c71], %63 {strides = array<i32>} : memref<8x1190xf32, #tpu.memory_space<vmem>>, vector<8x8xf32>,
    %65 = vector.extract_strided_slice %48 {offsets = [0, 70], sizes = [8, 8], strides = [1, 1]} : vector<8x80xf32> to vector<8x8xf32>
    %c0_55 = arith.constant 0 : index
    %c81 = arith.constant 81 : index
    %66 = vector.load %arg16[%c0_55, %c81] : memref<8x1190xf32, #tpu.memory_space<vmem>>, vector<8x8xf32>
    tpu.vector_store %arg16[%c0_55, %c81], %65 {strides = array<i32>} : memref<8x1190xf32, #tpu.memory_space<vmem>>, vector<8x8xf32>,
    %cst_56 = arith.constant 0.000000e+00 : f32
    %67 = vector.broadcast %cst_56 : f32 to vector<8x80xf32>
    %c0_57 = arith.constant 0 : index
    %c0_58 = arith.constant 0 : index
    %68 = vector.load %arg16[%c0_57, %c0_58] : memref<8x1190xf32, #tpu.memory_space<vmem>>, vector<8x80xf32>
    %c0_59 = arith.constant 0 : index
    %c1_60 = arith.constant 1 : index
    %69 = vector.load %arg16[%c0_59, %c1_60] : memref<8x1190xf32, #tpu.memory_space<vmem>>, vector<8x80xf32>
    %c0_61 = arith.constant 0 : index
    %c2_62 = arith.constant 2 : index
    %70 = vector.load %arg16[%c0_61, %c2_62] : memref<8x1190xf32, #tpu.memory_space<vmem>>, vector<8x80xf32>
    %71 = tpu.concatenate %68, %69, %70 in 0 : vector<8x80xf32>, vector<8x80xf32>, vector<8x80xf32> -> vector<24x80xf32>
    %c0_63 = arith.constant 0 : index
    %c0_64 = arith.constant 0 : index
    %72 = vector.load %arg5[%c0_63, %c0_64] : memref<8x72xf32, #tpu.memory_space<vmem>>, vector<8x24xf32>
    %cst_65 = arith.constant dense<0.000000e+00> : vector<8x80xf32>
    %73 = tpu.matmul %72, %71, %cst_65 {dimension_numbers = #tpu.dot_dimension_numbers<[1], [0], [0], [1], [0, 0, 1, 1], [], []>} : vector<8x24xf32>, vector<24x80xf32>, vector<8x80xf32> -> vector<8x80xf32>
    %74 = arith.addf %67, %73 : vector<8x80xf32>
    %c0_66 = arith.constant 0 : index
    %c10_67 = arith.constant 10 : index
    %75 = vector.load %arg16[%c0_66, %c10_67] : memref<8x1190xf32, #tpu.memory_space<vmem>>, vector<8x80xf32>
    %c0_68 = arith.constant 0 : index
    %c11_69 = arith.constant 11 : index
    %76 = vector.load %arg16[%c0_68, %c11_69] : memref<8x1190xf32, #tpu.memory_space<vmem>>, vector<8x80xf32>
    %c0_70 = arith.constant 0 : index
    %c12_71 = arith.constant 12 : index
    %77 = vector.load %arg16[%c0_70, %c12_71] : memref<8x1190xf32, #tpu.memory_space<vmem>>, vector<8x80xf32>
    %78 = tpu.concatenate %75, %76, %77 in 0 : vector<8x80xf32>, vector<8x80xf32>, vector<8x80xf32> -> vector<24x80xf32>
    %c0_72 = arith.constant 0 : index
    %c24_73 = arith.constant 24 : index
    %79 = vector.load %arg5[%c0_72, %c24_73] : memref<8x72xf32, #tpu.memory_space<vmem>>, vector<8x24xf32>
    %cst_74 = arith.constant dense<0.000000e+00> : vector<8x80xf32>
    %80 = tpu.matmul %79, %78, %cst_74 {dimension_numbers = #tpu.dot_dimension_numbers<[1], [0], [0], [1], [0, 0, 1, 1], [], []>} : vector<8x24xf32>, vector<24x80xf32>, vector<8x80xf32> -> vector<8x80xf32>
    %81 = arith.addf %74, %80 : vector<8x80xf32>
    %c0_75 = arith.constant 0 : index
    %c20_76 = arith.constant 20 : index
    %82 = vector.load %arg16[%c0_75, %c20_76] : memref<8x1190xf32, #tpu.memory_space<vmem>>, vector<8x80xf32>
    %c0_77 = arith.constant 0 : index
    %c21_78 = arith.constant 21 : index
    %83 = vector.load %arg16[%c0_77, %c21_78] : memref<8x1190xf32, #tpu.memory_space<vmem>>, vector<8x80xf32>
    %c0_79 = arith.constant 0 : index
    %c22_80 = arith.constant 22 : index
    %84 = vector.load %arg16[%c0_79, %c22_80] : memref<8x1190xf32, #tpu.memory_space<vmem>>, vector<8x80xf32>
    %85 = tpu.concatenate %82, %83, %84 in 0 : vector<8x80xf32>, vector<8x80xf32>, vector<8x80xf32> -> vector<24x80xf32>
    %c0_81 = arith.constant 0 : index
    %c48_82 = arith.constant 48 : index
    %86 = vector.load %arg5[%c0_81, %c48_82] : memref<8x72xf32, #tpu.memory_space<vmem>>, vector<8x24xf32>
    %cst_83 = arith.constant dense<0.000000e+00> : vector<8x80xf32>
    %87 = tpu.matmul %86, %85, %cst_83 {dimension_numbers = #tpu.dot_dimension_numbers<[1], [0], [0], [1], [0, 0, 1, 1], [], []>} : vector<8x24xf32>, vector<24x80xf32>, vector<8x80xf32> -> vector<8x80xf32>
    %88 = arith.addf %81, %87 : vector<8x80xf32>
    %c0_84 = arith.constant 0 : index
    %c0_85 = arith.constant 0 : index
    %89 = vector.load %arg6[%c0_84, %c0_85] : memref<8x1xf32, #tpu.memory_space<vmem>>, vector<8x1xf32>
    %90 = vector.broadcast %89 : vector<8x1xf32> to vector<8x80xf32>
    %91 = arith.addf %88, %90 : vector<8x80xf32>
    %cst_86 = arith.constant 0.000000e+00 : f32
    %92 = vector.broadcast %cst_86 : f32 to vector<8x80xf32>
    %93 = arith.maximumf %91, %92 : vector<8x80xf32>
    %cst_87 = arith.constant 0.000000e+00 : f32
    %94 = vector.broadcast %cst_87 : f32 to vector<8x342xf32>
    %c0_88 = arith.constant 0 : index
    %c0_89 = arith.constant 0 : index
    %95 = vector.load %arg16[%c0_88, %c0_89] : memref<8x1190xf32, #tpu.memory_space<vmem>>, vector<8x342xf32>
    tpu.vector_store %arg16[%c0_88, %c0_89], %94 {strides = array<i32>} : memref<8x1190xf32, #tpu.memory_space<vmem>>, vector<8x342xf32>,
    %cst_90 = arith.constant 0.000000e+00 : f32
    %96 = vector.broadcast %cst_90 : f32 to vector<8x6xf32>
    %97 = tpu.concatenate %93, %96 in 1 : vector<8x80xf32>, vector<8x6xf32> -> vector<8x86xf32>
    %98 = vector.extract_strided_slice %97 {offsets = [0, 0], sizes = [8, 16], strides = [1, 1]} : vector<8x86xf32> to vector<8x16xf32>
    %c0_91 = arith.constant 0 : index
    %c0_92 = arith.constant 0 : index
    %99 = vector.load %arg7[%c0_91, %c0_92] : memref<16x18xf32, #tpu.memory_space<vmem>>, vector<16x18xf32>
    %cst_93 = arith.constant dense<0.000000e+00> : vector<8x18xf32>
    %100 = tpu.matmul %98, %99, %cst_93 {dimension_numbers = #tpu.dot_dimension_numbers<[1], [0], [0], [1], [0, 0, 1, 1], [], []>} : vector<8x16xf32>, vector<16x18xf32>, vector<8x18xf32> -> vector<8x18xf32>
    %c0_94 = arith.constant 0 : index
    %c18 = arith.constant 18 : index
    %101 = vector.load %arg16[%c0_94, %c18] : memref<8x1190xf32, #tpu.memory_space<vmem>>, vector<8x18xf32>
    tpu.vector_store %arg16[%c0_94, %c18], %100 {strides = array<i32>} : memref<8x1190xf32, #tpu.memory_space<vmem>>, vector<8x18xf32>,
    %102 = vector.extract_strided_slice %97 {offsets = [0, 10], sizes = [8, 16], strides = [1, 1]} : vector<8x86xf32> to vector<8x16xf32>
    %c0_95 = arith.constant 0 : index
    %c0_96 = arith.constant 0 : index
    %103 = vector.load %arg7[%c0_95, %c0_96] : memref<16x18xf32, #tpu.memory_space<vmem>>, vector<16x18xf32>
    %cst_97 = arith.constant dense<0.000000e+00> : vector<8x18xf32>
    %104 = tpu.matmul %102, %103, %cst_97 {dimension_numbers = #tpu.dot_dimension_numbers<[1], [0], [0], [1], [0, 0, 1, 1], [], []>} : vector<8x16xf32>, vector<16x18xf32>, vector<8x18xf32> -> vector<8x18xf32>
    %c0_98 = arith.constant 0 : index
    %c54 = arith.constant 54 : index
    %105 = vector.load %arg16[%c0_98, %c54] : memref<8x1190xf32, #tpu.memory_space<vmem>>, vector<8x18xf32>
    tpu.vector_store %arg16[%c0_98, %c54], %104 {strides = array<i32>} : memref<8x1190xf32, #tpu.memory_space<vmem>>, vector<8x18xf32>,
    %106 = vector.extract_strided_slice %97 {offsets = [0, 20], sizes = [8, 16], strides = [1, 1]} : vector<8x86xf32> to vector<8x16xf32>
    %c0_99 = arith.constant 0 : index
    %c0_100 = arith.constant 0 : index
    %107 = vector.load %arg7[%c0_99, %c0_100] : memref<16x18xf32, #tpu.memory_space<vmem>>, vector<16x18xf32>
    %cst_101 = arith.constant dense<0.000000e+00> : vector<8x18xf32>
    %108 = tpu.matmul %106, %107, %cst_101 {dimension_numbers = #tpu.dot_dimension_numbers<[1], [0], [0], [1], [0, 0, 1, 1], [], []>} : vector<8x16xf32>, vector<16x18xf32>, vector<8x18xf32> -> vector<8x18xf32>
    %c0_102 = arith.constant 0 : index
    %c90 = arith.constant 90 : index
    %109 = vector.load %arg16[%c0_102, %c90] : memref<8x1190xf32, #tpu.memory_space<vmem>>, vector<8x18xf32>
    tpu.vector_store %arg16[%c0_102, %c90], %108 {strides = array<i32>} : memref<8x1190xf32, #tpu.memory_space<vmem>>, vector<8x18xf32>,
    %110 = vector.extract_strided_slice %97 {offsets = [0, 30], sizes = [8, 16], strides = [1, 1]} : vector<8x86xf32> to vector<8x16xf32>
    %c0_103 = arith.constant 0 : index
    %c0_104 = arith.constant 0 : index
    %111 = vector.load %arg7[%c0_103, %c0_104] : memref<16x18xf32, #tpu.memory_space<vmem>>, vector<16x18xf32>
    %cst_105 = arith.constant dense<0.000000e+00> : vector<8x18xf32>
    %112 = tpu.matmul %110, %111, %cst_105 {dimension_numbers = #tpu.dot_dimension_numbers<[1], [0], [0], [1], [0, 0, 1, 1], [], []>} : vector<8x16xf32>, vector<16x18xf32>, vector<8x18xf32> -> vector<8x18xf32>
    %c0_106 = arith.constant 0 : index
    %c126 = arith.constant 126 : index
    %113 = vector.load %arg16[%c0_106, %c126] : memref<8x1190xf32, #tpu.memory_space<vmem>>, vector<8x18xf32>
    tpu.vector_store %arg16[%c0_106, %c126], %112 {strides = array<i32>} : memref<8x1190xf32, #tpu.memory_space<vmem>>, vector<8x18xf32>,
    %114 = vector.extract_strided_slice %97 {offsets = [0, 40], sizes = [8, 16], strides = [1, 1]} : vector<8x86xf32> to vector<8x16xf32>
    %c0_107 = arith.constant 0 : index
    %c0_108 = arith.constant 0 : index
    %115 = vector.load %arg7[%c0_107, %c0_108] : memref<16x18xf32, #tpu.memory_space<vmem>>, vector<16x18xf32>
    %cst_109 = arith.constant dense<0.000000e+00> : vector<8x18xf32>
    %116 = tpu.matmul %114, %115, %cst_109 {dimension_numbers = #tpu.dot_dimension_numbers<[1], [0], [0], [1], [0, 0, 1, 1], [], []>} : vector<8x16xf32>, vector<16x18xf32>, vector<8x18xf32> -> vector<8x18xf32>
    %c0_110 = arith.constant 0 : index
    %c162 = arith.constant 162 : index
    %117 = vector.load %arg16[%c0_110, %c162] : memref<8x1190xf32, #tpu.memory_space<vmem>>, vector<8x18xf32>
    tpu.vector_store %arg16[%c0_110, %c162], %116 {strides = array<i32>} : memref<8x1190xf32, #tpu.memory_space<vmem>>, vector<8x18xf32>,
    %118 = vector.extract_strided_slice %97 {offsets = [0, 50], sizes = [8, 16], strides = [1, 1]} : vector<8x86xf32> to vector<8x16xf32>
    %c0_111 = arith.constant 0 : index
    %c0_112 = arith.constant 0 : index
    %119 = vector.load %arg7[%c0_111, %c0_112] : memref<16x18xf32, #tpu.memory_space<vmem>>, vector<16x18xf32>
    %cst_113 = arith.constant dense<0.000000e+00> : vector<8x18xf32>
    %120 = tpu.matmul %118, %119, %cst_113 {dimension_numbers = #tpu.dot_dimension_numbers<[1], [0], [0], [1], [0, 0, 1, 1], [], []>} : vector<8x16xf32>, vector<16x18xf32>, vector<8x18xf32> -> vector<8x18xf32>
    %c0_114 = arith.constant 0 : index
    %c198 = arith.constant 198 : index
    %121 = vector.load %arg16[%c0_114, %c198] : memref<8x1190xf32, #tpu.memory_space<vmem>>, vector<8x18xf32>
    tpu.vector_store %arg16[%c0_114, %c198], %120 {strides = array<i32>} : memref<8x1190xf32, #tpu.memory_space<vmem>>, vector<8x18xf32>,
    %122 = vector.extract_strided_slice %97 {offsets = [0, 60], sizes = [8, 16], strides = [1, 1]} : vector<8x86xf32> to vector<8x16xf32>
    %c0_115 = arith.constant 0 : index
    %c0_116 = arith.constant 0 : index
    %123 = vector.load %arg7[%c0_115, %c0_116] : memref<16x18xf32, #tpu.memory_space<vmem>>, vector<16x18xf32>
    %cst_117 = arith.constant dense<0.000000e+00> : vector<8x18xf32>
    %124 = tpu.matmul %122, %123, %cst_117 {dimension_numbers = #tpu.dot_dimension_numbers<[1], [0], [0], [1], [0, 0, 1, 1], [], []>} : vector<8x16xf32>, vector<16x18xf32>, vector<8x18xf32> -> vector<8x18xf32>
    %c0_118 = arith.constant 0 : index
    %c234 = arith.constant 234 : index
    %125 = vector.load %arg16[%c0_118, %c234] : memref<8x1190xf32, #tpu.memory_space<vmem>>, vector<8x18xf32>
    tpu.vector_store %arg16[%c0_118, %c234], %124 {strides = array<i32>} : memref<8x1190xf32, #tpu.memory_space<vmem>>, vector<8x18xf32>,
    %126 = vector.extract_strided_slice %97 {offsets = [0, 70], sizes = [8, 16], strides = [1, 1]} : vector<8x86xf32> to vector<8x16xf32>
    %c0_119 = arith.constant 0 : index
    %c0_120 = arith.constant 0 : index
    %127 = vector.load %arg7[%c0_119, %c0_120] : memref<16x18xf32, #tpu.memory_space<vmem>>, vector<16x18xf32>
    %cst_121 = arith.constant dense<0.000000e+00> : vector<8x18xf32>
    %128 = tpu.matmul %126, %127, %cst_121 {dimension_numbers = #tpu.dot_dimension_numbers<[1], [0], [0], [1], [0, 0, 1, 1], [], []>} : vector<8x16xf32>, vector<16x18xf32>, vector<8x18xf32> -> vector<8x18xf32>
    %c0_122 = arith.constant 0 : index
    %c270 = arith.constant 270 : index
    %129 = vector.load %arg16[%c0_122, %c270] : memref<8x1190xf32, #tpu.memory_space<vmem>>, vector<8x18xf32>
    tpu.vector_store %arg16[%c0_122, %c270], %128 {strides = array<i32>} : memref<8x1190xf32, #tpu.memory_space<vmem>>, vector<8x18xf32>,
    %cst_123 = arith.constant 0.000000e+00 : f32
    %130 = vector.broadcast %cst_123 : f32 to vector<8x288xf32>
    %c0_124 = arith.constant 0 : index
    %c0_125 = arith.constant 0 : index
    %131 = vector.load %arg16[%c0_124, %c0_125] : memref<8x1190xf32, #tpu.memory_space<vmem>>, vector<8x288xf32>
    %c0_126 = arith.constant 0 : index
    %c1_127 = arith.constant 1 : index
    %132 = vector.load %arg16[%c0_126, %c1_127] : memref<8x1190xf32, #tpu.memory_space<vmem>>, vector<8x288xf32>
    %c0_128 = arith.constant 0 : index
    %c2_129 = arith.constant 2 : index
    %133 = vector.load %arg16[%c0_128, %c2_129] : memref<8x1190xf32, #tpu.memory_space<vmem>>, vector<8x288xf32>
    %134 = tpu.concatenate %131, %132, %133 in 0 : vector<8x288xf32>, vector<8x288xf32>, vector<8x288xf32> -> vector<24x288xf32>
    %c0_130 = arith.constant 0 : index
    %c0_131 = arith.constant 0 : index
    %135 = vector.load %arg8[%c0_130, %c0_131] : memref<8x72xf32, #tpu.memory_space<vmem>>, vector<8x24xf32>
    %cst_132 = arith.constant dense<0.000000e+00> : vector<8x288xf32>
    %136 = tpu.matmul %135, %134, %cst_132 {dimension_numbers = #tpu.dot_dimension_numbers<[1], [0], [0], [1], [0, 0, 1, 1], [], []>} : vector<8x24xf32>, vector<24x288xf32>, vector<8x288xf32> -> vector<8x288xf32>
    %137 = arith.addf %130, %136 : vector<8x288xf32>
    %c0_133 = arith.constant 0 : index
    %c18_134 = arith.constant 18 : index
    %138 = vector.load %arg16[%c0_133, %c18_134] : memref<8x1190xf32, #tpu.memory_space<vmem>>, vector<8x288xf32>
    %c0_135 = arith.constant 0 : index
    %c19 = arith.constant 19 : index
    %139 = vector.load %arg16[%c0_135, %c19] : memref<8x1190xf32, #tpu.memory_space<vmem>>, vector<8x288xf32>
    %c0_136 = arith.constant 0 : index
    %c20_137 = arith.constant 20 : index
    %140 = vector.load %arg16[%c0_136, %c20_137] : memref<8x1190xf32, #tpu.memory_space<vmem>>, vector<8x288xf32>
    %141 = tpu.concatenate %138, %139, %140 in 0 : vector<8x288xf32>, vector<8x288xf32>, vector<8x288xf32> -> vector<24x288xf32>
    %c0_138 = arith.constant 0 : index
    %c24_139 = arith.constant 24 : index
    %142 = vector.load %arg8[%c0_138, %c24_139] : memref<8x72xf32, #tpu.memory_space<vmem>>, vector<8x24xf32>
    %cst_140 = arith.constant dense<0.000000e+00> : vector<8x288xf32>
    %143 = tpu.matmul %142, %141, %cst_140 {dimension_numbers = #tpu.dot_dimension_numbers<[1], [0], [0], [1], [0, 0, 1, 1], [], []>} : vector<8x24xf32>, vector<24x288xf32>, vector<8x288xf32> -> vector<8x288xf32>
    %144 = arith.addf %137, %143 : vector<8x288xf32>
    %c0_141 = arith.constant 0 : index
    %c36 = arith.constant 36 : index
    %145 = vector.load %arg16[%c0_141, %c36] : memref<8x1190xf32, #tpu.memory_space<vmem>>, vector<8x288xf32>
    %c0_142 = arith.constant 0 : index
    %c37 = arith.constant 37 : index
    %146 = vector.load %arg16[%c0_142, %c37] : memref<8x1190xf32, #tpu.memory_space<vmem>>, vector<8x288xf32>
    %c0_143 = arith.constant 0 : index
    %c38 = arith.constant 38 : index
    %147 = vector.load %arg16[%c0_143, %c38] : memref<8x1190xf32, #tpu.memory_space<vmem>>, vector<8x288xf32>
    %148 = tpu.concatenate %145, %146, %147 in 0 : vector<8x288xf32>, vector<8x288xf32>, vector<8x288xf32> -> vector<24x288xf32>
    %c0_144 = arith.constant 0 : index
    %c48_145 = arith.constant 48 : index
    %149 = vector.load %arg8[%c0_144, %c48_145] : memref<8x72xf32, #tpu.memory_space<vmem>>, vector<8x24xf32>
    %cst_146 = arith.constant dense<0.000000e+00> : vector<8x288xf32>
    %150 = tpu.matmul %149, %148, %cst_146 {dimension_numbers = #tpu.dot_dimension_numbers<[1], [0], [0], [1], [0, 0, 1, 1], [], []>} : vector<8x24xf32>, vector<24x288xf32>, vector<8x288xf32> -> vector<8x288xf32>
    %151 = arith.addf %144, %150 : vector<8x288xf32>
    %c0_147 = arith.constant 0 : index
    %c0_148 = arith.constant 0 : index
    %152 = vector.load %arg9[%c0_147, %c0_148] : memref<8x1xf32, #tpu.memory_space<vmem>>, vector<8x1xf32>
    %153 = vector.broadcast %152 : vector<8x1xf32> to vector<8x288xf32>
    %154 = arith.addf %151, %153 : vector<8x288xf32>
    %cst_149 = arith.constant 0.000000e+00 : f32
    %155 = vector.broadcast %cst_149 : f32 to vector<8x288xf32>
    %156 = arith.maximumf %154, %155 : vector<8x288xf32>
    %cst_150 = arith.constant 0.000000e+00 : f32
    %157 = vector.broadcast %cst_150 : f32 to vector<8x342xf32>
    %c0_151 = arith.constant 0 : index
    %c0_152 = arith.constant 0 : index
    %158 = vector.load %arg16[%c0_151, %c0_152] : memref<8x1190xf32, #tpu.memory_space<vmem>>, vector<8x342xf32>
    tpu.vector_store %arg16[%c0_151, %c0_152], %157 {strides = array<i32>} : memref<8x1190xf32, #tpu.memory_space<vmem>>, vector<8x342xf32>,
    %159 = vector.extract_strided_slice %156 {offsets = [0, 0], sizes = [8, 16], strides = [1, 1]} : vector<8x288xf32> to vector<8x16xf32>
    %c0_153 = arith.constant 0 : index
    %c19_154 = arith.constant 19 : index
    %160 = vector.load %arg16[%c0_153, %c19_154] : memref<8x1190xf32, #tpu.memory_space<vmem>>, vector<8x16xf32>
    tpu.vector_store %arg16[%c0_153, %c19_154], %159 {strides = array<i32>} : memref<8x1190xf32, #tpu.memory_space<vmem>>, vector<8x16xf32>,
    %161 = vector.extract_strided_slice %156 {offsets = [0, 18], sizes = [8, 16], strides = [1, 1]} : vector<8x288xf32> to vector<8x16xf32>
    %c0_155 = arith.constant 0 : index
    %c37_156 = arith.constant 37 : index
    %162 = vector.load %arg16[%c0_155, %c37_156] : memref<8x1190xf32, #tpu.memory_space<vmem>>, vector<8x16xf32>
    tpu.vector_store %arg16[%c0_155, %c37_156], %161 {strides = array<i32>} : memref<8x1190xf32, #tpu.memory_space<vmem>>, vector<8x16xf32>,
    %163 = vector.extract_strided_slice %156 {offsets = [0, 36], sizes = [8, 16], strides = [1, 1]} : vector<8x288xf32> to vector<8x16xf32>
    %c0_157 = arith.constant 0 : index
    %c55 = arith.constant 55 : index
    %164 = vector.load %arg16[%c0_157, %c55] : memref<8x1190xf32, #tpu.memory_space<vmem>>, vector<8x16xf32>
    tpu.vector_store %arg16[%c0_157, %c55], %163 {strides = array<i32>} : memref<8x1190xf32, #tpu.memory_space<vmem>>, vector<8x16xf32>,
    %165 = vector.extract_strided_slice %156 {offsets = [0, 54], sizes = [8, 16], strides = [1, 1]} : vector<8x288xf32> to vector<8x16xf32>
    %c0_158 = arith.constant 0 : index
    %c73 = arith.constant 73 : index
    %166 = vector.load %arg16[%c0_158, %c73] : memref<8x1190xf32, #tpu.memory_space<vmem>>, vector<8x16xf32>
    tpu.vector_store %arg16[%c0_158, %c73], %165 {strides = array<i32>} : memref<8x1190xf32, #tpu.memory_space<vmem>>, vector<8x16xf32>,
    %167 = vector.extract_strided_slice %156 {offsets = [0, 72], sizes = [8, 16], strides = [1, 1]} : vector<8x288xf32> to vector<8x16xf32>
    %c0_159 = arith.constant 0 : index
    %c91 = arith.constant 91 : index
    %168 = vector.load %arg16[%c0_159, %c91] : memref<8x1190xf32, #tpu.memory_space<vmem>>, vector<8x16xf32>
    tpu.vector_store %arg16[%c0_159, %c91], %167 {strides = array<i32>} : memref<8x1190xf32, #tpu.memory_space<vmem>>, vector<8x16xf32>,
    %169 = vector.extract_strided_slice %156 {offsets = [0, 90], sizes = [8, 16], strides = [1, 1]} : vector<8x288xf32> to vector<8x16xf32>
    %c0_160 = arith.constant 0 : index
    %c109 = arith.constant 109 : index
    %170 = vector.load %arg16[%c0_160, %c109] : memref<8x1190xf32, #tpu.memory_space<vmem>>, vector<8x16xf32>
    tpu.vector_store %arg16[%c0_160, %c109], %169 {strides = array<i32>} : memref<8x1190xf32, #tpu.memory_space<vmem>>, vector<8x16xf32>,
    %171 = vector.extract_strided_slice %156 {offsets = [0, 108], sizes = [8, 16], strides = [1, 1]} : vector<8x288xf32> to vector<8x16xf32>
    %c0_161 = arith.constant 0 : index
    %c127 = arith.constant 127 : index
    %172 = vector.load %arg16[%c0_161, %c127] : memref<8x1190xf32, #tpu.memory_space<vmem>>, vector<8x16xf32>
    tpu.vector_store %arg16[%c0_161, %c127], %171 {strides = array<i32>} : memref<8x1190xf32, #tpu.memory_space<vmem>>, vector<8x16xf32>,
    %173 = vector.extract_strided_slice %156 {offsets = [0, 126], sizes = [8, 16], strides = [1, 1]} : vector<8x288xf32> to vector<8x16xf32>
    %c0_162 = arith.constant 0 : index
    %c145 = arith.constant 145 : index
    %174 = vector.load %arg16[%c0_162, %c145] : memref<8x1190xf32, #tpu.memory_space<vmem>>, vector<8x16xf32>
    tpu.vector_store %arg16[%c0_162, %c145], %173 {strides = array<i32>} : memref<8x1190xf32, #tpu.memory_space<vmem>>, vector<8x16xf32>,
    %175 = vector.extract_strided_slice %156 {offsets = [0, 144], sizes = [8, 16], strides = [1, 1]} : vector<8x288xf32> to vector<8x16xf32>
    %c0_163 = arith.constant 0 : index
    %c163 = arith.constant 163 : index
    %176 = vector.load %arg16[%c0_163, %c163] : memref<8x1190xf32, #tpu.memory_space<vmem>>, vector<8x16xf32>
    tpu.vector_store %arg16[%c0_163, %c163], %175 {strides = array<i32>} : memref<8x1190xf32, #tpu.memory_space<vmem>>, vector<8x16xf32>,
    %177 = vector.extract_strided_slice %156 {offsets = [0, 162], sizes = [8, 16], strides = [1, 1]} : vector<8x288xf32> to vector<8x16xf32>
    %c0_164 = arith.constant 0 : index
    %c181 = arith.constant 181 : index
    %178 = vector.load %arg16[%c0_164, %c181] : memref<8x1190xf32, #tpu.memory_space<vmem>>, vector<8x16xf32>
    tpu.vector_store %arg16[%c0_164, %c181], %177 {strides = array<i32>} : memref<8x1190xf32, #tpu.memory_space<vmem>>, vector<8x16xf32>,
    %179 = vector.extract_strided_slice %156 {offsets = [0, 180], sizes = [8, 16], strides = [1, 1]} : vector<8x288xf32> to vector<8x16xf32>
    %c0_165 = arith.constant 0 : index
    %c199 = arith.constant 199 : index
    %180 = vector.load %arg16[%c0_165, %c199] : memref<8x1190xf32, #tpu.memory_space<vmem>>, vector<8x16xf32>
    tpu.vector_store %arg16[%c0_165, %c199], %179 {strides = array<i32>} : memref<8x1190xf32, #tpu.memory_space<vmem>>, vector<8x16xf32>,
    %181 = vector.extract_strided_slice %156 {offsets = [0, 198], sizes = [8, 16], strides = [1, 1]} : vector<8x288xf32> to vector<8x16xf32>
    %c0_166 = arith.constant 0 : index
    %c217 = arith.constant 217 : index
    %182 = vector.load %arg16[%c0_166, %c217] : memref<8x1190xf32, #tpu.memory_space<vmem>>, vector<8x16xf32>
    tpu.vector_store %arg16[%c0_166, %c217], %181 {strides = array<i32>} : memref<8x1190xf32, #tpu.memory_space<vmem>>, vector<8x16xf32>,
    %183 = vector.extract_strided_slice %156 {offsets = [0, 216], sizes = [8, 16], strides = [1, 1]} : vector<8x288xf32> to vector<8x16xf32>
    %c0_167 = arith.constant 0 : index
    %c235 = arith.constant 235 : index
    %184 = vector.load %arg16[%c0_167, %c235] : memref<8x1190xf32, #tpu.memory_space<vmem>>, vector<8x16xf32>
    tpu.vector_store %arg16[%c0_167, %c235], %183 {strides = array<i32>} : memref<8x1190xf32, #tpu.memory_space<vmem>>, vector<8x16xf32>,
    %185 = vector.extract_strided_slice %156 {offsets = [0, 234], sizes = [8, 16], strides = [1, 1]} : vector<8x288xf32> to vector<8x16xf32>
    %c0_168 = arith.constant 0 : index
    %c253 = arith.constant 253 : index
    %186 = vector.load %arg16[%c0_168, %c253] : memref<8x1190xf32, #tpu.memory_space<vmem>>, vector<8x16xf32>
    tpu.vector_store %arg16[%c0_168, %c253], %185 {strides = array<i32>} : memref<8x1190xf32, #tpu.memory_space<vmem>>, vector<8x16xf32>,
    %187 = vector.extract_strided_slice %156 {offsets = [0, 252], sizes = [8, 16], strides = [1, 1]} : vector<8x288xf32> to vector<8x16xf32>
    %c0_169 = arith.constant 0 : index
    %c271 = arith.constant 271 : index
    %188 = vector.load %arg16[%c0_169, %c271] : memref<8x1190xf32, #tpu.memory_space<vmem>>, vector<8x16xf32>
    tpu.vector_store %arg16[%c0_169, %c271], %187 {strides = array<i32>} : memref<8x1190xf32, #tpu.memory_space<vmem>>, vector<8x16xf32>,
    %189 = vector.extract_strided_slice %156 {offsets = [0, 270], sizes = [8, 16], strides = [1, 1]} : vector<8x288xf32> to vector<8x16xf32>
    %c0_170 = arith.constant 0 : index
    %c289 = arith.constant 289 : index
    %190 = vector.load %arg16[%c0_170, %c289] : memref<8x1190xf32, #tpu.memory_space<vmem>>, vector<8x16xf32>
    tpu.vector_store %arg16[%c0_170, %c289], %189 {strides = array<i32>} : memref<8x1190xf32, #tpu.memory_space<vmem>>, vector<8x16xf32>,
    %cst_171 = arith.constant 0.000000e+00 : f32
    %191 = vector.broadcast %cst_171 : f32 to vector<8x288xf32>
    %c0_172 = arith.constant 0 : index
    %c0_173 = arith.constant 0 : index
    %192 = vector.load %arg16[%c0_172, %c0_173] : memref<8x1190xf32, #tpu.memory_space<vmem>>, vector<8x288xf32>
    %c0_174 = arith.constant 0 : index
    %c1_175 = arith.constant 1 : index
    %193 = vector.load %arg16[%c0_174, %c1_175] : memref<8x1190xf32, #tpu.memory_space<vmem>>, vector<8x288xf32>
    %c0_176 = arith.constant 0 : index
    %c2_177 = arith.constant 2 : index
    %194 = vector.load %arg16[%c0_176, %c2_177] : memref<8x1190xf32, #tpu.memory_space<vmem>>, vector<8x288xf32>
    %195 = tpu.concatenate %192, %193, %194 in 0 : vector<8x288xf32>, vector<8x288xf32>, vector<8x288xf32> -> vector<24x288xf32>
    %c0_178 = arith.constant 0 : index
    %c0_179 = arith.constant 0 : index
    %196 = vector.load %arg10[%c0_178, %c0_179] : memref<8x72xf32, #tpu.memory_space<vmem>>, vector<8x24xf32>
    %cst_180 = arith.constant dense<0.000000e+00> : vector<8x288xf32>
    %197 = tpu.matmul %196, %195, %cst_180 {dimension_numbers = #tpu.dot_dimension_numbers<[1], [0], [0], [1], [0, 0, 1, 1], [], []>} : vector<8x24xf32>, vector<24x288xf32>, vector<8x288xf32> -> vector<8x288xf32>
    %198 = arith.addf %191, %197 : vector<8x288xf32>
    %c0_181 = arith.constant 0 : index
    %c18_182 = arith.constant 18 : index
    %199 = vector.load %arg16[%c0_181, %c18_182] : memref<8x1190xf32, #tpu.memory_space<vmem>>, vector<8x288xf32>
    %c0_183 = arith.constant 0 : index
    %c19_184 = arith.constant 19 : index
    %200 = vector.load %arg16[%c0_183, %c19_184] : memref<8x1190xf32, #tpu.memory_space<vmem>>, vector<8x288xf32>
    %c0_185 = arith.constant 0 : index
    %c20_186 = arith.constant 20 : index
    %201 = vector.load %arg16[%c0_185, %c20_186] : memref<8x1190xf32, #tpu.memory_space<vmem>>, vector<8x288xf32>
    %202 = tpu.concatenate %199, %200, %201 in 0 : vector<8x288xf32>, vector<8x288xf32>, vector<8x288xf32> -> vector<24x288xf32>
    %c0_187 = arith.constant 0 : index
    %c24_188 = arith.constant 24 : index
    %203 = vector.load %arg10[%c0_187, %c24_188] : memref<8x72xf32, #tpu.memory_space<vmem>>, vector<8x24xf32>
    %cst_189 = arith.constant dense<0.000000e+00> : vector<8x288xf32>
    %204 = tpu.matmul %203, %202, %cst_189 {dimension_numbers = #tpu.dot_dimension_numbers<[1], [0], [0], [1], [0, 0, 1, 1], [], []>} : vector<8x24xf32>, vector<24x288xf32>, vector<8x288xf32> -> vector<8x288xf32>
    %205 = arith.addf %198, %204 : vector<8x288xf32>
    %c0_190 = arith.constant 0 : index
    %c36_191 = arith.constant 36 : index
    %206 = vector.load %arg16[%c0_190, %c36_191] : memref<8x1190xf32, #tpu.memory_space<vmem>>, vector<8x288xf32>
    %c0_192 = arith.constant 0 : index
    %c37_193 = arith.constant 37 : index
    %207 = vector.load %arg16[%c0_192, %c37_193] : memref<8x1190xf32, #tpu.memory_space<vmem>>, vector<8x288xf32>
    %c0_194 = arith.constant 0 : index
    %c38_195 = arith.constant 38 : index
    %208 = vector.load %arg16[%c0_194, %c38_195] : memref<8x1190xf32, #tpu.memory_space<vmem>>, vector<8x288xf32>
    %209 = tpu.concatenate %206, %207, %208 in 0 : vector<8x288xf32>, vector<8x288xf32>, vector<8x288xf32> -> vector<24x288xf32>
    %c0_196 = arith.constant 0 : index
    %c48_197 = arith.constant 48 : index
    %210 = vector.load %arg10[%c0_196, %c48_197] : memref<8x72xf32, #tpu.memory_space<vmem>>, vector<8x24xf32>
    %cst_198 = arith.constant dense<0.000000e+00> : vector<8x288xf32>
    %211 = tpu.matmul %210, %209, %cst_198 {dimension_numbers = #tpu.dot_dimension_numbers<[1], [0], [0], [1], [0, 0, 1, 1], [], []>} : vector<8x24xf32>, vector<24x288xf32>, vector<8x288xf32> -> vector<8x288xf32>
    %212 = arith.addf %205, %211 : vector<8x288xf32>
    %c0_199 = arith.constant 0 : index
    %c0_200 = arith.constant 0 : index
    %213 = vector.load %arg11[%c0_199, %c0_200] : memref<8x1xf32, #tpu.memory_space<vmem>>, vector<8x1xf32>
    %214 = vector.broadcast %213 : vector<8x1xf32> to vector<8x288xf32>
    %215 = arith.addf %212, %214 : vector<8x288xf32>
    %cst_201 = arith.constant 0.000000e+00 : f32
    %216 = vector.broadcast %cst_201 : f32 to vector<8x288xf32>
    %217 = arith.maximumf %215, %216 : vector<8x288xf32>
    %cst_202 = arith.constant 0.000000e+00 : f32
    %218 = vector.broadcast %cst_202 : f32 to vector<8x1190xf32>
    %c0_203 = arith.constant 0 : index
    %c0_204 = arith.constant 0 : index
    %219 = vector.load %arg16[%c0_203, %c0_204] : memref<8x1190xf32, #tpu.memory_space<vmem>>, vector<8x1190xf32>
    tpu.vector_store %arg16[%c0_203, %c0_204], %218 {strides = array<i32>} : memref<8x1190xf32, #tpu.memory_space<vmem>>, vector<8x1190xf32>,
    %cst_205 = arith.constant 0.000000e+00 : f32
    %220 = vector.broadcast %cst_205 : f32 to vector<8x6xf32>
    %221 = tpu.concatenate %217, %220 in 1 : vector<8x288xf32>, vector<8x6xf32> -> vector<8x294xf32>
    %222 = vector.extract_strided_slice %221 {offsets = [0, 0], sizes = [8, 24], strides = [1, 1]} : vector<8x294xf32> to vector<8x24xf32>
    %c0_206 = arith.constant 0 : index
    %c0_207 = arith.constant 0 : index
    %223 = vector.load %arg12[%c0_206, %c0_207] : memref<24x34xf32, #tpu.memory_space<vmem>>, vector<24x34xf32>
    %cst_208 = arith.constant dense<0.000000e+00> : vector<8x34xf32>
    %224 = tpu.matmul %222, %223, %cst_208 {dimension_numbers = #tpu.dot_dimension_numbers<[1], [0], [0], [1], [0, 0, 1, 1], [], []>} : vector<8x24xf32>, vector<24x34xf32>, vector<8x34xf32> -> vector<8x34xf32>
    %c0_209 = arith.constant 0 : index
    %c34 = arith.constant 34 : index
    %225 = vector.load %arg16[%c0_209, %c34] : memref<8x1190xf32, #tpu.memory_space<vmem>>, vector<8x34xf32>
    tpu.vector_store %arg16[%c0_209, %c34], %224 {strides = array<i32>} : memref<8x1190xf32, #tpu.memory_space<vmem>>, vector<8x34xf32>,
    %226 = vector.extract_strided_slice %221 {offsets = [0, 18], sizes = [8, 24], strides = [1, 1]} : vector<8x294xf32> to vector<8x24xf32>
    %c0_210 = arith.constant 0 : index
    %c0_211 = arith.constant 0 : index
    %227 = vector.load %arg12[%c0_210, %c0_211] : memref<24x34xf32, #tpu.memory_space<vmem>>, vector<24x34xf32>
    %cst_212 = arith.constant dense<0.000000e+00> : vector<8x34xf32>
    %228 = tpu.matmul %226, %227, %cst_212 {dimension_numbers = #tpu.dot_dimension_numbers<[1], [0], [0], [1], [0, 0, 1, 1], [], []>} : vector<8x24xf32>, vector<24x34xf32>, vector<8x34xf32> -> vector<8x34xf32>
    %c0_213 = arith.constant 0 : index
    %c102 = arith.constant 102 : index
    %229 = vector.load %arg16[%c0_213, %c102] : memref<8x1190xf32, #tpu.memory_space<vmem>>, vector<8x34xf32>
    tpu.vector_store %arg16[%c0_213, %c102], %228 {strides = array<i32>} : memref<8x1190xf32, #tpu.memory_space<vmem>>, vector<8x34xf32>,
    %230 = vector.extract_strided_slice %221 {offsets = [0, 36], sizes = [8, 24], strides = [1, 1]} : vector<8x294xf32> to vector<8x24xf32>
    %c0_214 = arith.constant 0 : index
    %c0_215 = arith.constant 0 : index
    %231 = vector.load %arg12[%c0_214, %c0_215] : memref<24x34xf32, #tpu.memory_space<vmem>>, vector<24x34xf32>
    %cst_216 = arith.constant dense<0.000000e+00> : vector<8x34xf32>
    %232 = tpu.matmul %230, %231, %cst_216 {dimension_numbers = #tpu.dot_dimension_numbers<[1], [0], [0], [1], [0, 0, 1, 1], [], []>} : vector<8x24xf32>, vector<24x34xf32>, vector<8x34xf32> -> vector<8x34xf32>
    %c0_217 = arith.constant 0 : index
    %c170 = arith.constant 170 : index
    %233 = vector.load %arg16[%c0_217, %c170] : memref<8x1190xf32, #tpu.memory_space<vmem>>, vector<8x34xf32>
    tpu.vector_store %arg16[%c0_217, %c170], %232 {strides = array<i32>} : memref<8x1190xf32, #tpu.memory_space<vmem>>, vector<8x34xf32>,
    %234 = vector.extract_strided_slice %221 {offsets = [0, 54], sizes = [8, 24], strides = [1, 1]} : vector<8x294xf32> to vector<8x24xf32>
    %c0_218 = arith.constant 0 : index
    %c0_219 = arith.constant 0 : index
    %235 = vector.load %arg12[%c0_218, %c0_219] : memref<24x34xf32, #tpu.memory_space<vmem>>, vector<24x34xf32>
    %cst_220 = arith.constant dense<0.000000e+00> : vector<8x34xf32>
    %236 = tpu.matmul %234, %235, %cst_220 {dimension_numbers = #tpu.dot_dimension_numbers<[1], [0], [0], [1], [0, 0, 1, 1], [], []>} : vector<8x24xf32>, vector<24x34xf32>, vector<8x34xf32> -> vector<8x34xf32>
    %c0_221 = arith.constant 0 : index
    %c238 = arith.constant 238 : index
    %237 = vector.load %arg16[%c0_221, %c238] : memref<8x1190xf32, #tpu.memory_space<vmem>>, vector<8x34xf32>
    tpu.vector_store %arg16[%c0_221, %c238], %236 {strides = array<i32>} : memref<8x1190xf32, #tpu.memory_space<vmem>>, vector<8x34xf32>,
    %238 = vector.extract_strided_slice %221 {offsets = [0, 72], sizes = [8, 24], strides = [1, 1]} : vector<8x294xf32> to vector<8x24xf32>
    %c0_222 = arith.constant 0 : index
    %c0_223 = arith.constant 0 : index
    %239 = vector.load %arg12[%c0_222, %c0_223] : memref<24x34xf32, #tpu.memory_space<vmem>>, vector<24x34xf32>
    %cst_224 = arith.constant dense<0.000000e+00> : vector<8x34xf32>
    %240 = tpu.matmul %238, %239, %cst_224 {dimension_numbers = #tpu.dot_dimension_numbers<[1], [0], [0], [1], [0, 0, 1, 1], [], []>} : vector<8x24xf32>, vector<24x34xf32>, vector<8x34xf32> -> vector<8x34xf32>
    %c0_225 = arith.constant 0 : index
    %c306 = arith.constant 306 : index
    %241 = vector.load %arg16[%c0_225, %c306] : memref<8x1190xf32, #tpu.memory_space<vmem>>, vector<8x34xf32>
    tpu.vector_store %arg16[%c0_225, %c306], %240 {strides = array<i32>} : memref<8x1190xf32, #tpu.memory_space<vmem>>, vector<8x34xf32>,
    %242 = vector.extract_strided_slice %221 {offsets = [0, 90], sizes = [8, 24], strides = [1, 1]} : vector<8x294xf32> to vector<8x24xf32>
    %c0_226 = arith.constant 0 : index
    %c0_227 = arith.constant 0 : index
    %243 = vector.load %arg12[%c0_226, %c0_227] : memref<24x34xf32, #tpu.memory_space<vmem>>, vector<24x34xf32>
    %cst_228 = arith.constant dense<0.000000e+00> : vector<8x34xf32>
    %244 = tpu.matmul %242, %243, %cst_228 {dimension_numbers = #tpu.dot_dimension_numbers<[1], [0], [0], [1], [0, 0, 1, 1], [], []>} : vector<8x24xf32>, vector<24x34xf32>, vector<8x34xf32> -> vector<8x34xf32>
    %c0_229 = arith.constant 0 : index
    %c374 = arith.constant 374 : index
    %245 = vector.load %arg16[%c0_229, %c374] : memref<8x1190xf32, #tpu.memory_space<vmem>>, vector<8x34xf32>
    tpu.vector_store %arg16[%c0_229, %c374], %244 {strides = array<i32>} : memref<8x1190xf32, #tpu.memory_space<vmem>>, vector<8x34xf32>,
    %246 = vector.extract_strided_slice %221 {offsets = [0, 108], sizes = [8, 24], strides = [1, 1]} : vector<8x294xf32> to vector<8x24xf32>
    %c0_230 = arith.constant 0 : index
    %c0_231 = arith.constant 0 : index
    %247 = vector.load %arg12[%c0_230, %c0_231] : memref<24x34xf32, #tpu.memory_space<vmem>>, vector<24x34xf32>
    %cst_232 = arith.constant dense<0.000000e+00> : vector<8x34xf32>
    %248 = tpu.matmul %246, %247, %cst_232 {dimension_numbers = #tpu.dot_dimension_numbers<[1], [0], [0], [1], [0, 0, 1, 1], [], []>} : vector<8x24xf32>, vector<24x34xf32>, vector<8x34xf32> -> vector<8x34xf32>
    %c0_233 = arith.constant 0 : index
    %c442 = arith.constant 442 : index
    %249 = vector.load %arg16[%c0_233, %c442] : memref<8x1190xf32, #tpu.memory_space<vmem>>, vector<8x34xf32>
    tpu.vector_store %arg16[%c0_233, %c442], %248 {strides = array<i32>} : memref<8x1190xf32, #tpu.memory_space<vmem>>, vector<8x34xf32>,
    %250 = vector.extract_strided_slice %221 {offsets = [0, 126], sizes = [8, 24], strides = [1, 1]} : vector<8x294xf32> to vector<8x24xf32>
    %c0_234 = arith.constant 0 : index
    %c0_235 = arith.constant 0 : index
    %251 = vector.load %arg12[%c0_234, %c0_235] : memref<24x34xf32, #tpu.memory_space<vmem>>, vector<24x34xf32>
    %cst_236 = arith.constant dense<0.000000e+00> : vector<8x34xf32>
    %252 = tpu.matmul %250, %251, %cst_236 {dimension_numbers = #tpu.dot_dimension_numbers<[1], [0], [0], [1], [0, 0, 1, 1], [], []>} : vector<8x24xf32>, vector<24x34xf32>, vector<8x34xf32> -> vector<8x34xf32>
    %c0_237 = arith.constant 0 : index
    %c510 = arith.constant 510 : index
    %253 = vector.load %arg16[%c0_237, %c510] : memref<8x1190xf32, #tpu.memory_space<vmem>>, vector<8x34xf32>
    tpu.vector_store %arg16[%c0_237, %c510], %252 {strides = array<i32>} : memref<8x1190xf32, #tpu.memory_space<vmem>>, vector<8x34xf32>,
    %254 = vector.extract_strided_slice %221 {offsets = [0, 144], sizes = [8, 24], strides = [1, 1]} : vector<8x294xf32> to vector<8x24xf32>
    %c0_238 = arith.constant 0 : index
    %c0_239 = arith.constant 0 : index
    %255 = vector.load %arg12[%c0_238, %c0_239] : memref<24x34xf32, #tpu.memory_space<vmem>>, vector<24x34xf32>
    %cst_240 = arith.constant dense<0.000000e+00> : vector<8x34xf32>
    %256 = tpu.matmul %254, %255, %cst_240 {dimension_numbers = #tpu.dot_dimension_numbers<[1], [0], [0], [1], [0, 0, 1, 1], [], []>} : vector<8x24xf32>, vector<24x34xf32>, vector<8x34xf32> -> vector<8x34xf32>
    %c0_241 = arith.constant 0 : index
    %c578 = arith.constant 578 : index
    %257 = vector.load %arg16[%c0_241, %c578] : memref<8x1190xf32, #tpu.memory_space<vmem>>, vector<8x34xf32>
    tpu.vector_store %arg16[%c0_241, %c578], %256 {strides = array<i32>} : memref<8x1190xf32, #tpu.memory_space<vmem>>, vector<8x34xf32>,
    %258 = vector.extract_strided_slice %221 {offsets = [0, 162], sizes = [8, 24], strides = [1, 1]} : vector<8x294xf32> to vector<8x24xf32>
    %c0_242 = arith.constant 0 : index
    %c0_243 = arith.constant 0 : index
    %259 = vector.load %arg12[%c0_242, %c0_243] : memref<24x34xf32, #tpu.memory_space<vmem>>, vector<24x34xf32>
    %cst_244 = arith.constant dense<0.000000e+00> : vector<8x34xf32>
    %260 = tpu.matmul %258, %259, %cst_244 {dimension_numbers = #tpu.dot_dimension_numbers<[1], [0], [0], [1], [0, 0, 1, 1], [], []>} : vector<8x24xf32>, vector<24x34xf32>, vector<8x34xf32> -> vector<8x34xf32>
    %c0_245 = arith.constant 0 : index
    %c646 = arith.constant 646 : index
    %261 = vector.load %arg16[%c0_245, %c646] : memref<8x1190xf32, #tpu.memory_space<vmem>>, vector<8x34xf32>
    tpu.vector_store %arg16[%c0_245, %c646], %260 {strides = array<i32>} : memref<8x1190xf32, #tpu.memory_space<vmem>>, vector<8x34xf32>,
    %262 = vector.extract_strided_slice %221 {offsets = [0, 180], sizes = [8, 24], strides = [1, 1]} : vector<8x294xf32> to vector<8x24xf32>
    %c0_246 = arith.constant 0 : index
    %c0_247 = arith.constant 0 : index
    %263 = vector.load %arg12[%c0_246, %c0_247] : memref<24x34xf32, #tpu.memory_space<vmem>>, vector<24x34xf32>
    %cst_248 = arith.constant dense<0.000000e+00> : vector<8x34xf32>
    %264 = tpu.matmul %262, %263, %cst_248 {dimension_numbers = #tpu.dot_dimension_numbers<[1], [0], [0], [1], [0, 0, 1, 1], [], []>} : vector<8x24xf32>, vector<24x34xf32>, vector<8x34xf32> -> vector<8x34xf32>
    %c0_249 = arith.constant 0 : index
    %c714 = arith.constant 714 : index
    %265 = vector.load %arg16[%c0_249, %c714] : memref<8x1190xf32, #tpu.memory_space<vmem>>, vector<8x34xf32>
    tpu.vector_store %arg16[%c0_249, %c714], %264 {strides = array<i32>} : memref<8x1190xf32, #tpu.memory_space<vmem>>, vector<8x34xf32>,
    %266 = vector.extract_strided_slice %221 {offsets = [0, 198], sizes = [8, 24], strides = [1, 1]} : vector<8x294xf32> to vector<8x24xf32>
    %c0_250 = arith.constant 0 : index
    %c0_251 = arith.constant 0 : index
    %267 = vector.load %arg12[%c0_250, %c0_251] : memref<24x34xf32, #tpu.memory_space<vmem>>, vector<24x34xf32>
    %cst_252 = arith.constant dense<0.000000e+00> : vector<8x34xf32>
    %268 = tpu.matmul %266, %267, %cst_252 {dimension_numbers = #tpu.dot_dimension_numbers<[1], [0], [0], [1], [0, 0, 1, 1], [], []>} : vector<8x24xf32>, vector<24x34xf32>, vector<8x34xf32> -> vector<8x34xf32>
    %c0_253 = arith.constant 0 : index
    %c782 = arith.constant 782 : index
    %269 = vector.load %arg16[%c0_253, %c782] : memref<8x1190xf32, #tpu.memory_space<vmem>>, vector<8x34xf32>
    tpu.vector_store %arg16[%c0_253, %c782], %268 {strides = array<i32>} : memref<8x1190xf32, #tpu.memory_space<vmem>>, vector<8x34xf32>,
    %270 = vector.extract_strided_slice %221 {offsets = [0, 216], sizes = [8, 24], strides = [1, 1]} : vector<8x294xf32> to vector<8x24xf32>
    %c0_254 = arith.constant 0 : index
    %c0_255 = arith.constant 0 : index
    %271 = vector.load %arg12[%c0_254, %c0_255] : memref<24x34xf32, #tpu.memory_space<vmem>>, vector<24x34xf32>
    %cst_256 = arith.constant dense<0.000000e+00> : vector<8x34xf32>
    %272 = tpu.matmul %270, %271, %cst_256 {dimension_numbers = #tpu.dot_dimension_numbers<[1], [0], [0], [1], [0, 0, 1, 1], [], []>} : vector<8x24xf32>, vector<24x34xf32>, vector<8x34xf32> -> vector<8x34xf32>
    %c0_257 = arith.constant 0 : index
    %c850 = arith.constant 850 : index
    %273 = vector.load %arg16[%c0_257, %c850] : memref<8x1190xf32, #tpu.memory_space<vmem>>, vector<8x34xf32>
    tpu.vector_store %arg16[%c0_257, %c850], %272 {strides = array<i32>} : memref<8x1190xf32, #tpu.memory_space<vmem>>, vector<8x34xf32>,
    %274 = vector.extract_strided_slice %221 {offsets = [0, 234], sizes = [8, 24], strides = [1, 1]} : vector<8x294xf32> to vector<8x24xf32>
    %c0_258 = arith.constant 0 : index
    %c0_259 = arith.constant 0 : index
    %275 = vector.load %arg12[%c0_258, %c0_259] : memref<24x34xf32, #tpu.memory_space<vmem>>, vector<24x34xf32>
    %cst_260 = arith.constant dense<0.000000e+00> : vector<8x34xf32>
    %276 = tpu.matmul %274, %275, %cst_260 {dimension_numbers = #tpu.dot_dimension_numbers<[1], [0], [0], [1], [0, 0, 1, 1], [], []>} : vector<8x24xf32>, vector<24x34xf32>, vector<8x34xf32> -> vector<8x34xf32>
    %c0_261 = arith.constant 0 : index
    %c918 = arith.constant 918 : index
    %277 = vector.load %arg16[%c0_261, %c918] : memref<8x1190xf32, #tpu.memory_space<vmem>>, vector<8x34xf32>
    tpu.vector_store %arg16[%c0_261, %c918], %276 {strides = array<i32>} : memref<8x1190xf32, #tpu.memory_space<vmem>>, vector<8x34xf32>,
    %278 = vector.extract_strided_slice %221 {offsets = [0, 252], sizes = [8, 24], strides = [1, 1]} : vector<8x294xf32> to vector<8x24xf32>
    %c0_262 = arith.constant 0 : index
    %c0_263 = arith.constant 0 : index
    %279 = vector.load %arg12[%c0_262, %c0_263] : memref<24x34xf32, #tpu.memory_space<vmem>>, vector<24x34xf32>
    %cst_264 = arith.constant dense<0.000000e+00> : vector<8x34xf32>
    %280 = tpu.matmul %278, %279, %cst_264 {dimension_numbers = #tpu.dot_dimension_numbers<[1], [0], [0], [1], [0, 0, 1, 1], [], []>} : vector<8x24xf32>, vector<24x34xf32>, vector<8x34xf32> -> vector<8x34xf32>
    %c0_265 = arith.constant 0 : index
    %c986 = arith.constant 986 : index
    %281 = vector.load %arg16[%c0_265, %c986] : memref<8x1190xf32, #tpu.memory_space<vmem>>, vector<8x34xf32>
    tpu.vector_store %arg16[%c0_265, %c986], %280 {strides = array<i32>} : memref<8x1190xf32, #tpu.memory_space<vmem>>, vector<8x34xf32>,
    %282 = vector.extract_strided_slice %221 {offsets = [0, 270], sizes = [8, 24], strides = [1, 1]} : vector<8x294xf32> to vector<8x24xf32>
    %c0_266 = arith.constant 0 : index
    %c0_267 = arith.constant 0 : index
    %283 = vector.load %arg12[%c0_266, %c0_267] : memref<24x34xf32, #tpu.memory_space<vmem>>, vector<24x34xf32>
    %cst_268 = arith.constant dense<0.000000e+00> : vector<8x34xf32>
    %284 = tpu.matmul %282, %283, %cst_268 {dimension_numbers = #tpu.dot_dimension_numbers<[1], [0], [0], [1], [0, 0, 1, 1], [], []>} : vector<8x24xf32>, vector<24x34xf32>, vector<8x34xf32> -> vector<8x34xf32>
    %c0_269 = arith.constant 0 : index
    %c1054 = arith.constant 1054 : index
    %285 = vector.load %arg16[%c0_269, %c1054] : memref<8x1190xf32, #tpu.memory_space<vmem>>, vector<8x34xf32>
    tpu.vector_store %arg16[%c0_269, %c1054], %284 {strides = array<i32>} : memref<8x1190xf32, #tpu.memory_space<vmem>>, vector<8x34xf32>,
    %cst_270 = arith.constant 0.000000e+00 : f32
    %286 = vector.broadcast %cst_270 : f32 to vector<8x1088xf32>
    %c0_271 = arith.constant 0 : index
    %c0_272 = arith.constant 0 : index
    %287 = vector.load %arg16[%c0_271, %c0_272] : memref<8x1190xf32, #tpu.memory_space<vmem>>, vector<8x1088xf32>
    %c0_273 = arith.constant 0 : index
    %c1_274 = arith.constant 1 : index
    %288 = vector.load %arg16[%c0_273, %c1_274] : memref<8x1190xf32, #tpu.memory_space<vmem>>, vector<8x1088xf32>
    %c0_275 = arith.constant 0 : index
    %c2_276 = arith.constant 2 : index
    %289 = vector.load %arg16[%c0_275, %c2_276] : memref<8x1190xf32, #tpu.memory_space<vmem>>, vector<8x1088xf32>
    %290 = tpu.concatenate %287, %288, %289 in 0 : vector<8x1088xf32>, vector<8x1088xf32>, vector<8x1088xf32> -> vector<24x1088xf32>
    %c0_277 = arith.constant 0 : index
    %c0_278 = arith.constant 0 : index
    %291 = vector.load %arg13[%c0_277, %c0_278] : memref<8x72xf32, #tpu.memory_space<vmem>>, vector<8x24xf32>
    %cst_279 = arith.constant dense<0.000000e+00> : vector<8x1088xf32>
    %292 = tpu.matmul %291, %290, %cst_279 {dimension_numbers = #tpu.dot_dimension_numbers<[1], [0], [0], [1], [0, 0, 1, 1], [], []>} : vector<8x24xf32>, vector<24x1088xf32>, vector<8x1088xf32> -> vector<8x1088xf32>
    %293 = arith.addf %286, %292 : vector<8x1088xf32>
    %c0_280 = arith.constant 0 : index
    %c34_281 = arith.constant 34 : index
    %294 = vector.load %arg16[%c0_280, %c34_281] : memref<8x1190xf32, #tpu.memory_space<vmem>>, vector<8x1088xf32>
    %c0_282 = arith.constant 0 : index
    %c35 = arith.constant 35 : index
    %295 = vector.load %arg16[%c0_282, %c35] : memref<8x1190xf32, #tpu.memory_space<vmem>>, vector<8x1088xf32>
    %c0_283 = arith.constant 0 : index
    %c36_284 = arith.constant 36 : index
    %296 = vector.load %arg16[%c0_283, %c36_284] : memref<8x1190xf32, #tpu.memory_space<vmem>>, vector<8x1088xf32>
    %297 = tpu.concatenate %294, %295, %296 in 0 : vector<8x1088xf32>, vector<8x1088xf32>, vector<8x1088xf32> -> vector<24x1088xf32>
    %c0_285 = arith.constant 0 : index
    %c24_286 = arith.constant 24 : index
    %298 = vector.load %arg13[%c0_285, %c24_286] : memref<8x72xf32, #tpu.memory_space<vmem>>, vector<8x24xf32>
    %cst_287 = arith.constant dense<0.000000e+00> : vector<8x1088xf32>
    %299 = tpu.matmul %298, %297, %cst_287 {dimension_numbers = #tpu.dot_dimension_numbers<[1], [0], [0], [1], [0, 0, 1, 1], [], []>} : vector<8x24xf32>, vector<24x1088xf32>, vector<8x1088xf32> -> vector<8x1088xf32>
    %300 = arith.addf %293, %299 : vector<8x1088xf32>
    %c0_288 = arith.constant 0 : index
    %c68 = arith.constant 68 : index
    %301 = vector.load %arg16[%c0_288, %c68] : memref<8x1190xf32, #tpu.memory_space<vmem>>, vector<8x1088xf32>
    %c0_289 = arith.constant 0 : index
    %c69 = arith.constant 69 : index
    %302 = vector.load %arg16[%c0_289, %c69] : memref<8x1190xf32, #tpu.memory_space<vmem>>, vector<8x1088xf32>
    %c0_290 = arith.constant 0 : index
    %c70_291 = arith.constant 70 : index
    %303 = vector.load %arg16[%c0_290, %c70_291] : memref<8x1190xf32, #tpu.memory_space<vmem>>, vector<8x1088xf32>
    %304 = tpu.concatenate %301, %302, %303 in 0 : vector<8x1088xf32>, vector<8x1088xf32>, vector<8x1088xf32> -> vector<24x1088xf32>
    %c0_292 = arith.constant 0 : index
    %c48_293 = arith.constant 48 : index
    %305 = vector.load %arg13[%c0_292, %c48_293] : memref<8x72xf32, #tpu.memory_space<vmem>>, vector<8x24xf32>
    %cst_294 = arith.constant dense<0.000000e+00> : vector<8x1088xf32>
    %306 = tpu.matmul %305, %304, %cst_294 {dimension_numbers = #tpu.dot_dimension_numbers<[1], [0], [0], [1], [0, 0, 1, 1], [], []>} : vector<8x24xf32>, vector<24x1088xf32>, vector<8x1088xf32> -> vector<8x1088xf32>
    %307 = arith.addf %300, %306 : vector<8x1088xf32>
    %c0_295 = arith.constant 0 : index
    %c0_296 = arith.constant 0 : index
    %308 = vector.load %arg14[%c0_295, %c0_296] : memref<8x1xf32, #tpu.memory_space<vmem>>, vector<8x1xf32>
    %309 = vector.broadcast %308 : vector<8x1xf32> to vector<8x1088xf32>
    %310 = arith.addf %307, %309 : vector<8x1088xf32>
    %cst_297 = arith.constant 0.000000e+00 : f32
    %311 = vector.broadcast %cst_297 : f32 to vector<8x1088xf32>
    %312 = arith.maximumf %310, %311 : vector<8x1088xf32>
    %c0_298 = arith.constant 0 : index
    %c0_299 = arith.constant 0 : index
    %c0_300 = arith.constant 0 : index
    %313 = vector.load %arg15[%c0_298, %c0_299, %c0_300] : memref<1x8x1088xf32, #tpu.memory_space<vmem>>, vector<1x8x1088xf32>
    %314 = vector.shape_cast %313 : vector<1x8x1088xf32> to vector<8x1088xf32>
    %315 = vector.shape_cast %312 : vector<8x1088xf32> to vector<1x8x1088xf32>
    tpu.vector_store %arg15[%c0_298, %c0_299, %c0_300], %315 {strides = array<i32>} : memref<1x8x1088xf32, #tpu.memory_space<vmem>>, vector<1x8x1088xf32>,
    return
  }
  func.func @transform_0(%arg0: i32) -> (i32, i32, i32) {
    %c0_i32 = arith.constant 0 : i32
    %c0_i32_0 = arith.constant 0 : i32
    %c0_i32_1 = arith.constant 0 : i32
    return %arg0, %c0_i32, %c0_i32_0 : i32, i32, i32
  }
  func.func @transform_1(%arg0: i32) -> (i32, i32) {
    %c0_i32 = arith.constant 0 : i32
    %c0_i32_0 = arith.constant 0 : i32
    %c0_i32_1 = arith.constant 0 : i32
    return %c0_i32, %c0_i32_0 : i32, i32
  }
  func.func @transform_2(%arg0: i32) -> (i32, i32) {
    %c0_i32 = arith.constant 0 : i32
    %c0_i32_0 = arith.constant 0 : i32
    %c0_i32_1 = arith.constant 0 : i32
    return %c0_i32, %c0_i32_0 : i32, i32
  }
  func.func @transform_3(%arg0: i32) -> (i32, i32) {
    %c0_i32 = arith.constant 0 : i32
    %c0_i32_0 = arith.constant 0 : i32
    %c0_i32_1 = arith.constant 0 : i32
    return %c0_i32, %c0_i32_0 : i32, i32
  }
  func.func @transform_4(%arg0: i32) -> (i32, i32) {
    %c0_i32 = arith.constant 0 : i32
    %c0_i32_0 = arith.constant 0 : i32
    %c0_i32_1 = arith.constant 0 : i32
    return %c0_i32, %c0_i32_0 : i32, i32
  }
  func.func @transform_5(%arg0: i32) -> (i32, i32) {
    %c0_i32 = arith.constant 0 : i32
    %c0_i32_0 = arith.constant 0 : i32
    %c0_i32_1 = arith.constant 0 : i32
    return %c0_i32, %c0_i32_0 : i32, i32
  }
  func.func @transform_6(%arg0: i32) -> (i32, i32) {
    %c0_i32 = arith.constant 0 : i32
    %c0_i32_0 = arith.constant 0 : i32
    %c0_i32_1 = arith.constant 0 : i32
    return %c0_i32, %c0_i32_0 : i32, i32
  }
  func.func @transform_7(%arg0: i32) -> (i32, i32) {
    %c0_i32 = arith.constant 0 : i32
    %c0_i32_0 = arith.constant 0 : i32
    %c0_i32_1 = arith.constant 0 : i32
    return %c0_i32, %c0_i32_0 : i32, i32
  }
  func.func @transform_8(%arg0: i32) -> (i32, i32) {
    %c0_i32 = arith.constant 0 : i32
    %c0_i32_0 = arith.constant 0 : i32
    %c0_i32_1 = arith.constant 0 : i32
    return %c0_i32, %c0_i32_0 : i32, i32
  }
  func.func @transform_9(%arg0: i32) -> (i32, i32) {
    %c0_i32 = arith.constant 0 : i32
    %c0_i32_0 = arith.constant 0 : i32
    %c0_i32_1 = arith.constant 0 : i32
    return %c0_i32, %c0_i32_0 : i32, i32
  }
  func.func @transform_10(%arg0: i32) -> (i32, i32) {
    %c0_i32 = arith.constant 0 : i32
    %c0_i32_0 = arith.constant 0 : i32
    %c0_i32_1 = arith.constant 0 : i32
    return %c0_i32, %c0_i32_0 : i32, i32
  }
  func.func @transform_11(%arg0: i32) -> (i32, i32) {
    %c0_i32 = arith.constant 0 : i32
    %c0_i32_0 = arith.constant 0 : i32
    %c0_i32_1 = arith.constant 0 : i32
    return %c0_i32, %c0_i32_0 : i32, i32
  }
  func.func @transform_12(%arg0: i32) -> (i32, i32) {
    %c0_i32 = arith.constant 0 : i32
    %c0_i32_0 = arith.constant 0 : i32
    %c0_i32_1 = arith.constant 0 : i32
    return %c0_i32, %c0_i32_0 : i32, i32
  }
  func.func @transform_13(%arg0: i32) -> (i32, i32) {
    %c0_i32 = arith.constant 0 : i32
    %c0_i32_0 = arith.constant 0 : i32
    %c0_i32_1 = arith.constant 0 : i32
    return %c0_i32, %c0_i32_0 : i32, i32
  }
  func.func @transform_14(%arg0: i32) -> (i32, i32, i32) {
    %c0_i32 = arith.constant 0 : i32
    %c0_i32_0 = arith.constant 0 : i32
    %c0_i32_1 = arith.constant 0 : i32
    return %arg0, %c0_i32, %c0_i32_0 : i32, i32, i32
  }
}

</mosaic_0001>

<llo_original>
// kernel: tpu_custom_call.1
$region0: #{tpu_custom_call.1}
  #allocation0 [shape = 'u32[]', space=smem, size = 0x4, offset = 0x4, fixed_abs, tag = 'smem constant byte address 0x4 - core index']
  #allocation1 [shape = 'u32[72,128]{1,0:T(1,128)}', space=vmem, size = 0x9000, scoped, tag = 'internal scratch']
  #allocation2 [shape = 'f32[8,1190]{1,0:T(8,128)}', space=vmem, size = 0xa000, scoped, tag = 'scratch operand']
  %s0 = inlined_call_operand.vmem [shape: f32[2,8,16], index: 0, kind: input, shape index: {}]
  %s1 = inlined_call_operand.vmem [shape: f32[8,10], index: 1, kind: input, shape index: {}]
  %s2 = inlined_call_operand.hbm [shape: f32[8,72], index: 2, kind: input, shape index: {}]
  %s3 = inlined_call_operand.vmem [shape: f32[8,1], index: 3, kind: input, shape index: {}]
  %s4 = inlined_call_operand.hbm [shape: f32[8,72], index: 4, kind: input, shape index: {}]
  %s5 = inlined_call_operand.vmem [shape: f32[8,1], index: 5, kind: input, shape index: {}]
  %s6 = inlined_call_operand.vmem [shape: f32[16,18], index: 6, kind: input, shape index: {}]
  %s7 = inlined_call_operand.hbm [shape: f32[8,72], index: 7, kind: input, shape index: {}]
  %s8 = inlined_call_operand.vmem [shape: f32[8,1], index: 8, kind: input, shape index: {}]
  %s9 = inlined_call_operand.hbm [shape: f32[8,72], index: 9, kind: input, shape index: {}]
  %s10 = inlined_call_operand.vmem [shape: f32[8,1], index: 10, kind: input, shape index: {}]
  %s11 = inlined_call_operand.hbm [shape: f32[24,34], index: 11, kind: input, shape index: {}]
  %s12 = inlined_call_operand.vmem [shape: f32[8,72], index: 12, kind: input, shape index: {}]
  %s13 = inlined_call_operand.vmem [shape: f32[8,1], index: 13, kind: input, shape index: {}]
  %s14 = inlined_call_operand.hbm [shape: f32[2,8,1088], index: 14, kind: output, shape index: {}]
  %s15 = sld [smem:[#allocation0]]
  $region109: #{tpu_custom_call.1} parent=0
    _
  %s17 = ssub.s32 1, %s15
  %s18 = scalar_select 0, %s17, %s15
  $region1: #{tpu_custom_call.1} parent=0
    #allocation3 [shape = 'u8[4096]{0}', space=vmem, size = 0x1000, scoped, tag = 'input window, operand 2, single buffered']
    #allocation4 [shape = 's32[2]{0}', space=sflag, size = 0x8, scoped, tag = 'scoped memory for tpu_custom_call.1']
    #allocation5 [shape = 's32[2]{0}', space=sflag, size = 0x8, scoped, tag = 'scoped memory for tpu_custom_call.1']
    #allocation6 [shape = 'u8[4096]{0}', space=vmem, size = 0x1000, scoped, tag = 'input window, operand 4, single buffered']
    #allocation7 [shape = 's32[1]{0}', space=sflag, size = 0x4, scoped, tag = 'scoped memory for tpu_custom_call.1']
    #allocation8 [shape = 'u8[4096]{0}', space=vmem, size = 0x1000, scoped, tag = 'input window, operand 7, single buffered']
    #allocation9 [shape = 'u8[4096]{0}', space=vmem, size = 0x1000, scoped, tag = 'input window, operand 9, single buffered']
    #allocation10 [shape = 's32[1]{0}', space=sflag, size = 0x4, scoped, tag = 'scoped memory for tpu_custom_call.1']
    #allocation11 [shape = 'u8[12288]{0}', space=vmem, size = 0x3000, scoped, tag = 'input window, operand 11, single buffered']
    #allocation12 [shape = 'u8[73728]{0}', space=vmem, size = 0x12000, scoped, tag = 'output window, operand 0']
    %19 = vsyncpa [#allocation4], 0
    %20 = vsyncpa [#allocation7], 0
    %21 = vsyncpa [#allocation10], 0
    %22 = vsyncpa [#allocation5], 0
    %s23 = scalar_lea.sflag [#allocation5], 1
    %24 = vsyncpa %s23, 0
    loop: start=0, step=1, limit=4
    $region2: #{tpu_custom_call.1} parent=1 // loop_pre_header
      _
    $region3: #{tpu_custom_call.1} parent=1 // loop_header
      %s26 = sphi 0, %s30
      %p27 = scmp.ge.s32.totalorder %s26, 4
      %s36 = sphi 0, %s38
      %s39 = sphi 0, %s36
      %s40 = sphi 0, %s39
      %s56 = sphi 0, %s40
      %s60 = sphi 0, %s60
      %s62 = sphi 0, %s60
      %s63 = sphi 0, %s62
      %s77 = sphi 0, %s63
      %s81 = sphi 0, %s81
      %s83 = sphi 0, %s81
      %s84 = sphi 0, %s83
      %s98 = sphi 0, %s84
      %s102 = sphi 0, %s102
      %s104 = sphi 0, %s102
      %s105 = sphi 0, %s104
      %s119 = sphi 0, %s105
      %s123 = sphi 0, %s123
      %s125 = sphi 0, %s123
      %s126 = sphi 0, %s125
      %s140 = sphi 0, %s126
      %s144 = sphi 0, %s144
      %s146 = sphi 0, %s144
      %s147 = sphi 0, %s146
      %s161 = sphi 0, %s147
      %s165 = sphi 0, %s165
      %s167 = sphi 0, %s165
      %s168 = sphi 0, %s167
      %s182 = sphi 0, %s168
      %s186 = sphi 0, %s186
      %s188 = sphi 0, %s186
      %s189 = sphi 0, %s188
      %s203 = sphi 0, %s189
      %s207 = sphi 0, %s207
      %s209 = sphi 0, %s207
      %s210 = sphi 0, %s209
      %s224 = sphi 0, %s210
      %s228 = sphi 0, %s228
      %s230 = sphi 0, %s228
      %s231 = sphi 0, %s230
      %s245 = sphi 0, %s231
      %s249 = sphi 0, %s249
      %s251 = sphi 0, %s249
      %s252 = sphi 0, %s251
      %s266 = sphi 0, %s252
      %s270 = sphi 0, %s270
      %s272 = sphi 0, %s270
      %s273 = sphi 0, %s272
      %s287 = sphi 0, %s273
      %s291 = sphi 0, %s291
      %s293 = sphi 0, %s291
      %s294 = sphi 0, %s293
      %s308 = sphi 0, %s294
      %s312 = sphi 0, %s312
      %s314 = sphi 0, %s312
      %s315 = sphi 0, %s314
      %s329 = sphi 0, %s315
      %s335 = sphi 0, %s337
      %s338 = sphi 0, %s335
      %s339 = sphi 0, %s338
      %s355 = sphi 0, %s339
    $region4: #{tpu_custom_call.1} parent=1 // loop_header_branch
      %29 = sbr.rel (%p27) target = $region8
    $region5: #{tpu_custom_call.1} parent=1 // loop_body
      %s31 = ssub.s32 %s26, 1
      %s32 = ssub.s32 %s26, 2
      %s33 = sadd.s32 %s26, 1
      %s34 = ssub.s32 %s26, %s33
      %p35 = scmp.eq.s32.totalorder %s34, 0
      %s37 = sadd.s32 %s36, 1
      %s38 = scalar_select %p35, %s36, %s37
      %p41 = pneg %p35
      %p42 = scmp.eq.s32.totalorder %s26, 1
      %p43 = por %p41, %p42
      %p44 = scmp.ne.s32.totalorder %s36, %s39
      %p45 = scmp.eq.s32.totalorder %s26, 0
      %p46 = por %p44, %p45
      %p47 = scmp.ne.s32.totalorder %s36, %s39
      %p48 = scmp.eq.s32.totalorder %s31, 1
      %p49 = por %p47, %p48
      %p50 = scmp.ne.s32.totalorder %s39, %s40
      %p51 = scmp.eq.s32.totalorder %s31, 0
      %p52 = por %p50, %p51
      %p53 = scmp.ne.s32.totalorder %s39, %s40
      %p54 = scmp.eq.s32.totalorder %s32, 1
      %p55 = por %p53, %p54
      %p57 = scmp.ne.s32.totalorder %s40, %s56
      %p58 = scmp.eq.s32.totalorder %s32, 0
      %p59 = por %p57, %p58
      %s61 = sadd.s32 %s60, 1
      %p64 = scmp.eq.s32.totalorder %s26, 1
      %p65 = scmp.ne.s32.totalorder %s60, %s62
      %p66 = scmp.eq.s32.totalorder %s26, 0
      %p67 = por %p65, %p66
      %p68 = scmp.ne.s32.totalorder %s60, %s62
      %p69 = scmp.eq.s32.totalorder %s31, 1
      %p70 = por %p68, %p69
      %p71 = scmp.ne.s32.totalorder %s62, %s63
      %p72 = scmp.eq.s32.totalorder %s31, 0
      %p73 = por %p71, %p72
      %p74 = scmp.ne.s32.totalorder %s62, %s63
      %p75 = scmp.eq.s32.totalorder %s32, 1
      %p76 = por %p74, %p75
      %p78 = scmp.ne.s32.totalorder %s63, %s77
      %p79 = scmp.eq.s32.totalorder %s32, 0
      %p80 = por %p78, %p79
      %s82 = sadd.s32 %s81, 1
      %p85 = scmp.eq.s32.totalorder %s26, 1
      %p86 = scmp.ne.s32.totalorder %s81, %s83
      %p87 = scmp.eq.s32.totalorder %s26, 0
      %p88 = por %p86, %p87
      %p89 = scmp.ne.s32.totalorder %s81, %s83
      %p90 = scmp.eq.s32.totalorder %s31, 1
      %p91 = por %p89, %p90
      %p92 = scmp.ne.s32.totalorder %s83, %s84
      %p93 = scmp.eq.s32.totalorder %s31, 0
      %p94 = por %p92, %p93
      %p95 = scmp.ne.s32.totalorder %s83, %s84
      %p96 = scmp.eq.s32.totalorder %s32, 1
      %p97 = por %p95, %p96
      %p99 = scmp.ne.s32.totalorder %s84, %s98
      %p100 = scmp.eq.s32.totalorder %s32, 0
      %p101 = por %p99, %p100
      %s103 = sadd.s32 %s102, 1
      %p106 = scmp.eq.s32.totalorder %s26, 1
      %p107 = scmp.ne.s32.totalorder %s102, %s104
      %p108 = scmp.eq.s32.totalorder %s26, 0
      %p109 = por %p107, %p108
      %p110 = scmp.ne.s32.totalorder %s102, %s104
      %p111 = scmp.eq.s32.totalorder %s31, 1
      %p112 = por %p110, %p111
      %p113 = scmp.ne.s32.totalorder %s104, %s105
      %p114 = scmp.eq.s32.totalorder %s31, 0
      %p115 = por %p113, %p114
      %p116 = scmp.ne.s32.totalorder %s104, %s105
      %p117 = scmp.eq.s32.totalorder %s32, 1
      %p118 = por %p116, %p117
      %p120 = scmp.ne.s32.totalorder %s105, %s119
      %p121 = scmp.eq.s32.totalorder %s32, 0
      %p122 = por %p120, %p121
      %s124 = sadd.s32 %s123, 1
      %p127 = scmp.eq.s32.totalorder %s26, 1
      %p128 = scmp.ne.s32.totalorder %s123, %s125
      %p129 = scmp.eq.s32.totalorder %s26, 0
      %p130 = por %p128, %p129
      %p131 = scmp.ne.s32.totalorder %s123, %s125
      %p132 = scmp.eq.s32.totalorder %s31, 1
      %p133 = por %p131, %p132
      %p134 = scmp.ne.s32.totalorder %s125, %s126
      %p135 = scmp.eq.s32.totalorder %s31, 0
      %p136 = por %p134, %p135
      %p137 = scmp.ne.s32.totalorder %s125, %s126
      %p138 = scmp.eq.s32.totalorder %s32, 1
      %p139 = por %p137, %p138
      %p141 = scmp.ne.s32.totalorder %s126, %s140
      %p142 = scmp.eq.s32.totalorder %s32, 0
      %p143 = por %p141, %p142
      %s145 = sadd.s32 %s144, 1
      %p148 = scmp.eq.s32.totalorder %s26, 1
      %p149 = scmp.ne.s32.totalorder %s144, %s146
      %p150 = scmp.eq.s32.totalorder %s26, 0
      %p151 = por %p149, %p150
      %p152 = scmp.ne.s32.totalorder %s144, %s146
      %p153 = scmp.eq.s32.totalorder %s31, 1
      %p154 = por %p152, %p153
      %p155 = scmp.ne.s32.totalorder %s146, %s147
      %p156 = scmp.eq.s32.totalorder %s31, 0
      %p157 = por %p155, %p156
      %p158 = scmp.ne.s32.totalorder %s146, %s147
      %p159 = scmp.eq.s32.totalorder %s32, 1
      %p160 = por %p158, %p159
      %p162 = scmp.ne.s32.totalorder %s147, %s161
      %p163 = scmp.eq.s32.totalorder %s32, 0
      %p164 = por %p162, %p163
      %s166 = sadd.s32 %s165, 1
      %p169 = scmp.eq.s32.totalorder %s26, 1
      %p170 = scmp.ne.s32.totalorder %s165, %s167
      %p171 = scmp.eq.s32.totalorder %s26, 0
      %p172 = por %p170, %p171
      %p173 = scmp.ne.s32.totalorder %s165, %s167
      %p174 = scmp.eq.s32.totalorder %s31, 1
      %p175 = por %p173, %p174
      %p176 = scmp.ne.s32.totalorder %s167, %s168
      %p177 = scmp.eq.s32.totalorder %s31, 0
      %p178 = por %p176, %p177
      %p179 = scmp.ne.s32.totalorder %s167, %s168
      %p180 = scmp.eq.s32.totalorder %s32, 1
      %p181 = por %p179, %p180
      %p183 = scmp.ne.s32.totalorder %s168, %s182
      %p184 = scmp.eq.s32.totalorder %s32, 0
      %p185 = por %p183, %p184
      %s187 = sadd.s32 %s186, 1
      %p190 = scmp.eq.s32.totalorder %s26, 1
      %p191 = scmp.ne.s32.totalorder %s186, %s188
      %p192 = scmp.eq.s32.totalorder %s26, 0
      %p193 = por %p191, %p192
      %p194 = scmp.ne.s32.totalorder %s186, %s188
      %p195 = scmp.eq.s32.totalorder %s31, 1
      %p196 = por %p194, %p195
      %p197 = scmp.ne.s32.totalorder %s188, %s189
      %p198 = scmp.eq.s32.totalorder %s31, 0
      %p199 = por %p197, %p198
      %p200 = scmp.ne.s32.totalorder %s188, %s189
      %p201 = scmp.eq.s32.totalorder %s32, 1
      %p202 = por %p200, %p201
      %p204 = scmp.ne.s32.totalorder %s189, %s203
      %p205 = scmp.eq.s32.totalorder %s32, 0
      %p206 = por %p204, %p205
      %s208 = sadd.s32 %s207, 1
      %p211 = scmp.eq.s32.totalorder %s26, 1
      %p212 = scmp.ne.s32.totalorder %s207, %s209
      %p213 = scmp.eq.s32.totalorder %s26, 0
      %p214 = por %p212, %p213
      %p215 = scmp.ne.s32.totalorder %s207, %s209
      %p216 = scmp.eq.s32.totalorder %s31, 1
      %p217 = por %p215, %p216
      %p218 = scmp.ne.s32.totalorder %s209, %s210
      %p219 = scmp.eq.s32.totalorder %s31, 0
      %p220 = por %p218, %p219
      %p221 = scmp.ne.s32.totalorder %s209, %s210
      %p222 = scmp.eq.s32.totalorder %s32, 1
      %p223 = por %p221, %p222
      %p225 = scmp.ne.s32.totalorder %s210, %s224
      %p226 = scmp.eq.s32.totalorder %s32, 0
      %p227 = por %p225, %p226
      %s229 = sadd.s32 %s228, 1
      %p232 = scmp.eq.s32.totalorder %s26, 1
      %p233 = scmp.ne.s32.totalorder %s228, %s230
      %p234 = scmp.eq.s32.totalorder %s26, 0
      %p235 = por %p233, %p234
      %p236 = scmp.ne.s32.totalorder %s228, %s230
      %p237 = scmp.eq.s32.totalorder %s31, 1
      %p238 = por %p236, %p237
      %p239 = scmp.ne.s32.totalorder %s230, %s231
      %p240 = scmp.eq.s32.totalorder %s31, 0
      %p241 = por %p239, %p240
      %p242 = scmp.ne.s32.totalorder %s230, %s231
      %p243 = scmp.eq.s32.totalorder %s32, 1
      %p244 = por %p242, %p243
      %p246 = scmp.ne.s32.totalorder %s231, %s245
      %p247 = scmp.eq.s32.totalorder %s32, 0
      %p248 = por %p246, %p247
      %s250 = sadd.s32 %s249, 1
      %p253 = scmp.eq.s32.totalorder %s26, 1
      %p254 = scmp.ne.s32.totalorder %s249, %s251
      %p255 = scmp.eq.s32.totalorder %s26, 0
      %p256 = por %p254, %p255
      %p257 = scmp.ne.s32.totalorder %s249, %s251
      %p258 = scmp.eq.s32.totalorder %s31, 1
      %p259 = por %p257, %p258
      %p260 = scmp.ne.s32.totalorder %s251, %s252
      %p261 = scmp.eq.s32.totalorder %s31, 0
      %p262 = por %p260, %p261
      %p263 = scmp.ne.s32.totalorder %s251, %s252
      %p264 = scmp.eq.s32.totalorder %s32, 1
      %p265 = por %p263, %p264
      %p267 = scmp.ne.s32.totalorder %s252, %s266
      %p268 = scmp.eq.s32.totalorder %s32, 0
      %p269 = por %p267, %p268
      %s271 = sadd.s32 %s270, 1
      %p274 = scmp.eq.s32.totalorder %s26, 1
      %p275 = scmp.ne.s32.totalorder %s270, %s272
      %p276 = scmp.eq.s32.totalorder %s26, 0
      %p277 = por %p275, %p276
      %p278 = scmp.ne.s32.totalorder %s270, %s272
      %p279 = scmp.eq.s32.totalorder %s31, 1
      %p280 = por %p278, %p279
      %p281 = scmp.ne.s32.totalorder %s272, %s273
      %p282 = scmp.eq.s32.totalorder %s31, 0
      %p283 = por %p281, %p282
      %p284 = scmp.ne.s32.totalorder %s272, %s273
      %p285 = scmp.eq.s32.totalorder %s32, 1
      %p286 = por %p284, %p285
      %p288 = scmp.ne.s32.totalorder %s273, %s287
      %p289 = scmp.eq.s32.totalorder %s32, 0
      %p290 = por %p288, %p289
      %s292 = sadd.s32 %s291, 1
      %p295 = scmp.eq.s32.totalorder %s26, 1
      %p296 = scmp.ne.s32.totalorder %s291, %s293
      %p297 = scmp.eq.s32.totalorder %s26, 0
      %p298 = por %p296, %p297
      %p299 = scmp.ne.s32.totalorder %s291, %s293
      %p300 = scmp.eq.s32.totalorder %s31, 1
      %p301 = por %p299, %p300
      %p302 = scmp.ne.s32.totalorder %s293, %s294
      %p303 = scmp.eq.s32.totalorder %s31, 0
      %p304 = por %p302, %p303
      %p305 = scmp.ne.s32.totalorder %s293, %s294
      %p306 = scmp.eq.s32.totalorder %s32, 1
      %p307 = por %p305, %p306
      %p309 = scmp.ne.s32.totalorder %s294, %s308
      %p310 = scmp.eq.s32.totalorder %s32, 0
      %p311 = por %p309, %p310
      %s313 = sadd.s32 %s312, 1
      %p316 = scmp.eq.s32.totalorder %s26, 1
      %p317 = scmp.ne.s32.totalorder %s312, %s314
      %p318 = scmp.eq.s32.totalorder %s26, 0
      %p319 = por %p317, %p318
      %p320 = scmp.ne.s32.totalorder %s312, %s314
      %p321 = scmp.eq.s32.totalorder %s31, 1
      %p322 = por %p320, %p321
      %p323 = scmp.ne.s32.totalorder %s314, %s315
      %p324 = scmp.eq.s32.totalorder %s31, 0
      %p325 = por %p323, %p324
      %p326 = scmp.ne.s32.totalorder %s314, %s315
      %p327 = scmp.eq.s32.totalorder %s32, 1
      %p328 = por %p326, %p327
      %p330 = scmp.ne.s32.totalorder %s315, %s329
      %p331 = scmp.eq.s32.totalorder %s32, 0
      %p332 = por %p330, %p331
      %s333 = ssub.s32 %s26, %s33
      %p334 = scmp.eq.s32.totalorder %s333, 0
      %s336 = sadd.s32 %s335, 1
      %s337 = scalar_select %p334, %s335, %s336
      %p340 = pneg %p334
      %p341 = scmp.eq.s32.totalorder %s26, 1
      %p342 = por %p340, %p341
      %p343 = scmp.ne.s32.totalorder %s335, %s338
      %p344 = scmp.eq.s32.totalorder %s26, 0
      %p345 = por %p343, %p344
      %p346 = scmp.ne.s32.totalorder %s335, %s338
      %p347 = scmp.eq.s32.totalorder %s31, 1
      %p348 = por %p346, %p347
      %p349 = scmp.ne.s32.totalorder %s338, %s339
      %p350 = scmp.eq.s32.totalorder %s31, 0
      %p351 = por %p349, %p350
      %p352 = scmp.ne.s32.totalorder %s338, %s339
      %p353 = scmp.eq.s32.totalorder %s32, 1
      %p354 = por %p352, %p353
      %p356 = scmp.ne.s32.totalorder %s339, %s355
      %p357 = scmp.eq.s32.totalorder %s32, 0
      %p358 = por %p356, %p357
      %p359 = scmp.le.s32.totalorder 1, %s26
      %p360 = scmp.lt.s32.totalorder %s26, 3
      %p361 = pnand %p359, %p360
      %p362 = pneg %p361
      // Predicated region
      $region9: #{tpu_custom_call.1} parent=5 // pred_check
        _
      $region10: #{tpu_custom_call.1} parent=5 // pred_check_branch
        %364 = sbr.rel (%p361) target = $region12
      $region11: #{tpu_custom_call.1} parent=5 // pred_region
        %s365 = ssub.s32 %s26, 1
        // Predicated region
        $region13: #{tpu_custom_call.1} parent=11 // pred_check
          %p366 = pneg %p73
        $region14: #{tpu_custom_call.1} parent=11 // pred_check_branch
          %368 = sbr.rel (%p366) target = $region16
        $region15: #{tpu_custom_call.1} parent=11 // pred_region
          _
        $region16: #{tpu_custom_call.1} parent=11 // pred_fallthru
          _
        // Predicated region
        $region17: #{tpu_custom_call.1} parent=11 // pred_check
          %p369 = pneg %p94
        $region18: #{tpu_custom_call.1} parent=11 // pred_check_branch
          %371 = sbr.rel (%p369) target = $region20
        $region19: #{tpu_custom_call.1} parent=11 // pred_region
          %373 = vsyncadd [#allocation4], 0
          %s375 = sshll.u32 %s2, 4
          %s376 = int_to_ptr.hbm [resolvable:$true] %s375
          %s377 = sshll.u32 [#allocation3], 4
          %s378 = int_to_ptr.vmem [resolvable:$true] %s377
          %380 = dma.hbm_to_vmem [thread:$0]  %s376, 128, %s378, [#allocation4]
        $region20: #{tpu_custom_call.1} parent=11 // pred_fallthru
          _
        // Predicated region
        $region21: #{tpu_custom_call.1} parent=11 // pred_check
          %p381 = pneg %p115
        $region22: #{tpu_custom_call.1} parent=11 // pred_check_branch
          %383 = sbr.rel (%p381) target = $region24
        $region23: #{tpu_custom_call.1} parent=11 // pred_region
          _
        $region24: #{tpu_custom_call.1} parent=11 // pred_fallthru
          _
        // Predicated region
        $region25: #{tpu_custom_call.1} parent=11 // pred_check
          %p384 = pneg %p136
        $region26: #{tpu_custom_call.1} parent=11 // pred_check_branch
          %386 = sbr.rel (%p384) target = $region28
        $region27: #{tpu_custom_call.1} parent=11 // pred_region
          %388 = vsyncadd [#allocation7], 0
          %s390 = sshll.u32 %s4, 4
          %s391 = int_to_ptr.hbm [resolvable:$true] %s390
          %s392 = sshll.u32 [#allocation6], 4
          %s393 = int_to_ptr.vmem [resolvable:$true] %s392
          %395 = dma.hbm_to_vmem [thread:$0]  %s391, 128, %s393, [#allocation7]
        $region28: #{tpu_custom_call.1} parent=11 // pred_fallthru
          _
        // Predicated region
        $region29: #{tpu_custom_call.1} parent=11 // pred_check
          %p396 = pneg %p157
        $region30: #{tpu_custom_call.1} parent=11 // pred_check_branch
          %398 = sbr.rel (%p396) target = $region32
        $region31: #{tpu_custom_call.1} parent=11 // pred_region
          _
        $region32: #{tpu_custom_call.1} parent=11 // pred_fallthru
          _
        // Predicated region
        $region33: #{tpu_custom_call.1} parent=11 // pred_check
          %p399 = pneg %p178
        $region34: #{tpu_custom_call.1} parent=11 // pred_check_branch
          %401 = sbr.rel (%p399) target = $region36
        $region35: #{tpu_custom_call.1} parent=11 // pred_region
          _
        $region36: #{tpu_custom_call.1} parent=11 // pred_fallthru
          _
        // Predicated region
        $region37: #{tpu_custom_call.1} parent=11 // pred_check
          %p402 = pneg %p199
        $region38: #{tpu_custom_call.1} parent=11 // pred_check_branch
          %404 = sbr.rel (%p402) target = $region40
        $region39: #{tpu_custom_call.1} parent=11 // pred_region
          %406 = vsyncadd [#allocation7], 0
          %s408 = sshll.u32 %s7, 4
          %s409 = int_to_ptr.hbm [resolvable:$true] %s408
          %s410 = sshll.u32 [#allocation8], 4
          %s411 = int_to_ptr.vmem [resolvable:$true] %s410
          %413 = dma.hbm_to_vmem [thread:$0]  %s409, 128, %s411, [#allocation7]
        $region40: #{tpu_custom_call.1} parent=11 // pred_fallthru
          _
        // Predicated region
        $region41: #{tpu_custom_call.1} parent=11 // pred_check
          %p414 = pneg %p220
        $region42: #{tpu_custom_call.1} parent=11 // pred_check_branch
          %416 = sbr.rel (%p414) target = $region44
        $region43: #{tpu_custom_call.1} parent=11 // pred_region
          _
        $region44: #{tpu_custom_call.1} parent=11 // pred_fallthru
          _
        // Predicated region
        $region45: #{tpu_custom_call.1} parent=11 // pred_check
          %p417 = pneg %p241
        $region46: #{tpu_custom_call.1} parent=11 // pred_check_branch
          %419 = sbr.rel (%p417) target = $region48
        $region47: #{tpu_custom_call.1} parent=11 // pred_region
          %421 = vsyncadd [#allocation10], 0
          %s423 = sshll.u32 %s9, 4
          %s424 = int_to_ptr.hbm [resolvable:$true] %s423
          %s425 = sshll.u32 [#allocation9], 4
          %s426 = int_to_ptr.vmem [resolvable:$true] %s425
          %428 = dma.hbm_to_vmem [thread:$0]  %s424, 128, %s426, [#allocation10]
        $region48: #{tpu_custom_call.1} parent=11 // pred_fallthru
          _
        // Predicated region
        $region49: #{tpu_custom_call.1} parent=11 // pred_check
          %p429 = pneg %p262
        $region50: #{tpu_custom_call.1} parent=11 // pred_check_branch
          %431 = sbr.rel (%p429) target = $region52
        $region51: #{tpu_custom_call.1} parent=11 // pred_region
          _
        $region52: #{tpu_custom_call.1} parent=11 // pred_fallthru
          _
        // Predicated region
        $region53: #{tpu_custom_call.1} parent=11 // pred_check
          %p432 = pneg %p283
        $region54: #{tpu_custom_call.1} parent=11 // pred_check_branch
          %434 = sbr.rel (%p432) target = $region56
        $region55: #{tpu_custom_call.1} parent=11 // pred_region
          %436 = vsyncadd [#allocation10], 0
          %s437 = sshll.u32 %s11, 4
          %s438 = int_to_ptr.hbm [resolvable:$true] %s437
          %s439 = sshll.u32 [#allocation11], 4
          %s440 = int_to_ptr.vmem [resolvable:$true] %s439
          %445 = dma.hbm_to_vmem [thread:$0]  %s438, 384, %s440, [#allocation10], 128, 128, 8
        $region56: #{tpu_custom_call.1} parent=11 // pred_fallthru
          _
        // Predicated region
        $region57: #{tpu_custom_call.1} parent=11 // pred_check
          %p446 = pneg %p304
        $region58: #{tpu_custom_call.1} parent=11 // pred_check_branch
          %448 = sbr.rel (%p446) target = $region60
        $region59: #{tpu_custom_call.1} parent=11 // pred_region
          _
        $region60: #{tpu_custom_call.1} parent=11 // pred_fallthru
          _
        // Predicated region
        $region61: #{tpu_custom_call.1} parent=11 // pred_check
          %p449 = pneg %p325
        $region62: #{tpu_custom_call.1} parent=11 // pred_check_branch
          %451 = sbr.rel (%p449) target = $region64
        $region63: #{tpu_custom_call.1} parent=11 // pred_region
          _
        $region64: #{tpu_custom_call.1} parent=11 // pred_fallthru
          _
      $region12: #{tpu_custom_call.1} parent=5 // pred_fallthru
        _
      %p452 = scmp.lt.s32.totalorder %s26, 2
      // Predicated region
      $region65: #{tpu_custom_call.1} parent=5 // pred_check
        %p453 = pneg %p452
      $region66: #{tpu_custom_call.1} parent=5 // pred_check_branch
        %455 = sbr.rel (%p453) target = $region68
      $region67: #{tpu_custom_call.1} parent=5 // pred_region
        // Predicated region
        $region69: #{tpu_custom_call.1} parent=67 // pred_check
          %p456 = pneg %p46
        $region70: #{tpu_custom_call.1} parent=67 // pred_check_branch
          %458 = sbr.rel (%p456) target = $region72
        $region71: #{tpu_custom_call.1} parent=67 // pred_region
          %p459 = scmp.lt.s32.totalorder %s26, 1
          %s460 = scalar_select %p459, %s26, 1
          %s461 = smul.addr %s460, 8
          %s462 = scalar_lea.vmem %s0, %s461
        $region72: #{tpu_custom_call.1} parent=67 // pred_fallthru
          _
      $region68: #{tpu_custom_call.1} parent=5 // pred_fallthru
        _
      %p463 = scmp.le.s32.totalorder 1, %s26
      %p464 = scmp.lt.s32.totalorder %s26, 3
      %p465 = pnand %p463, %p464
      %p466 = pneg %p465
      // Predicated region
      $region73: #{tpu_custom_call.1} parent=5 // pred_check
        _
      $region74: #{tpu_custom_call.1} parent=5 // pred_check_branch
        %468 = sbr.rel (%p465) target = $region76
      $region75: #{tpu_custom_call.1} parent=5 // pred_region
        %s469 = ssub.s32 %s26, 1
        // Predicated region
        $region77: #{tpu_custom_call.1} parent=75 // pred_check
          %p470 = pneg %p94
        $region78: #{tpu_custom_call.1} parent=75 // pred_check_branch
          %472 = sbr.rel (%p470) target = $region80
        $region79: #{tpu_custom_call.1} parent=75 // pred_region
          %474 = dma.done [#allocation4], 128
        $region80: #{tpu_custom_call.1} parent=75 // pred_fallthru
          _
        // Predicated region
        $region81: #{tpu_custom_call.1} parent=75 // pred_check
          %p475 = pneg %p136
        $region82: #{tpu_custom_call.1} parent=75 // pred_check_branch
          %477 = sbr.rel (%p475) target = $region84
        $region83: #{tpu_custom_call.1} parent=75 // pred_region
          %479 = dma.done [#allocation7], 128
        $region84: #{tpu_custom_call.1} parent=75 // pred_fallthru
          _
        // Predicated region
        $region85: #{tpu_custom_call.1} parent=75 // pred_check
          %p480 = pneg %p199
        $region86: #{tpu_custom_call.1} parent=75 // pred_check_branch
          %482 = sbr.rel (%p480) target = $region88
        $region87: #{tpu_custom_call.1} parent=75 // pred_region
          %484 = dma.done [#allocation7], 128
        $region88: #{tpu_custom_call.1} parent=75 // pred_fallthru
          _
        // Predicated region
        $region89: #{tpu_custom_call.1} parent=75 // pred_check
          %p485 = pneg %p241
        $region90: #{tpu_custom_call.1} parent=75 // pred_check_branch
          %487 = sbr.rel (%p485) target = $region92
        $region91: #{tpu_custom_call.1} parent=75 // pred_region
          %489 = dma.done [#allocation10], 128
        $region92: #{tpu_custom_call.1} parent=75 // pred_fallthru
          _
        // Predicated region
        $region93: #{tpu_custom_call.1} parent=75 // pred_check
          %p490 = pneg %p283
        $region94: #{tpu_custom_call.1} parent=75 // pred_check_branch
          %492 = sbr.rel (%p490) target = $region96
        $region95: #{tpu_custom_call.1} parent=75 // pred_region
          %494 = dma.done [#allocation10], 384
        $region96: #{tpu_custom_call.1} parent=75 // pred_fallthru
          _
        %p495 = scmp.lt.s32.totalorder %s31, 1
        %s496 = scalar_select %p495, %s31, 1
        %s497 = smul.addr %s496, 8
        %s498 = scalar_lea.vmem %s0, %s497
        %p499 = pneg %p52
        %p500 = pneg %p49
        %p501 = pneg %p73
        %p502 = pneg %p70
        %p503 = pneg %p94
        %p504 = pneg %p91
        %p505 = pneg %p115
        %p506 = pneg %p112
        %p507 = pneg %p136
        %p508 = pneg %p133
        %p509 = pneg %p157
        %p510 = pneg %p154
        %p511 = pneg %p178
        %p512 = pneg %p175
        %p513 = pneg %p199
        %p514 = pneg %p196
        %p515 = pneg %p220
        %p516 = pneg %p217
        %p517 = pneg %p241
        %p518 = pneg %p238
        %p519 = pneg %p262
        %p520 = pneg %p259
        %p521 = pneg %p283
        %p522 = pneg %p280
        %p523 = pneg %p304
        %p524 = pneg %p301
        %p525 = pneg %p325
        %p526 = pneg %p322
        %p527 = pneg %p351
        %p528 = pneg %p348
        %s529 = sand.u32 %s338, 1
        %s530 = scalar_lea.sflag [#allocation5], %s529
        %s531 = sand.u32 %s338, 1
        %s532 = smul.addr %s531, 72
        %s533 = scalar_lea.vmem [#allocation12], %s532
        %p534 = scmp.lt.s32.totalorder %s31, 1
        %s535 = scalar_select %p534, %s31, 1
        %s536 = smul.addr %s535, 8
        %s537 = scalar_lea.vmem %s0, %s536
        %v538 = vld [vmem:[%s537] sm:$0xff]
        %vm539 = vcmask 900096
        %540 = vst.msk [vmem:[#allocation2] sm:$0xff] %vm539, 0.0
        %vm541 = vcmask 130048
        %v542 = vsel %vm541, %v538, 0.0
        %v543 = vld [vmem:[%s1] sm:$0xff]
        %vm544 = vcmask 64512
        %v546 = vsel %vm544, %v542, 0
        %548 = vmatpush.msra.mxu0 0.0
        %549 = vmatpush.msra.mxu0 0.0
        %550 = vmatpush.msra.mxu0 0.0
        %551 = vmatpush.msra.mxu0 0.0
        %552 = vmatpush.msra.mxu0 0.0
        %553 = vmatpush.msra.mxu0 0.0
        %554 = vmatpush.msra.mxu0 0.0
        %555 = vmatpush.msra.mxu0 0.0
        %556 = vmatpush.msra.mxu0 0.0
        %557 = vmatpush.msra.mxu0 0.0
        %558 = vmatpush.msra.mxu0 0.0
        %559 = vmatpush.msra.mxu0 0.0
        %560 = vmatpush.msra.mxu0 0.0
        %561 = vmatpush.msra.mxu0 0.0
        %562 = vmatpush.msra.mxu0 0.0
        %563 = vmatpush.msra.mxu0 %v543
        %564 = vmatmul.f32.gmra.mxu0 %v546
        %v565 = vpop.f32.mrf.mxu0
        %v566 = vadd.f32 0.0, %v565
        %567 = vdwg.mxu0
        %569 = vrot.lane.b32.xlu0 %v566, 10
        %v570 = vpop.permute.xlu0 %569
        %vm572 = vcmask 162896
        %573 = vst.msk [vmem:[#allocation2] sm:$0xff] %vm572, %v570
        %v574 = vld [vmem:[%s1] sm:$0xff]
        %575 = vrot.lane.b32.xlu0 %v542, 124
        %v576 = vpop.permute.xlu0 %575
        %v577 = vsel %vm544, %v576, 0
        %579 = vmatpush.msra.mxu0 0.0
        %580 = vmatpush.msra.mxu0 0.0
        %581 = vmatpush.msra.mxu0 0.0
        %582 = vmatpush.msra.mxu0 0.0
        %583 = vmatpush.msra.mxu0 0.0
        %584 = vmatpush.msra.mxu0 0.0
        %585 = vmatpush.msra.mxu0 0.0
        %586 = vmatpush.msra.mxu0 0.0
        %587 = vmatpush.msra.mxu0 0.0
        %588 = vmatpush.msra.mxu0 0.0
        %589 = vmatpush.msra.mxu0 0.0
        %590 = vmatpush.msra.mxu0 0.0
        %591 = vmatpush.msra.mxu0 0.0
        %592 = vmatpush.msra.mxu0 0.0
        %593 = vmatpush.msra.mxu0 0.0
        %594 = vmatpush.msra.mxu0 %v574
        %595 = vmatmul.f32.gmra.mxu0 %v577
        %v596 = vpop.f32.mrf.mxu0
        %v597 = vadd.f32 0.0, %v596
        %598 = vdwg.mxu0
        %600 = vrot.lane.b32.xlu0 %v597, 30
        %v601 = vpop.permute.xlu0 %600
        %vm603 = vcmask 326896
        %604 = vst.msk [vmem:[#allocation2] sm:$0xff] %vm603, %v601
        %v605 = vld [vmem:[%s1] sm:$0xff]
        %606 = vrot.lane.b32.xlu0 %v542, 120
        %v607 = vpop.permute.xlu0 %606
        %v608 = vsel %vm544, %v607, 0
        %610 = vmatpush.msra.mxu0 0.0
        %611 = vmatpush.msra.mxu0 0.0
        %612 = vmatpush.msra.mxu0 0.0
        %613 = vmatpush.msra.mxu0 0.0
        %614 = vmatpush.msra.mxu0 0.0
        %615 = vmatpush.msra.mxu0 0.0
        %616 = vmatpush.msra.mxu0 0.0
        %617 = vmatpush.msra.mxu0 0.0
        %618 = vmatpush.msra.mxu0 0.0
        %619 = vmatpush.msra.mxu0 0.0
        %620 = vmatpush.msra.mxu0 0.0
        %621 = vmatpush.msra.mxu0 0.0
        %622 = vmatpush.msra.mxu0 0.0
        %623 = vmatpush.msra.mxu0 0.0
        %624 = vmatpush.msra.mxu0 0.0
        %625 = vmatpush.msra.mxu0 %v605
        %626 = vmatmul.f32.gmra.mxu0 %v608
        %v627 = vpop.f32.mrf.mxu0
        %v628 = vadd.f32 0.0, %v627
        %629 = vdwg.mxu0
        %631 = vrot.lane.b32.xlu0 %v628, 50
        %v632 = vpop.permute.xlu0 %631
        %vm634 = vcmask 490896
        %635 = vst.msk [vmem:[#allocation2] sm:$0xff] %vm634, %v632
        %v636 = vld [vmem:[%s1] sm:$0xff]
        %637 = vrot.lane.b32.xlu0 %v542, 116
        %v638 = vpop.permute.xlu0 %637
        %v639 = vsel %vm544, %v638, 0
        %641 = vmatpush.msra.mxu0 0.0
        %642 = vmatpush.msra.mxu0 0.0
        %643 = vmatpush.msra.mxu0 0.0
        %644 = vmatpush.msra.mxu0 0.0
        %645 = vmatpush.msra.mxu0 0.0
        %646 = vmatpush.msra.mxu0 0.0
        %647 = vmatpush.msra.mxu0 0.0
        %648 = vmatpush.msra.mxu0 0.0
        %649 = vmatpush.msra.mxu0 0.0
        %650 = vmatpush.msra.mxu0 0.0
        %651 = vmatpush.msra.mxu0 0.0
        %652 = vmatpush.msra.mxu0 0.0
        %653 = vmatpush.msra.mxu0 0.0
        %654 = vmatpush.msra.mxu0 0.0
        %655 = vmatpush.msra.mxu0 0.0
        %656 = vmatpush.msra.mxu0 %v636
        %657 = vmatmul.f32.gmra.mxu0 %v639
        %v658 = vpop.f32.mrf.mxu0
        %v659 = vadd.f32 0.0, %v658
        %660 = vdwg.mxu0
        %662 = vrot.lane.b32.xlu0 %v659, 70
        %v663 = vpop.permute.xlu0 %662
        %vm665 = vcmask 654896
        %666 = vst.msk [vmem:[#allocation2] sm:$0xff] %vm665, %v663
        %v667 = vld [vmem:[#allocation2] sm:$0xff]
        %669 = vrot.lane.b32.xlu0 %v667, 127
        %v670 = vpop.permute.xlu0 %669
        %672 = vrot.lane.b32.xlu0 %v667, 126
        %v673 = vpop.permute.xlu0 %672
        %v675 = vld [vmem:[#allocation3] sm:$0xff]
        %677 = vrot.lane.b32.xlu0 %v675, 104
        %v678 = vpop.permute.xlu0 %677
        %679 = vrot.lane.b32.xlu0 %v667, 118
        %v680 = vpop.permute.xlu0 %679
        %681 = vrot.lane.b32.xlu0 %v670, 118
        %v682 = vpop.permute.xlu0 %681
        %683 = vrot.lane.b32.xlu0 %v673, 118
        %v684 = vpop.permute.xlu0 %683
        %vm688 = vcmask 195584
        %v689 = vsel %vm688, %v678, 0
        %691 = vmatpush.msra.mxu0 0.0
        %692 = vmatpush.msra.mxu0 0.0
        %693 = vmatpush.msra.mxu0 0.0
        %694 = vmatpush.msra.mxu0 0.0
        %695 = vmatpush.msra.mxu0 0.0
        %696 = vmatpush.msra.mxu0 0.0
        %697 = vmatpush.msra.mxu0 0.0
        %698 = vmatpush.msra.mxu0 0.0
        %699 = vmatpush.msra.mxu0 0.0
        %700 = vmatpush.msra.mxu0 0.0
        %701 = vmatpush.msra.mxu0 0.0
        %702 = vmatpush.msra.mxu0 0.0
        %703 = vmatpush.msra.mxu0 0.0
        %704 = vmatpush.msra.mxu0 %v684
        %705 = vmatpush.msra.mxu0 %v682
        %706 = vmatpush.msra.mxu0 %v680
        %707 = vmatmul.f32.gmra.mxu0 %v689
        %v708 = vpop.f32.mrf.mxu0
        %v709 = vadd.f32 0.0, %v708
        %710 = vdwg.mxu0
        %v711 = vsel %vm688, %v675, 0
        %713 = vmatpush.msra.mxu0 0.0
        %714 = vmatpush.msra.mxu0 0.0
        %715 = vmatpush.msra.mxu0 0.0
        %716 = vmatpush.msra.mxu0 0.0
        %717 = vmatpush.msra.mxu0 0.0
        %718 = vmatpush.msra.mxu0 0.0
        %719 = vmatpush.msra.mxu0 0.0
        %720 = vmatpush.msra.mxu0 0.0
        %721 = vmatpush.msra.mxu0 0.0
        %722 = vmatpush.msra.mxu0 0.0
        %723 = vmatpush.msra.mxu0 0.0
        %724 = vmatpush.msra.mxu0 0.0
        %725 = vmatpush.msra.mxu0 0.0
        %726 = vmatpush.msra.mxu0 %v673
        %727 = vmatpush.msra.mxu0 %v670
        %728 = vmatpush.msra.mxu0 %v667
        %729 = vmatmul.f32.gmra.mxu0 %v711
        %v730 = vpop.f32.mrf.mxu0
        %v731 = vadd.f32 %v709, %v730
        %732 = vdwg.mxu0
        %733 = vrot.lane.b32.xlu0 %v675, 80
        %v734 = vpop.permute.xlu0 %733
        %735 = vrot.lane.b32.xlu0 %v667, 108
        %v736 = vpop.permute.xlu0 %735
        %737 = vrot.lane.b32.xlu0 %v670, 108
        %v738 = vpop.permute.xlu0 %737
        %739 = vrot.lane.b32.xlu0 %v673, 108
        %v740 = vpop.permute.xlu0 %739
        %v744 = vsel %vm688, %v734, 0
        %746 = vmatpush.msra.mxu0 0.0
        %747 = vmatpush.msra.mxu0 0.0
        %748 = vmatpush.msra.mxu0 0.0
        %749 = vmatpush.msra.mxu0 0.0
        %750 = vmatpush.msra.mxu0 0.0
        %751 = vmatpush.msra.mxu0 0.0
        %752 = vmatpush.msra.mxu0 0.0
        %753 = vmatpush.msra.mxu0 0.0
        %754 = vmatpush.msra.mxu0 0.0
        %755 = vmatpush.msra.mxu0 0.0
        %756 = vmatpush.msra.mxu0 0.0
        %757 = vmatpush.msra.mxu0 0.0
        %758 = vmatpush.msra.mxu0 0.0
        %759 = vmatpush.msra.mxu0 %v740
        %760 = vmatpush.msra.mxu0 %v738
        %761 = vmatpush.msra.mxu0 %v736
        %762 = vmatmul.f32.gmra.mxu0 %v744
        %v763 = vpop.f32.mrf.mxu0
        %v764 = vadd.f32 0.0, %v763
        %765 = vdwg.mxu0
        %v766 = vadd.f32 %v731, %v764
        %v767 = vld [vmem:[%s3] sm:$0xff]
        %769 = vset.pattern.permute.xlu0 0
        %770 = vperm.xlu0 %769, %v767
        %v771 = vpop.permute.xlu0 %770
        %v773 = vadd.f32 %v766, %v771
        %v774 = vmax.f32 %v773, 0.0
        %775 = vst.msk [vmem:[#allocation2] sm:$0xff] %vm539, 0.0
        %777 = vrot.lane.b32.xlu0 %v774, 11
        %v778 = vpop.permute.xlu0 %777
        %vm780 = vcmask 154712
        %781 = vst.msk [vmem:[#allocation2] sm:$0xff] %vm780, %v778
        %vm782 = vcmask 236712
        %783 = vst.msk [vmem:[#allocation2] sm:$0xff] %vm782, %v778
        %vm784 = vcmask 318712
        %785 = vst.msk [vmem:[#allocation2] sm:$0xff] %vm784, %v778
        %vm786 = vcmask 400712
        %787 = vst.msk [vmem:[#allocation2] sm:$0xff] %vm786, %v778
        %vm788 = vcmask 482712
        %789 = vst.msk [vmem:[#allocation2] sm:$0xff] %vm788, %v778
        %vm790 = vcmask 564712
        %791 = vst.msk [vmem:[#allocation2] sm:$0xff] %vm790, %v778
        %vm792 = vcmask 646712
        %793 = vst.msk [vmem:[#allocation2] sm:$0xff] %vm792, %v778
        %vm794 = vcmask 728712
        %795 = vst.msk [vmem:[#allocation2] sm:$0xff] %vm794, %v778
        %v796 = vld [vmem:[#allocation2] sm:$0xff]
        %798 = vrot.lane.b32.xlu0 %v796, 127
        %v799 = vpop.permute.xlu0 %798
        %801 = vrot.lane.b32.xlu0 %v796, 126
        %v802 = vpop.permute.xlu0 %801
        %v804 = vld [vmem:[#allocation6] sm:$0xff]
        %806 = vrot.lane.b32.xlu0 %v804, 104
        %v807 = vpop.permute.xlu0 %806
        %808 = vrot.lane.b32.xlu0 %v796, 118
        %v809 = vpop.permute.xlu0 %808
        %810 = vrot.lane.b32.xlu0 %v799, 118
        %v811 = vpop.permute.xlu0 %810
        %812 = vrot.lane.b32.xlu0 %v802, 118
        %v813 = vpop.permute.xlu0 %812
        %v817 = vsel %vm688, %v807, 0
        %819 = vmatpush.msra.mxu0 0.0
        %820 = vmatpush.msra.mxu0 0.0
        %821 = vmatpush.msra.mxu0 0.0
        %822 = vmatpush.msra.mxu0 0.0
        %823 = vmatpush.msra.mxu0 0.0
        %824 = vmatpush.msra.mxu0 0.0
        %825 = vmatpush.msra.mxu0 0.0
        %826 = vmatpush.msra.mxu0 0.0
        %827 = vmatpush.msra.mxu0 0.0
        %828 = vmatpush.msra.mxu0 0.0
        %829 = vmatpush.msra.mxu0 0.0
        %830 = vmatpush.msra.mxu0 0.0
        %831 = vmatpush.msra.mxu0 0.0
        %832 = vmatpush.msra.mxu0 %v813
        %833 = vmatpush.msra.mxu0 %v811
        %834 = vmatpush.msra.mxu0 %v809
        %835 = vmatmul.f32.gmra.mxu0 %v817
        %v836 = vpop.f32.mrf.mxu0
        %v837 = vadd.f32 0.0, %v836
        %838 = vdwg.mxu0
        %v839 = vsel %vm688, %v804, 0
        %841 = vmatpush.msra.mxu0 0.0
        %842 = vmatpush.msra.mxu0 0.0
        %843 = vmatpush.msra.mxu0 0.0
        %844 = vmatpush.msra.mxu0 0.0
        %845 = vmatpush.msra.mxu0 0.0
        %846 = vmatpush.msra.mxu0 0.0
        %847 = vmatpush.msra.mxu0 0.0
        %848 = vmatpush.msra.mxu0 0.0
        %849 = vmatpush.msra.mxu0 0.0
        %850 = vmatpush.msra.mxu0 0.0
        %851 = vmatpush.msra.mxu0 0.0
        %852 = vmatpush.msra.mxu0 0.0
        %853 = vmatpush.msra.mxu0 0.0
        %854 = vmatpush.msra.mxu0 %v802
        %855 = vmatpush.msra.mxu0 %v799
        %856 = vmatpush.msra.mxu0 %v796
        %857 = vmatmul.f32.gmra.mxu0 %v839
        %v858 = vpop.f32.mrf.mxu0
        %v859 = vadd.f32 %v837, %v858
        %860 = vdwg.mxu0
        %861 = vrot.lane.b32.xlu0 %v804, 80
        %v862 = vpop.permute.xlu0 %861
        %863 = vrot.lane.b32.xlu0 %v796, 108
        %v864 = vpop.permute.xlu0 %863
        %865 = vrot.lane.b32.xlu0 %v799, 108
        %v866 = vpop.permute.xlu0 %865
        %867 = vrot.lane.b32.xlu0 %v802, 108
        %v868 = vpop.permute.xlu0 %867
        %v872 = vsel %vm688, %v862, 0
        %874 = vmatpush.msra.mxu0 0.0
        %875 = vmatpush.msra.mxu0 0.0
        %876 = vmatpush.msra.mxu0 0.0
        %877 = vmatpush.msra.mxu0 0.0
        %878 = vmatpush.msra.mxu0 0.0
        %879 = vmatpush.msra.mxu0 0.0
        %880 = vmatpush.msra.mxu0 0.0
        %881 = vmatpush.msra.mxu0 0.0
        %882 = vmatpush.msra.mxu0 0.0
        %883 = vmatpush.msra.mxu0 0.0
        %884 = vmatpush.msra.mxu0 0.0
        %885 = vmatpush.msra.mxu0 0.0
        %886 = vmatpush.msra.mxu0 0.0
        %887 = vmatpush.msra.mxu0 %v868
        %888 = vmatpush.msra.mxu0 %v866
        %889 = vmatpush.msra.mxu0 %v864
        %890 = vmatmul.f32.gmra.mxu0 %v872
        %v891 = vpop.f32.mrf.mxu0
        %v892 = vadd.f32 0.0, %v891
        %893 = vdwg.mxu0
        %v894 = vadd.f32 %v859, %v892
        %v895 = vld [vmem:[%s5] sm:$0xff]
        %897 = vset.pattern.permute.xlu0 0
        %898 = vperm.xlu0 %897, %v895
        %v899 = vpop.permute.xlu0 %898
        %v901 = vadd.f32 %v894, %v899
        %v902 = vmax.f32 %v901, 0.0
        %903 = vst [vmem:[#allocation2] sm:$0xff] 0.0
        %904 = vst [vmem:[#allocation2 + $0x8] sm:$0xff] 0.0
        %vm905 = vcmask 703488
        %906 = vst.msk [vmem:[#allocation2 + $0x10] sm:$0xff] %vm905, 0.0
        %vm907 = vcmask 654336
        %v908 = vsel %vm907, %v902, 0.0
        %v909 = vld [vmem:[%s6] sm:$0xff]
        %v910 = vld [vmem:[%s6 + $0x8] sm:$0xff]
        %v912 = vsel %vm541, %v908, 0
        %914 = vmatpush.msra.mxu0 0.0
        %915 = vmatpush.msra.mxu0 0.0
        %916 = vmatpush.msra.mxu0 0.0
        %917 = vmatpush.msra.mxu0 0.0
        %918 = vmatpush.msra.mxu0 0.0
        %919 = vmatpush.msra.mxu0 0.0
        %920 = vmatpush.msra.mxu0 0.0
        %921 = vmatpush.msra.mxu0 0.0
        %922 = vmatpush.msra.mxu0 0.0
        %923 = vmatpush.msra.mxu0 0.0
        %924 = vmatpush.msra.mxu0 0.0
        %925 = vmatpush.msra.mxu0 0.0
        %926 = vmatpush.msra.mxu0 0.0
        %927 = vmatpush.msra.mxu0 0.0
        %928 = vmatpush.msra.mxu0 %v910
        %929 = vmatpush.msra.mxu0 %v909
        %930 = vmatmul.f32.gmra.mxu0 %v912
        %v931 = vpop.f32.mrf.mxu0
        %v932 = vadd.f32 0.0, %v931
        %933 = vdwg.mxu0
        %935 = vrot.lane.b32.xlu0 %v932, 18
        %v936 = vpop.permute.xlu0 %935
        %vm938 = vcmask 294032
        %939 = vst.msk [vmem:[#allocation2] sm:$0xff] %vm938, %v936
        %v940 = vld [vmem:[%s6] sm:$0xff]
        %v941 = vld [vmem:[%s6 + $0x8] sm:$0xff]
        %942 = vrot.lane.b32.xlu0 %v908, 118
        %v943 = vpop.permute.xlu0 %942
        %v944 = vsel %vm541, %v943, 0
        %946 = vmatpush.msra.mxu0 0.0
        %947 = vmatpush.msra.mxu0 0.0
        %948 = vmatpush.msra.mxu0 0.0
        %949 = vmatpush.msra.mxu0 0.0
        %950 = vmatpush.msra.mxu0 0.0
        %951 = vmatpush.msra.mxu0 0.0
        %952 = vmatpush.msra.mxu0 0.0
        %953 = vmatpush.msra.mxu0 0.0
        %954 = vmatpush.msra.mxu0 0.0
        %955 = vmatpush.msra.mxu0 0.0
        %956 = vmatpush.msra.mxu0 0.0
        %957 = vmatpush.msra.mxu0 0.0
        %958 = vmatpush.msra.mxu0 0.0
        %959 = vmatpush.msra.mxu0 0.0
        %960 = vmatpush.msra.mxu0 %v941
        %961 = vmatpush.msra.mxu0 %v940
        %962 = vmatmul.f32.gmra.mxu0 %v944
        %v963 = vpop.f32.mrf.mxu0
        %v964 = vadd.f32 0.0, %v963
        %965 = vdwg.mxu0
        %967 = vrot.lane.b32.xlu0 %v964, 54
        %v968 = vpop.permute.xlu0 %967
        %vm970 = vcmask 589232
        %971 = vst.msk [vmem:[#allocation2] sm:$0xff] %vm970, %v968
        %v972 = vld [vmem:[%s6] sm:$0xff]
        %v973 = vld [vmem:[%s6 + $0x8] sm:$0xff]
        %974 = vrot.lane.b32.xlu0 %v908, 108
        %v975 = vpop.permute.xlu0 %974
        %v976 = vsel %vm541, %v975, 0
        %978 = vmatpush.msra.mxu0 0.0
        %979 = vmatpush.msra.mxu0 0.0
        %980 = vmatpush.msra.mxu0 0.0
        %981 = vmatpush.msra.mxu0 0.0
        %982 = vmatpush.msra.mxu0 0.0
        %983 = vmatpush.msra.mxu0 0.0
        %984 = vmatpush.msra.mxu0 0.0
        %985 = vmatpush.msra.mxu0 0.0
        %986 = vmatpush.msra.mxu0 0.0
        %987 = vmatpush.msra.mxu0 0.0
        %988 = vmatpush.msra.mxu0 0.0
        %989 = vmatpush.msra.mxu0 0.0
        %990 = vmatpush.msra.mxu0 0.0
        %991 = vmatpush.msra.mxu0 0.0
        %992 = vmatpush.msra.mxu0 %v973
        %993 = vmatpush.msra.mxu0 %v972
        %994 = vmatmul.f32.gmra.mxu0 %v976
        %v995 = vpop.f32.mrf.mxu0
        %v996 = vadd.f32 0.0, %v995
        %997 = vdwg.mxu0
        %999 = vrot.lane.b32.xlu0 %v996, 90
        %v1000 = vpop.permute.xlu0 %999
        %vm1002 = vcmask 884432
        %1003 = vst.msk [vmem:[#allocation2] sm:$0xff] %vm1002, %v1000
        %v1004 = vld [vmem:[%s6] sm:$0xff]
        %v1005 = vld [vmem:[%s6 + $0x8] sm:$0xff]
        %1006 = vrot.lane.b32.xlu0 %v908, 98
        %v1007 = vpop.permute.xlu0 %1006
        %v1008 = vsel %vm541, %v1007, 0
        %1010 = vmatpush.msra.mxu0 0.0
        %1011 = vmatpush.msra.mxu0 0.0
        %1012 = vmatpush.msra.mxu0 0.0
        %1013 = vmatpush.msra.mxu0 0.0
        %1014 = vmatpush.msra.mxu0 0.0
        %1015 = vmatpush.msra.mxu0 0.0
        %1016 = vmatpush.msra.mxu0 0.0
        %1017 = vmatpush.msra.mxu0 0.0
        %1018 = vmatpush.msra.mxu0 0.0
        %1019 = vmatpush.msra.mxu0 0.0
        %1020 = vmatpush.msra.mxu0 0.0
        %1021 = vmatpush.msra.mxu0 0.0
        %1022 = vmatpush.msra.mxu0 0.0
        %1023 = vmatpush.msra.mxu0 0.0
        %1024 = vmatpush.msra.mxu0 %v1005
        %1025 = vmatpush.msra.mxu0 %v1004
        %1026 = vmatmul.f32.gmra.mxu0 %v1008
        %v1027 = vpop.f32.mrf.mxu0
        %v1028 = vadd.f32 0.0, %v1027
        %1029 = vdwg.mxu0
        %1031 = vrot.lane.b32.xlu0 %v1028, 126
        %v1032 = vpop.permute.xlu0 %1031
        %vm1034 = vcmask 1048560
        %1035 = vst.msk [vmem:[#allocation2] sm:$0xff] %vm1034, %v1032
        %1036 = vst.msk [vmem:[#allocation2 + $0x8] sm:$0xff] %vm541, %v1032
        %v1037 = vld [vmem:[%s6] sm:$0xff]
        %v1038 = vld [vmem:[%s6 + $0x8] sm:$0xff]
        %1039 = vrot.lane.b32.xlu0 %v908, 88
        %v1040 = vpop.permute.xlu0 %1039
        %v1041 = vsel %vm541, %v1040, 0
        %1043 = vmatpush.msra.mxu0 0.0
        %1044 = vmatpush.msra.mxu0 0.0
        %1045 = vmatpush.msra.mxu0 0.0
        %1046 = vmatpush.msra.mxu0 0.0
        %1047 = vmatpush.msra.mxu0 0.0
        %1048 = vmatpush.msra.mxu0 0.0
        %1049 = vmatpush.msra.mxu0 0.0
        %1050 = vmatpush.msra.mxu0 0.0
        %1051 = vmatpush.msra.mxu0 0.0
        %1052 = vmatpush.msra.mxu0 0.0
        %1053 = vmatpush.msra.mxu0 0.0
        %1054 = vmatpush.msra.mxu0 0.0
        %1055 = vmatpush.msra.mxu0 0.0
        %1056 = vmatpush.msra.mxu0 0.0
        %1057 = vmatpush.msra.mxu0 %v1038
        %1058 = vmatpush.msra.mxu0 %v1037
        %1059 = vmatmul.f32.gmra.mxu0 %v1041
        %v1060 = vpop.f32.mrf.mxu0
        %v1061 = vadd.f32 0.0, %v1060
        %1062 = vdwg.mxu0
        %1064 = vrot.lane.b32.xlu0 %v1061, 34
        %v1065 = vpop.permute.xlu0 %1064
        %vm1067 = vcmask 425232
        %1068 = vst.msk [vmem:[#allocation2 + $0x8] sm:$0xff] %vm1067, %v1065
        %v1069 = vld [vmem:[%s6] sm:$0xff]
        %v1070 = vld [vmem:[%s6 + $0x8] sm:$0xff]
        %1071 = vrot.lane.b32.xlu0 %v908, 78
        %v1072 = vpop.permute.xlu0 %1071
        %v1073 = vsel %vm541, %v1072, 0
        %1075 = vmatpush.msra.mxu0 0.0
        %1076 = vmatpush.msra.mxu0 0.0
        %1077 = vmatpush.msra.mxu0 0.0
        %1078 = vmatpush.msra.mxu0 0.0
        %1079 = vmatpush.msra.mxu0 0.0
        %1080 = vmatpush.msra.mxu0 0.0
        %1081 = vmatpush.msra.mxu0 0.0
        %1082 = vmatpush.msra.mxu0 0.0
        %1083 = vmatpush.msra.mxu0 0.0
        %1084 = vmatpush.msra.mxu0 0.0
        %1085 = vmatpush.msra.mxu0 0.0
        %1086 = vmatpush.msra.mxu0 0.0
        %1087 = vmatpush.msra.mxu0 0.0
        %1088 = vmatpush.msra.mxu0 0.0
        %1089 = vmatpush.msra.mxu0 %v1070
        %1090 = vmatpush.msra.mxu0 %v1069
        %1091 = vmatmul.f32.gmra.mxu0 %v1073
        %v1092 = vpop.f32.mrf.mxu0
        %v1093 = vadd.f32 0.0, %v1092
        %1094 = vdwg.mxu0
        %1096 = vrot.lane.b32.xlu0 %v1093, 70
        %v1097 = vpop.permute.xlu0 %1096
        %vm1099 = vcmask 720432
        %1100 = vst.msk [vmem:[#allocation2 + $0x8] sm:$0xff] %vm1099, %v1097
        %v1101 = vld [vmem:[%s6] sm:$0xff]
        %v1102 = vld [vmem:[%s6 + $0x8] sm:$0xff]
        %1103 = vrot.lane.b32.xlu0 %v908, 68
        %v1104 = vpop.permute.xlu0 %1103
        %v1105 = vsel %vm541, %v1104, 0
        %1107 = vmatpush.msra.mxu0 0.0
        %1108 = vmatpush.msra.mxu0 0.0
        %1109 = vmatpush.msra.mxu0 0.0
        %1110 = vmatpush.msra.mxu0 0.0
        %1111 = vmatpush.msra.mxu0 0.0
        %1112 = vmatpush.msra.mxu0 0.0
        %1113 = vmatpush.msra.mxu0 0.0
        %1114 = vmatpush.msra.mxu0 0.0
        %1115 = vmatpush.msra.mxu0 0.0
        %1116 = vmatpush.msra.mxu0 0.0
        %1117 = vmatpush.msra.mxu0 0.0
        %1118 = vmatpush.msra.mxu0 0.0
        %1119 = vmatpush.msra.mxu0 0.0
        %1120 = vmatpush.msra.mxu0 0.0
        %1121 = vmatpush.msra.mxu0 %v1102
        %1122 = vmatpush.msra.mxu0 %v1101
        %1123 = vmatmul.f32.gmra.mxu0 %v1105
        %v1124 = vpop.f32.mrf.mxu0
        %v1125 = vadd.f32 0.0, %v1124
        %1126 = vdwg.mxu0
        %1128 = vrot.lane.b32.xlu0 %v1125, 106
        %v1129 = vpop.permute.xlu0 %1128
        %vm1131 = vcmask 1015632
        %1132 = vst.msk [vmem:[#allocation2 + $0x8] sm:$0xff] %vm1131, %v1129
        %v1133 = vld [vmem:[%s6] sm:$0xff]
        %v1134 = vld [vmem:[%s6 + $0x8] sm:$0xff]
        %1135 = vrot.lane.b32.xlu0 %v908, 58
        %v1136 = vpop.permute.xlu0 %1135
        %v1137 = vsel %vm541, %v1136, 0
        %1139 = vmatpush.msra.mxu0 0.0
        %1140 = vmatpush.msra.mxu0 0.0
        %1141 = vmatpush.msra.mxu0 0.0
        %1142 = vmatpush.msra.mxu0 0.0
        %1143 = vmatpush.msra.mxu0 0.0
        %1144 = vmatpush.msra.mxu0 0.0
        %1145 = vmatpush.msra.mxu0 0.0
        %1146 = vmatpush.msra.mxu0 0.0
        %1147 = vmatpush.msra.mxu0 0.0
        %1148 = vmatpush.msra.mxu0 0.0
        %1149 = vmatpush.msra.mxu0 0.0
        %1150 = vmatpush.msra.mxu0 0.0
        %1151 = vmatpush.msra.mxu0 0.0
        %1152 = vmatpush.msra.mxu0 0.0
        %1153 = vmatpush.msra.mxu0 %v1134
        %1154 = vmatpush.msra.mxu0 %v1133
        %1155 = vmatmul.f32.gmra.mxu0 %v1137
        %v1156 = vpop.f32.mrf.mxu0
        %v1157 = vadd.f32 0.0, %v1156
        %1158 = vdwg.mxu0
        %1160 = vrot.lane.b32.xlu0 %v1157, 14
        %v1161 = vpop.permute.xlu0 %1160
        %vm1163 = vcmask 261232
        %1164 = vst.msk [vmem:[#allocation2 + $0x10] sm:$0xff] %vm1163, %v1161
        %v1165 = vld [vmem:[#allocation2] sm:$0xff]
        %v1166 = vld [vmem:[#allocation2 + $0x8] sm:$0xff]
        %v1167 = vld [vmem:[#allocation2 + $0x10] sm:$0xff]
        %1171 = vrot.lane.b32.xlu0 %v1165, 127
        %v1172 = vpop.permute.xlu0 %1171
        %1173 = vrot.lane.b32.xlu0 %v1166, 127
        %v1174 = vpop.permute.xlu0 %1173
        %1175 = vrot.lane.b32.xlu0 %v1167, 127
        %v1176 = vpop.permute.xlu0 %1175
        %vm1177 = vcmask 1039360
        %v1178 = vsel %vm1177, %v1172, %v1174
        %v1179 = vsel %vm1177, %v1174, %v1176
        %1183 = vrot.lane.b32.xlu0 %v1165, 126
        %v1184 = vpop.permute.xlu0 %1183
        %1185 = vrot.lane.b32.xlu0 %v1166, 126
        %v1186 = vpop.permute.xlu0 %1185
        %1187 = vrot.lane.b32.xlu0 %v1167, 126
        %v1188 = vpop.permute.xlu0 %1187
        %vm1189 = vcmask 1031168
        %v1190 = vsel %vm1189, %v1184, %v1186
        %v1191 = vsel %vm1189, %v1186, %v1188
        %v1195 = vld [vmem:[#allocation8] sm:$0xff]
        %1197 = vrot.lane.b32.xlu0 %v1195, 104
        %v1198 = vpop.permute.xlu0 %1197
        %1199 = vrot.lane.b32.xlu0 %v1165, 110
        %v1200 = vpop.permute.xlu0 %1199
        %1201 = vrot.lane.b32.xlu0 %v1166, 110
        %v1202 = vpop.permute.xlu0 %1201
        %1203 = vrot.lane.b32.xlu0 %v1167, 110
        %v1204 = vpop.permute.xlu0 %1203
        %1205 = vrot.lane.b32.xlu0 %v1178, 110
        %v1206 = vpop.permute.xlu0 %1205
        %1207 = vrot.lane.b32.xlu0 %v1179, 110
        %v1208 = vpop.permute.xlu0 %1207
        %1209 = vrot.lane.b32.xlu0 %v1176, 110
        %v1210 = vpop.permute.xlu0 %1209
        %1211 = vrot.lane.b32.xlu0 %v1190, 110
        %v1212 = vpop.permute.xlu0 %1211
        %1213 = vrot.lane.b32.xlu0 %v1191, 110
        %v1214 = vpop.permute.xlu0 %1213
        %1215 = vrot.lane.b32.xlu0 %v1188, 110
        %v1216 = vpop.permute.xlu0 %1215
        %v1217 = vsel %vm539, %v1200, %v1202
        %v1218 = vsel %vm539, %v1202, %v1204
        %v1219 = vsel %vm539, %v1206, %v1208
        %v1220 = vsel %vm539, %v1208, %v1210
        %v1221 = vsel %vm539, %v1212, %v1214
        %v1222 = vsel %vm539, %v1214, %v1216
        %v1232 = vsel %vm688, %v1198, 0
        %1234 = vmatpush.msra.mxu0 0.0
        %1235 = vmatpush.msra.mxu0 0.0
        %1236 = vmatpush.msra.mxu0 0.0
        %1237 = vmatpush.msra.mxu0 0.0
        %1238 = vmatpush.msra.mxu0 0.0
        %1239 = vmatpush.msra.mxu0 0.0
        %1240 = vmatpush.msra.mxu0 0.0
        %1241 = vmatpush.msra.mxu0 0.0
        %1242 = vmatpush.msra.mxu0 0.0
        %1243 = vmatpush.msra.mxu0 0.0
        %1244 = vmatpush.msra.mxu0 0.0
        %1245 = vmatpush.msra.mxu0 0.0
        %1246 = vmatpush.msra.mxu0 0.0
        %1247 = vmatpush.msra.mxu0 %v1221
        %1248 = vmatpush.msra.mxu0 %v1219
        %1249 = vmatpush.msra.mxu0 %v1217
        %1250 = vmatmul.f32.gmra.mxu0 %v1232
        %v1251 = vpop.f32.mrf.mxu0
        %v1252 = vadd.f32 0.0, %v1251
        %1253 = vdwg.mxu0
        %1254 = vmatpush.msra.mxu0 0.0
        %1255 = vmatpush.msra.mxu0 0.0
        %1256 = vmatpush.msra.mxu0 0.0
        %1257 = vmatpush.msra.mxu0 0.0
        %1258 = vmatpush.msra.mxu0 0.0
        %1259 = vmatpush.msra.mxu0 0.0
        %1260 = vmatpush.msra.mxu0 0.0
        %1261 = vmatpush.msra.mxu0 0.0
        %1262 = vmatpush.msra.mxu0 0.0
        %1263 = vmatpush.msra.mxu0 0.0
        %1264 = vmatpush.msra.mxu0 0.0
        %1265 = vmatpush.msra.mxu0 0.0
        %1266 = vmatpush.msra.mxu0 0.0
        %1267 = vmatpush.msra.mxu0 %v1222
        %1268 = vmatpush.msra.mxu0 %v1220
        %1269 = vmatpush.msra.mxu0 %v1218
        %1270 = vmatmul.f32.gmra.mxu0 %v1232
        %v1271 = vpop.f32.mrf.mxu0
        %v1272 = vadd.f32 0.0, %v1271
        %1273 = vdwg.mxu0
        %1274 = vmatpush.msra.mxu0 0.0
        %1275 = vmatpush.msra.mxu0 0.0
        %1276 = vmatpush.msra.mxu0 0.0
        %1277 = vmatpush.msra.mxu0 0.0
        %1278 = vmatpush.msra.mxu0 0.0
        %1279 = vmatpush.msra.mxu0 0.0
        %1280 = vmatpush.msra.mxu0 0.0
        %1281 = vmatpush.msra.mxu0 0.0
        %1282 = vmatpush.msra.mxu0 0.0
        %1283 = vmatpush.msra.mxu0 0.0
        %1284 = vmatpush.msra.mxu0 0.0
        %1285 = vmatpush.msra.mxu0 0.0
        %1286 = vmatpush.msra.mxu0 0.0
        %1287 = vmatpush.msra.mxu0 %v1216
        %1288 = vmatpush.msra.mxu0 %v1210
        %1289 = vmatpush.msra.mxu0 %v1204
        %1290 = vmatmul.f32.gmra.mxu0 %v1232
        %v1291 = vpop.f32.mrf.mxu0
        %v1292 = vadd.f32 0.0, %v1291
        %1293 = vdwg.mxu0
        %v1294 = vsel %vm688, %v1195, 0
        %1296 = vmatpush.msra.mxu0 0.0
        %1297 = vmatpush.msra.mxu0 0.0
        %1298 = vmatpush.msra.mxu0 0.0
        %1299 = vmatpush.msra.mxu0 0.0
        %1300 = vmatpush.msra.mxu0 0.0
        %1301 = vmatpush.msra.mxu0 0.0
        %1302 = vmatpush.msra.mxu0 0.0
        %1303 = vmatpush.msra.mxu0 0.0
        %1304 = vmatpush.msra.mxu0 0.0
        %1305 = vmatpush.msra.mxu0 0.0
        %1306 = vmatpush.msra.mxu0 0.0
        %1307 = vmatpush.msra.mxu0 0.0
        %1308 = vmatpush.msra.mxu0 0.0
        %1309 = vmatpush.msra.mxu0 %v1190
        %1310 = vmatpush.msra.mxu0 %v1178
        %1311 = vmatpush.msra.mxu0 %v1165
        %1312 = vmatmul.f32.gmra.mxu0 %v1294
        %v1313 = vpop.f32.mrf.mxu0
        %v1314 = vadd.f32 %v1252, %v1313
        %1315 = vdwg.mxu0
        %1316 = vmatpush.msra.mxu0 0.0
        %1317 = vmatpush.msra.mxu0 0.0
        %1318 = vmatpush.msra.mxu0 0.0
        %1319 = vmatpush.msra.mxu0 0.0
        %1320 = vmatpush.msra.mxu0 0.0
        %1321 = vmatpush.msra.mxu0 0.0
        %1322 = vmatpush.msra.mxu0 0.0
        %1323 = vmatpush.msra.mxu0 0.0
        %1324 = vmatpush.msra.mxu0 0.0
        %1325 = vmatpush.msra.mxu0 0.0
        %1326 = vmatpush.msra.mxu0 0.0
        %1327 = vmatpush.msra.mxu0 0.0
        %1328 = vmatpush.msra.mxu0 0.0
        %1329 = vmatpush.msra.mxu0 %v1191
        %1330 = vmatpush.msra.mxu0 %v1179
        %1331 = vmatpush.msra.mxu0 %v1166
        %1332 = vmatmul.f32.gmra.mxu0 %v1294
        %v1333 = vpop.f32.mrf.mxu0
        %v1334 = vadd.f32 %v1272, %v1333
        %1335 = vdwg.mxu0
        %1336 = vmatpush.msra.mxu0 0.0
        %1337 = vmatpush.msra.mxu0 0.0
        %1338 = vmatpush.msra.mxu0 0.0
        %1339 = vmatpush.msra.mxu0 0.0
        %1340 = vmatpush.msra.mxu0 0.0
        %1341 = vmatpush.msra.mxu0 0.0
        %1342 = vmatpush.msra.mxu0 0.0
        %1343 = vmatpush.msra.mxu0 0.0
        %1344 = vmatpush.msra.mxu0 0.0
        %1345 = vmatpush.msra.mxu0 0.0
        %1346 = vmatpush.msra.mxu0 0.0
        %1347 = vmatpush.msra.mxu0 0.0
        %1348 = vmatpush.msra.mxu0 0.0
        %1349 = vmatpush.msra.mxu0 %v1188
        %1350 = vmatpush.msra.mxu0 %v1176
        %1351 = vmatpush.msra.mxu0 %v1167
        %1352 = vmatmul.f32.gmra.mxu0 %v1294
        %v1353 = vpop.f32.mrf.mxu0
        %v1354 = vadd.f32 %v1292, %v1353
        %1355 = vdwg.mxu0
        %1356 = vrot.lane.b32.xlu0 %v1195, 80
        %v1357 = vpop.permute.xlu0 %1356
        %1358 = vrot.lane.b32.xlu0 %v1165, 92
        %v1359 = vpop.permute.xlu0 %1358
        %1360 = vrot.lane.b32.xlu0 %v1166, 92
        %v1361 = vpop.permute.xlu0 %1360
        %1362 = vrot.lane.b32.xlu0 %v1167, 92
        %v1363 = vpop.permute.xlu0 %1362
        %1364 = vrot.lane.b32.xlu0 %v1178, 92
        %v1365 = vpop.permute.xlu0 %1364
        %1366 = vrot.lane.b32.xlu0 %v1179, 92
        %v1367 = vpop.permute.xlu0 %1366
        %1368 = vrot.lane.b32.xlu0 %v1176, 92
        %v1369 = vpop.permute.xlu0 %1368
        %1370 = vrot.lane.b32.xlu0 %v1190, 92
        %v1371 = vpop.permute.xlu0 %1370
        %1372 = vrot.lane.b32.xlu0 %v1191, 92
        %v1373 = vpop.permute.xlu0 %1372
        %1374 = vrot.lane.b32.xlu0 %v1188, 92
        %v1375 = vpop.permute.xlu0 %1374
        %vm1376 = vcmask 752640
        %v1377 = vsel %vm1376, %v1359, %v1361
        %v1378 = vsel %vm1376, %v1361, %v1363
        %v1379 = vsel %vm1376, %v1365, %v1367
        %v1380 = vsel %vm1376, %v1367, %v1369
        %v1381 = vsel %vm1376, %v1371, %v1373
        %v1382 = vsel %vm1376, %v1373, %v1375
        %v1392 = vsel %vm688, %v1357, 0
        %1394 = vmatpush.msra.mxu0 0.0
        %1395 = vmatpush.msra.mxu0 0.0
        %1396 = vmatpush.msra.mxu0 0.0
        %1397 = vmatpush.msra.mxu0 0.0
        %1398 = vmatpush.msra.mxu0 0.0
        %1399 = vmatpush.msra.mxu0 0.0
        %1400 = vmatpush.msra.mxu0 0.0
        %1401 = vmatpush.msra.mxu0 0.0
        %1402 = vmatpush.msra.mxu0 0.0
        %1403 = vmatpush.msra.mxu0 0.0
        %1404 = vmatpush.msra.mxu0 0.0
        %1405 = vmatpush.msra.mxu0 0.0
        %1406 = vmatpush.msra.mxu0 0.0
        %1407 = vmatpush.msra.mxu0 %v1381
        %1408 = vmatpush.msra.mxu0 %v1379
        %1409 = vmatpush.msra.mxu0 %v1377
        %1410 = vmatmul.f32.gmra.mxu0 %v1392
        %v1411 = vpop.f32.mrf.mxu0
        %v1412 = vadd.f32 0.0, %v1411
        %1413 = vdwg.mxu0
        %1414 = vmatpush.msra.mxu0 0.0
        %1415 = vmatpush.msra.mxu0 0.0
        %1416 = vmatpush.msra.mxu0 0.0
        %1417 = vmatpush.msra.mxu0 0.0
        %1418 = vmatpush.msra.mxu0 0.0
        %1419 = vmatpush.msra.mxu0 0.0
        %1420 = vmatpush.msra.mxu0 0.0
        %1421 = vmatpush.msra.mxu0 0.0
        %1422 = vmatpush.msra.mxu0 0.0
        %1423 = vmatpush.msra.mxu0 0.0
        %1424 = vmatpush.msra.mxu0 0.0
        %1425 = vmatpush.msra.mxu0 0.0
        %1426 = vmatpush.msra.mxu0 0.0
        %1427 = vmatpush.msra.mxu0 %v1382
        %1428 = vmatpush.msra.mxu0 %v1380
        %1429 = vmatpush.msra.mxu0 %v1378
        %1430 = vmatmul.f32.gmra.mxu0 %v1392
        %v1431 = vpop.f32.mrf.mxu0
        %v1432 = vadd.f32 0.0, %v1431
        %1433 = vdwg.mxu0
        %1434 = vmatpush.msra.mxu0 0.0
        %1435 = vmatpush.msra.mxu0 0.0
        %1436 = vmatpush.msra.mxu0 0.0
        %1437 = vmatpush.msra.mxu0 0.0
        %1438 = vmatpush.msra.mxu0 0.0
        %1439 = vmatpush.msra.mxu0 0.0
        %1440 = vmatpush.msra.mxu0 0.0
        %1441 = vmatpush.msra.mxu0 0.0
        %1442 = vmatpush.msra.mxu0 0.0
        %1443 = vmatpush.msra.mxu0 0.0
        %1444 = vmatpush.msra.mxu0 0.0
        %1445 = vmatpush.msra.mxu0 0.0
        %1446 = vmatpush.msra.mxu0 0.0
        %1447 = vmatpush.msra.mxu0 %v1375
        %1448 = vmatpush.msra.mxu0 %v1369
        %1449 = vmatpush.msra.mxu0 %v1363
        %1450 = vmatmul.f32.gmra.mxu0 %v1392
        %v1451 = vpop.f32.mrf.mxu0
        %v1452 = vadd.f32 0.0, %v1451
        %1453 = vdwg.mxu0
        %v1454 = vadd.f32 %v1314, %v1412
        %v1455 = vadd.f32 %v1334, %v1432
        %v1456 = vadd.f32 %v1354, %v1452
        %v1457 = vld [vmem:[%s8] sm:$0xff]
        %1459 = vset.pattern.permute.xlu0 0
        %1460 = vperm.xlu0 %1459, %v1457
        %v1461 = vpop.permute.xlu0 %1460
        %v1463 = vadd.f32 %v1454, %v1461
        %v1464 = vadd.f32 %v1455, %v1461
        %v1465 = vadd.f32 %v1456, %v1461
        %v1466 = vmax.f32 %v1463, 0.0
        %v1467 = vmax.f32 %v1464, 0.0
        %v1468 = vmax.f32 %v1465, 0.0
        %1469 = vst [vmem:[#allocation2] sm:$0xff] 0.0
        %1470 = vst [vmem:[#allocation2 + $0x8] sm:$0xff] 0.0
        %1471 = vst.msk [vmem:[#allocation2 + $0x10] sm:$0xff] %vm905, 0.0
        %1473 = vrot.lane.b32.xlu0 %v1466, 19
        %v1474 = vpop.permute.xlu0 %1473
        %vm1476 = vcmask 285848
        %1477 = vst.msk [vmem:[#allocation2] sm:$0xff] %vm1476, %v1474
        %vm1478 = vcmask 433448
        %1479 = vst.msk [vmem:[#allocation2] sm:$0xff] %vm1478, %v1474
        %vm1480 = vcmask 581048
        %1481 = vst.msk [vmem:[#allocation2] sm:$0xff] %vm1480, %v1474
        %vm1482 = vcmask 728648
        %1483 = vst.msk [vmem:[#allocation2] sm:$0xff] %vm1482, %v1474
        %vm1484 = vcmask 876248
        %1485 = vst.msk [vmem:[#allocation2] sm:$0xff] %vm1484, %v1474
        %vm1486 = vcmask 1023848
        %1487 = vst.msk [vmem:[#allocation2] sm:$0xff] %vm1486, %v1474
        %vm1488 = vcmask 1048568
        %1489 = vst.msk [vmem:[#allocation2] sm:$0xff] %vm1488, %v1474
        %vm1490 = vcmask 121856
        %1491 = vst.msk [vmem:[#allocation2 + $0x8] sm:$0xff] %vm1490, %v1474
        %1493 = vrot.lane.b32.xlu0 %v1467, 19
        %v1494 = vpop.permute.xlu0 %1493
        %vm1495 = vcmask 154624
        %v1496 = vsel %vm1495, %v1474, %v1494
        %vm1498 = vcmask 269448
        %1499 = vst.msk [vmem:[#allocation2 + $0x8] sm:$0xff] %vm1498, %v1496
        %vm1501 = vcmask 417048
        %1502 = vst.msk [vmem:[#allocation2 + $0x8] sm:$0xff] %vm1501, %v1494
        %vm1503 = vcmask 564648
        %1504 = vst.msk [vmem:[#allocation2 + $0x8] sm:$0xff] %vm1503, %v1494
        %vm1505 = vcmask 712248
        %1506 = vst.msk [vmem:[#allocation2 + $0x8] sm:$0xff] %vm1505, %v1494
        %vm1507 = vcmask 859848
        %1508 = vst.msk [vmem:[#allocation2 + $0x8] sm:$0xff] %vm1507, %v1494
        %vm1509 = vcmask 1007448
        %1510 = vst.msk [vmem:[#allocation2 + $0x8] sm:$0xff] %vm1509, %v1494
        %vm1511 = vcmask 1048552
        %1512 = vst.msk [vmem:[#allocation2 + $0x8] sm:$0xff] %vm1511, %v1494
        %vm1513 = vcmask 105472
        %1514 = vst.msk [vmem:[#allocation2 + $0x10] sm:$0xff] %vm1513, %v1494
        %1516 = vrot.lane.b32.xlu0 %v1468, 19
        %v1517 = vpop.permute.xlu0 %1516
        %v1518 = vsel %vm1495, %v1494, %v1517
        %vm1520 = vcmask 253048
        %1521 = vst.msk [vmem:[#allocation2 + $0x10] sm:$0xff] %vm1520, %v1518
        %vm1523 = vcmask 400648
        %1524 = vst.msk [vmem:[#allocation2 + $0x10] sm:$0xff] %vm1523, %v1517
        %v1525 = vld [vmem:[#allocation2] sm:$0xff]
        %v1526 = vld [vmem:[#allocation2 + $0x8] sm:$0xff]
        %v1527 = vld [vmem:[#allocation2 + $0x10] sm:$0xff]
        %1531 = vrot.lane.b32.xlu0 %v1525, 127
        %v1532 = vpop.permute.xlu0 %1531
        %1533 = vrot.lane.b32.xlu0 %v1526, 127
        %v1534 = vpop.permute.xlu0 %1533
        %1535 = vrot.lane.b32.xlu0 %v1527, 127
        %v1536 = vpop.permute.xlu0 %1535
        %v1537 = vsel %vm1177, %v1532, %v1534
        %v1538 = vsel %vm1177, %v1534, %v1536
        %1542 = vrot.lane.b32.xlu0 %v1525, 126
        %v1543 = vpop.permute.xlu0 %1542
        %1544 = vrot.lane.b32.xlu0 %v1526, 126
        %v1545 = vpop.permute.xlu0 %1544
        %1546 = vrot.lane.b32.xlu0 %v1527, 126
        %v1547 = vpop.permute.xlu0 %1546
        %v1548 = vsel %vm1189, %v1543, %v1545
        %v1549 = vsel %vm1189, %v1545, %v1547
        %v1553 = vld [vmem:[#allocation9] sm:$0xff]
        %1555 = vrot.lane.b32.xlu0 %v1553, 104
        %v1556 = vpop.permute.xlu0 %1555
        %1557 = vrot.lane.b32.xlu0 %v1525, 110
        %v1558 = vpop.permute.xlu0 %1557
        %1559 = vrot.lane.b32.xlu0 %v1526, 110
        %v1560 = vpop.permute.xlu0 %1559
        %1561 = vrot.lane.b32.xlu0 %v1527, 110
        %v1562 = vpop.permute.xlu0 %1561
        %1563 = vrot.lane.b32.xlu0 %v1537, 110
        %v1564 = vpop.permute.xlu0 %1563
        %1565 = vrot.lane.b32.xlu0 %v1538, 110
        %v1566 = vpop.permute.xlu0 %1565
        %1567 = vrot.lane.b32.xlu0 %v1536, 110
        %v1568 = vpop.permute.xlu0 %1567
        %1569 = vrot.lane.b32.xlu0 %v1548, 110
        %v1570 = vpop.permute.xlu0 %1569
        %1571 = vrot.lane.b32.xlu0 %v1549, 110
        %v1572 = vpop.permute.xlu0 %1571
        %1573 = vrot.lane.b32.xlu0 %v1547, 110
        %v1574 = vpop.permute.xlu0 %1573
        %v1575 = vsel %vm539, %v1558, %v1560
        %v1576 = vsel %vm539, %v1560, %v1562
        %v1577 = vsel %vm539, %v1564, %v1566
        %v1578 = vsel %vm539, %v1566, %v1568
        %v1579 = vsel %vm539, %v1570, %v1572
        %v1580 = vsel %vm539, %v1572, %v1574
        %v1590 = vsel %vm688, %v1556, 0
        %1592 = vmatpush.msra.mxu0 0.0
        %1593 = vmatpush.msra.mxu0 0.0
        %1594 = vmatpush.msra.mxu0 0.0
        %1595 = vmatpush.msra.mxu0 0.0
        %1596 = vmatpush.msra.mxu0 0.0
        %1597 = vmatpush.msra.mxu0 0.0
        %1598 = vmatpush.msra.mxu0 0.0
        %1599 = vmatpush.msra.mxu0 0.0
        %1600 = vmatpush.msra.mxu0 0.0
        %1601 = vmatpush.msra.mxu0 0.0
        %1602 = vmatpush.msra.mxu0 0.0
        %1603 = vmatpush.msra.mxu0 0.0
        %1604 = vmatpush.msra.mxu0 0.0
        %1605 = vmatpush.msra.mxu0 %v1579
        %1606 = vmatpush.msra.mxu0 %v1577
        %1607 = vmatpush.msra.mxu0 %v1575
        %1608 = vmatmul.f32.gmra.mxu0 %v1590
        %v1609 = vpop.f32.mrf.mxu0
        %v1610 = vadd.f32 0.0, %v1609
        %1611 = vdwg.mxu0
        %1612 = vmatpush.msra.mxu0 0.0
        %1613 = vmatpush.msra.mxu0 0.0
        %1614 = vmatpush.msra.mxu0 0.0
        %1615 = vmatpush.msra.mxu0 0.0
        %1616 = vmatpush.msra.mxu0 0.0
        %1617 = vmatpush.msra.mxu0 0.0
        %1618 = vmatpush.msra.mxu0 0.0
        %1619 = vmatpush.msra.mxu0 0.0
        %1620 = vmatpush.msra.mxu0 0.0
        %1621 = vmatpush.msra.mxu0 0.0
        %1622 = vmatpush.msra.mxu0 0.0
        %1623 = vmatpush.msra.mxu0 0.0
        %1624 = vmatpush.msra.mxu0 0.0
        %1625 = vmatpush.msra.mxu0 %v1580
        %1626 = vmatpush.msra.mxu0 %v1578
        %1627 = vmatpush.msra.mxu0 %v1576
        %1628 = vmatmul.f32.gmra.mxu0 %v1590
        %v1629 = vpop.f32.mrf.mxu0
        %v1630 = vadd.f32 0.0, %v1629
        %1631 = vdwg.mxu0
        %1632 = vmatpush.msra.mxu0 0.0
        %1633 = vmatpush.msra.mxu0 0.0
        %1634 = vmatpush.msra.mxu0 0.0
        %1635 = vmatpush.msra.mxu0 0.0
        %1636 = vmatpush.msra.mxu0 0.0
        %1637 = vmatpush.msra.mxu0 0.0
        %1638 = vmatpush.msra.mxu0 0.0
        %1639 = vmatpush.msra.mxu0 0.0
        %1640 = vmatpush.msra.mxu0 0.0
        %1641 = vmatpush.msra.mxu0 0.0
        %1642 = vmatpush.msra.mxu0 0.0
        %1643 = vmatpush.msra.mxu0 0.0
        %1644 = vmatpush.msra.mxu0 0.0
        %1645 = vmatpush.msra.mxu0 %v1574
        %1646 = vmatpush.msra.mxu0 %v1568
        %1647 = vmatpush.msra.mxu0 %v1562
        %1648 = vmatmul.f32.gmra.mxu0 %v1590
        %v1649 = vpop.f32.mrf.mxu0
        %v1650 = vadd.f32 0.0, %v1649
        %1651 = vdwg.mxu0
        %v1652 = vsel %vm688, %v1553, 0
        %1654 = vmatpush.msra.mxu0 0.0
        %1655 = vmatpush.msra.mxu0 0.0
        %1656 = vmatpush.msra.mxu0 0.0
        %1657 = vmatpush.msra.mxu0 0.0
        %1658 = vmatpush.msra.mxu0 0.0
        %1659 = vmatpush.msra.mxu0 0.0
        %1660 = vmatpush.msra.mxu0 0.0
        %1661 = vmatpush.msra.mxu0 0.0
        %1662 = vmatpush.msra.mxu0 0.0
        %1663 = vmatpush.msra.mxu0 0.0
        %1664 = vmatpush.msra.mxu0 0.0
        %1665 = vmatpush.msra.mxu0 0.0
        %1666 = vmatpush.msra.mxu0 0.0
        %1667 = vmatpush.msra.mxu0 %v1548
        %1668 = vmatpush.msra.mxu0 %v1537
        %1669 = vmatpush.msra.mxu0 %v1525
        %1670 = vmatmul.f32.gmra.mxu0 %v1652
        %v1671 = vpop.f32.mrf.mxu0
        %v1672 = vadd.f32 %v1610, %v1671
        %1673 = vdwg.mxu0
        %1674 = vmatpush.msra.mxu0 0.0
        %1675 = vmatpush.msra.mxu0 0.0
        %1676 = vmatpush.msra.mxu0 0.0
        %1677 = vmatpush.msra.mxu0 0.0
        %1678 = vmatpush.msra.mxu0 0.0
        %1679 = vmatpush.msra.mxu0 0.0
        %1680 = vmatpush.msra.mxu0 0.0
        %1681 = vmatpush.msra.mxu0 0.0
        %1682 = vmatpush.msra.mxu0 0.0
        %1683 = vmatpush.msra.mxu0 0.0
        %1684 = vmatpush.msra.mxu0 0.0
        %1685 = vmatpush.msra.mxu0 0.0
        %1686 = vmatpush.msra.mxu0 0.0
        %1687 = vmatpush.msra.mxu0 %v1549
        %1688 = vmatpush.msra.mxu0 %v1538
        %1689 = vmatpush.msra.mxu0 %v1526
        %1690 = vmatmul.f32.gmra.mxu0 %v1652
        %v1691 = vpop.f32.mrf.mxu0
        %v1692 = vadd.f32 %v1630, %v1691
        %1693 = vdwg.mxu0
        %1694 = vmatpush.msra.mxu0 0.0
        %1695 = vmatpush.msra.mxu0 0.0
        %1696 = vmatpush.msra.mxu0 0.0
        %1697 = vmatpush.msra.mxu0 0.0
        %1698 = vmatpush.msra.mxu0 0.0
        %1699 = vmatpush.msra.mxu0 0.0
        %1700 = vmatpush.msra.mxu0 0.0
        %1701 = vmatpush.msra.mxu0 0.0
        %1702 = vmatpush.msra.mxu0 0.0
        %1703 = vmatpush.msra.mxu0 0.0
        %1704 = vmatpush.msra.mxu0 0.0
        %1705 = vmatpush.msra.mxu0 0.0
        %1706 = vmatpush.msra.mxu0 0.0
        %1707 = vmatpush.msra.mxu0 %v1547
        %1708 = vmatpush.msra.mxu0 %v1536
        %1709 = vmatpush.msra.mxu0 %v1527
        %1710 = vmatmul.f32.gmra.mxu0 %v1652
        %v1711 = vpop.f32.mrf.mxu0
        %v1712 = vadd.f32 %v1650, %v1711
        %1713 = vdwg.mxu0
        %1714 = vrot.lane.b32.xlu0 %v1553, 80
        %v1715 = vpop.permute.xlu0 %1714
        %1716 = vrot.lane.b32.xlu0 %v1525, 92
        %v1717 = vpop.permute.xlu0 %1716
        %1718 = vrot.lane.b32.xlu0 %v1526, 92
        %v1719 = vpop.permute.xlu0 %1718
        %1720 = vrot.lane.b32.xlu0 %v1527, 92
        %v1721 = vpop.permute.xlu0 %1720
        %1722 = vrot.lane.b32.xlu0 %v1537, 92
        %v1723 = vpop.permute.xlu0 %1722
        %1724 = vrot.lane.b32.xlu0 %v1538, 92
        %v1725 = vpop.permute.xlu0 %1724
        %1726 = vrot.lane.b32.xlu0 %v1536, 92
        %v1727 = vpop.permute.xlu0 %1726
        %1728 = vrot.lane.b32.xlu0 %v1548, 92
        %v1729 = vpop.permute.xlu0 %1728
        %1730 = vrot.lane.b32.xlu0 %v1549, 92
        %v1731 = vpop.permute.xlu0 %1730
        %1732 = vrot.lane.b32.xlu0 %v1547, 92
        %v1733 = vpop.permute.xlu0 %1732
        %v1734 = vsel %vm1376, %v1717, %v1719
        %v1735 = vsel %vm1376, %v1719, %v1721
        %v1736 = vsel %vm1376, %v1723, %v1725
        %v1737 = vsel %vm1376, %v1725, %v1727
        %v1738 = vsel %vm1376, %v1729, %v1731
        %v1739 = vsel %vm1376, %v1731, %v1733
        %v1749 = vsel %vm688, %v1715, 0
        %1751 = vmatpush.msra.mxu0 0.0
        %1752 = vmatpush.msra.mxu0 0.0
        %1753 = vmatpush.msra.mxu0 0.0
        %1754 = vmatpush.msra.mxu0 0.0
        %1755 = vmatpush.msra.mxu0 0.0
        %1756 = vmatpush.msra.mxu0 0.0
        %1757 = vmatpush.msra.mxu0 0.0
        %1758 = vmatpush.msra.mxu0 0.0
        %1759 = vmatpush.msra.mxu0 0.0
        %1760 = vmatpush.msra.mxu0 0.0
        %1761 = vmatpush.msra.mxu0 0.0
        %1762 = vmatpush.msra.mxu0 0.0
        %1763 = vmatpush.msra.mxu0 0.0
        %1764 = vmatpush.msra.mxu0 %v1738
        %1765 = vmatpush.msra.mxu0 %v1736
        %1766 = vmatpush.msra.mxu0 %v1734
        %1767 = vmatmul.f32.gmra.mxu0 %v1749
        %v1768 = vpop.f32.mrf.mxu0
        %v1769 = vadd.f32 0.0, %v1768
        %1770 = vdwg.mxu0
        %1771 = vmatpush.msra.mxu0 0.0
        %1772 = vmatpush.msra.mxu0 0.0
        %1773 = vmatpush.msra.mxu0 0.0
        %1774 = vmatpush.msra.mxu0 0.0
        %1775 = vmatpush.msra.mxu0 0.0
        %1776 = vmatpush.msra.mxu0 0.0
        %1777 = vmatpush.msra.mxu0 0.0
        %1778 = vmatpush.msra.mxu0 0.0
        %1779 = vmatpush.msra.mxu0 0.0
        %1780 = vmatpush.msra.mxu0 0.0
        %1781 = vmatpush.msra.mxu0 0.0
        %1782 = vmatpush.msra.mxu0 0.0
        %1783 = vmatpush.msra.mxu0 0.0
        %1784 = vmatpush.msra.mxu0 %v1739
        %1785 = vmatpush.msra.mxu0 %v1737
        %1786 = vmatpush.msra.mxu0 %v1735
        %1787 = vmatmul.f32.gmra.mxu0 %v1749
        %v1788 = vpop.f32.mrf.mxu0
        %v1789 = vadd.f32 0.0, %v1788
        %1790 = vdwg.mxu0
        %1791 = vmatpush.msra.mxu0 0.0
        %1792 = vmatpush.msra.mxu0 0.0
        %1793 = vmatpush.msra.mxu0 0.0
        %1794 = vmatpush.msra.mxu0 0.0
        %1795 = vmatpush.msra.mxu0 0.0
        %1796 = vmatpush.msra.mxu0 0.0
        %1797 = vmatpush.msra.mxu0 0.0
        %1798 = vmatpush.msra.mxu0 0.0
        %1799 = vmatpush.msra.mxu0 0.0
        %1800 = vmatpush.msra.mxu0 0.0
        %1801 = vmatpush.msra.mxu0 0.0
        %1802 = vmatpush.msra.mxu0 0.0
        %1803 = vmatpush.msra.mxu0 0.0
        %1804 = vmatpush.msra.mxu0 %v1733
        %1805 = vmatpush.msra.mxu0 %v1727
        %1806 = vmatpush.msra.mxu0 %v1721
        %1807 = vmatmul.f32.gmra.mxu0 %v1749
        %v1808 = vpop.f32.mrf.mxu0
        %v1809 = vadd.f32 0.0, %v1808
        %1810 = vdwg.mxu0
        %v1811 = vadd.f32 %v1672, %v1769
        %v1812 = vadd.f32 %v1692, %v1789
        %v1813 = vadd.f32 %v1712, %v1809
        %v1814 = vld [vmem:[%s10] sm:$0xff]
        %1816 = vset.pattern.permute.xlu0 0
        %1817 = vperm.xlu0 %1816, %v1814
        %v1818 = vpop.permute.xlu0 %1817
        %v1820 = vadd.f32 %v1811, %v1818
        %v1821 = vadd.f32 %v1812, %v1818
        %v1822 = vadd.f32 %v1813, %v1818
        %v1823 = vmax.f32 %v1820, 0.0
        %v1824 = vmax.f32 %v1821, 0.0
        %v1825 = vmax.f32 %v1822, 0.0
        %1826 = vst [vmem:[#allocation2] sm:$0xff] 0.0
        %1827 = vst [vmem:[#allocation2 + $0x8] sm:$0xff] 0.0
        %1828 = vst [vmem:[#allocation2 + $0x10] sm:$0xff] 0.0
        %1829 = vst [vmem:[#allocation2 + $0x18] sm:$0xff] 0.0
        %1830 = vst [vmem:[#allocation2 + $0x20] sm:$0xff] 0.0
        %1831 = vst [vmem:[#allocation2 + $0x28] sm:$0xff] 0.0
        %1832 = vst [vmem:[#allocation2 + $0x30] sm:$0xff] 0.0
        %1833 = vst [vmem:[#allocation2 + $0x38] sm:$0xff] 0.0
        %1834 = vst [vmem:[#allocation2 + $0x40] sm:$0xff] 0.0
        %vm1835 = vcmask 310272
        %1836 = vst.msk [vmem:[#allocation2 + $0x48] sm:$0xff] %vm1835, 0.0
        %vm1837 = vcmask 261120
        %v1838 = vsel %vm1837, %v1825, 0.0
        %v1839 = vld [vmem:[#allocation11] sm:$0xff]
        %v1840 = vld [vmem:[#allocation11 + $0x8] sm:$0xff]
        %v1841 = vld [vmem:[#allocation11 + $0x10] sm:$0xff]
        %v1843 = vsel %vm688, %v1823, 0
        %1845 = vmatpush.msra.mxu0 0.0
        %1846 = vmatpush.msra.mxu0 0.0
        %1847 = vmatpush.msra.mxu0 0.0
        %1848 = vmatpush.msra.mxu0 0.0
        %1849 = vmatpush.msra.mxu0 0.0
        %1850 = vmatpush.msra.mxu0 0.0
        %1851 = vmatpush.msra.mxu0 0.0
        %1852 = vmatpush.msra.mxu0 0.0
        %1853 = vmatpush.msra.mxu0 0.0
        %1854 = vmatpush.msra.mxu0 0.0
        %1855 = vmatpush.msra.mxu0 0.0
        %1856 = vmatpush.msra.mxu0 0.0
        %1857 = vmatpush.msra.mxu0 0.0
        %1858 = vmatpush.msra.mxu0 %v1841
        %1859 = vmatpush.msra.mxu0 %v1840
        %1860 = vmatpush.msra.mxu0 %v1839
        %1861 = vmatmul.f32.gmra.mxu0 %v1843
        %v1862 = vpop.f32.mrf.mxu0
        %v1863 = vadd.f32 0.0, %v1862
        %1864 = vdwg.mxu0
        %1866 = vrot.lane.b32.xlu0 %v1863, 34
        %v1867 = vpop.permute.xlu0 %1866
        %vm1869 = vcmask 556304
        %1870 = vst.msk [vmem:[#allocation2] sm:$0xff] %vm1869, %v1867
        %v1871 = vld [vmem:[#allocation11] sm:$0xff]
        %v1872 = vld [vmem:[#allocation11 + $0x8] sm:$0xff]
        %v1873 = vld [vmem:[#allocation11 + $0x10] sm:$0xff]
        %1874 = vrot.lane.b32.xlu0 %v1823, 110
        %v1875 = vpop.permute.xlu0 %1874
        %v1876 = vsel %vm688, %v1875, 0
        %1878 = vmatpush.msra.mxu0 0.0
        %1879 = vmatpush.msra.mxu0 0.0
        %1880 = vmatpush.msra.mxu0 0.0
        %1881 = vmatpush.msra.mxu0 0.0
        %1882 = vmatpush.msra.mxu0 0.0
        %1883 = vmatpush.msra.mxu0 0.0
        %1884 = vmatpush.msra.mxu0 0.0
        %1885 = vmatpush.msra.mxu0 0.0
        %1886 = vmatpush.msra.mxu0 0.0
        %1887 = vmatpush.msra.mxu0 0.0
        %1888 = vmatpush.msra.mxu0 0.0
        %1889 = vmatpush.msra.mxu0 0.0
        %1890 = vmatpush.msra.mxu0 0.0
        %1891 = vmatpush.msra.mxu0 %v1873
        %1892 = vmatpush.msra.mxu0 %v1872
        %1893 = vmatpush.msra.mxu0 %v1871
        %1894 = vmatmul.f32.gmra.mxu0 %v1876
        %v1895 = vpop.f32.mrf.mxu0
        %v1896 = vadd.f32 0.0, %v1895
        %1897 = vdwg.mxu0
        %1899 = vrot.lane.b32.xlu0 %v1896, 102
        %v1900 = vpop.permute.xlu0 %1899
        %vm1902 = vcmask 1048368
        %1903 = vst.msk [vmem:[#allocation2] sm:$0xff] %vm1902, %v1900
        %1904 = vst.msk [vmem:[#allocation2 + $0x8] sm:$0xff] %vm544, %v1900
        %v1905 = vld [vmem:[#allocation11] sm:$0xff]
        %v1906 = vld [vmem:[#allocation11 + $0x8] sm:$0xff]
        %v1907 = vld [vmem:[#allocation11 + $0x10] sm:$0xff]
        %1908 = vrot.lane.b32.xlu0 %v1823, 92
        %v1909 = vpop.permute.xlu0 %1908
        %v1910 = vsel %vm688, %v1909, 0
        %1912 = vmatpush.msra.mxu0 0.0
        %1913 = vmatpush.msra.mxu0 0.0
        %1914 = vmatpush.msra.mxu0 0.0
        %1915 = vmatpush.msra.mxu0 0.0
        %1916 = vmatpush.msra.mxu0 0.0
        %1917 = vmatpush.msra.mxu0 0.0
        %1918 = vmatpush.msra.mxu0 0.0
        %1919 = vmatpush.msra.mxu0 0.0
        %1920 = vmatpush.msra.mxu0 0.0
        %1921 = vmatpush.msra.mxu0 0.0
        %1922 = vmatpush.msra.mxu0 0.0
        %1923 = vmatpush.msra.mxu0 0.0
        %1924 = vmatpush.msra.mxu0 0.0
        %1925 = vmatpush.msra.mxu0 %v1907
        %1926 = vmatpush.msra.mxu0 %v1906
        %1927 = vmatpush.msra.mxu0 %v1905
        %1928 = vmatmul.f32.gmra.mxu0 %v1910
        %v1929 = vpop.f32.mrf.mxu0
        %v1930 = vadd.f32 0.0, %v1929
        %1931 = vdwg.mxu0
        %1933 = vrot.lane.b32.xlu0 %v1930, 42
        %v1934 = vpop.permute.xlu0 %1933
        %vm1936 = vcmask 621904
        %1937 = vst.msk [vmem:[#allocation2 + $0x8] sm:$0xff] %vm1936, %v1934
        %v1938 = vld [vmem:[#allocation11] sm:$0xff]
        %v1939 = vld [vmem:[#allocation11 + $0x8] sm:$0xff]
        %v1940 = vld [vmem:[#allocation11 + $0x10] sm:$0xff]
        %1941 = vrot.lane.b32.xlu0 %v1823, 74
        %v1942 = vpop.permute.xlu0 %1941
        %v1943 = vsel %vm688, %v1942, 0
        %1945 = vmatpush.msra.mxu0 0.0
        %1946 = vmatpush.msra.mxu0 0.0
        %1947 = vmatpush.msra.mxu0 0.0
        %1948 = vmatpush.msra.mxu0 0.0
        %1949 = vmatpush.msra.mxu0 0.0
        %1950 = vmatpush.msra.mxu0 0.0
        %1951 = vmatpush.msra.mxu0 0.0
        %1952 = vmatpush.msra.mxu0 0.0
        %1953 = vmatpush.msra.mxu0 0.0
        %1954 = vmatpush.msra.mxu0 0.0
        %1955 = vmatpush.msra.mxu0 0.0
        %1956 = vmatpush.msra.mxu0 0.0
        %1957 = vmatpush.msra.mxu0 0.0
        %1958 = vmatpush.msra.mxu0 %v1940
        %1959 = vmatpush.msra.mxu0 %v1939
        %1960 = vmatpush.msra.mxu0 %v1938
        %1961 = vmatmul.f32.gmra.mxu0 %v1943
        %v1962 = vpop.f32.mrf.mxu0
        %v1963 = vadd.f32 0.0, %v1962
        %1964 = vdwg.mxu0
        %1966 = vrot.lane.b32.xlu0 %v1963, 110
        %v1967 = vpop.permute.xlu0 %1966
        %vm1969 = vcmask 1048432
        %1970 = vst.msk [vmem:[#allocation2 + $0x8] sm:$0xff] %vm1969, %v1967
        %1971 = vst.msk [vmem:[#allocation2 + $0x10] sm:$0xff] %vm541, %v1967
        %v1972 = vld [vmem:[#allocation11] sm:$0xff]
        %v1973 = vld [vmem:[#allocation11 + $0x8] sm:$0xff]
        %v1974 = vld [vmem:[#allocation11 + $0x10] sm:$0xff]
        %1975 = vrot.lane.b32.xlu0 %v1823, 56
        %v1976 = vpop.permute.xlu0 %1975
        %v1977 = vsel %vm688, %v1976, 0
        %1979 = vmatpush.msra.mxu0 0.0
        %1980 = vmatpush.msra.mxu0 0.0
        %1981 = vmatpush.msra.mxu0 0.0
        %1982 = vmatpush.msra.mxu0 0.0
        %1983 = vmatpush.msra.mxu0 0.0
        %1984 = vmatpush.msra.mxu0 0.0
        %1985 = vmatpush.msra.mxu0 0.0
        %1986 = vmatpush.msra.mxu0 0.0
        %1987 = vmatpush.msra.mxu0 0.0
        %1988 = vmatpush.msra.mxu0 0.0
        %1989 = vmatpush.msra.mxu0 0.0
        %1990 = vmatpush.msra.mxu0 0.0
        %1991 = vmatpush.msra.mxu0 0.0
        %1992 = vmatpush.msra.mxu0 %v1974
        %1993 = vmatpush.msra.mxu0 %v1973
        %1994 = vmatpush.msra.mxu0 %v1972
        %1995 = vmatmul.f32.gmra.mxu0 %v1977
        %v1996 = vpop.f32.mrf.mxu0
        %v1997 = vadd.f32 0.0, %v1996
        %1998 = vdwg.mxu0
        %2000 = vrot.lane.b32.xlu0 %v1997, 50
        %v2001 = vpop.permute.xlu0 %2000
        %vm2003 = vcmask 687504
        %2004 = vst.msk [vmem:[#allocation2 + $0x10] sm:$0xff] %vm2003, %v2001
        %v2005 = vld [vmem:[#allocation11] sm:$0xff]
        %v2006 = vld [vmem:[#allocation11 + $0x8] sm:$0xff]
        %v2007 = vld [vmem:[#allocation11 + $0x10] sm:$0xff]
        %2008 = vrot.lane.b32.xlu0 %v1823, 38
        %v2009 = vpop.permute.xlu0 %2008
        %v2010 = vsel %vm688, %v2009, 0
        %2012 = vmatpush.msra.mxu0 0.0
        %2013 = vmatpush.msra.mxu0 0.0
        %2014 = vmatpush.msra.mxu0 0.0
        %2015 = vmatpush.msra.mxu0 0.0
        %2016 = vmatpush.msra.mxu0 0.0
        %2017 = vmatpush.msra.mxu0 0.0
        %2018 = vmatpush.msra.mxu0 0.0
        %2019 = vmatpush.msra.mxu0 0.0
        %2020 = vmatpush.msra.mxu0 0.0
        %2021 = vmatpush.msra.mxu0 0.0
        %2022 = vmatpush.msra.mxu0 0.0
        %2023 = vmatpush.msra.mxu0 0.0
        %2024 = vmatpush.msra.mxu0 0.0
        %2025 = vmatpush.msra.mxu0 %v2007
        %2026 = vmatpush.msra.mxu0 %v2006
        %2027 = vmatpush.msra.mxu0 %v2005
        %2028 = vmatmul.f32.gmra.mxu0 %v2010
        %v2029 = vpop.f32.mrf.mxu0
        %v2030 = vadd.f32 0.0, %v2029
        %2031 = vdwg.mxu0
        %2033 = vrot.lane.b32.xlu0 %v2030, 118
        %v2034 = vpop.permute.xlu0 %2033
        %vm2036 = vcmask 1048496
        %2037 = vst.msk [vmem:[#allocation2 + $0x10] sm:$0xff] %vm2036, %v2034
        %2038 = vst.msk [vmem:[#allocation2 + $0x18] sm:$0xff] %vm688, %v2034
        %v2039 = vld [vmem:[#allocation11] sm:$0xff]
        %v2040 = vld [vmem:[#allocation11 + $0x8] sm:$0xff]
        %v2041 = vld [vmem:[#allocation11 + $0x10] sm:$0xff]
        %2043 = vrot.lane.b32.xlu0 %v1823, 20
        %v2044 = vpop.permute.xlu0 %2043
        %2045 = vrot.lane.b32.xlu0 %v1824, 20
        %v2046 = vpop.permute.xlu0 %2045
        %vm2047 = vcmask 162816
        %v2048 = vsel %vm2047, %v2044, %v2046
        %v2049 = vsel %vm688, %v2048, 0
        %2051 = vmatpush.msra.mxu0 0.0
        %2052 = vmatpush.msra.mxu0 0.0
        %2053 = vmatpush.msra.mxu0 0.0
        %2054 = vmatpush.msra.mxu0 0.0
        %2055 = vmatpush.msra.mxu0 0.0
        %2056 = vmatpush.msra.mxu0 0.0
        %2057 = vmatpush.msra.mxu0 0.0
        %2058 = vmatpush.msra.mxu0 0.0
        %2059 = vmatpush.msra.mxu0 0.0
        %2060 = vmatpush.msra.mxu0 0.0
        %2061 = vmatpush.msra.mxu0 0.0
        %2062 = vmatpush.msra.mxu0 0.0
        %2063 = vmatpush.msra.mxu0 0.0
        %2064 = vmatpush.msra.mxu0 %v2041
        %2065 = vmatpush.msra.mxu0 %v2040
        %2066 = vmatpush.msra.mxu0 %v2039
        %2067 = vmatmul.f32.gmra.mxu0 %v2049
        %v2068 = vpop.f32.mrf.mxu0
        %v2069 = vadd.f32 0.0, %v2068
        %2070 = vdwg.mxu0
        %2072 = vrot.lane.b32.xlu0 %v2069, 58
        %v2073 = vpop.permute.xlu0 %2072
        %vm2075 = vcmask 753104
        %2076 = vst.msk [vmem:[#allocation2 + $0x18] sm:$0xff] %vm2075, %v2073
        %v2077 = vld [vmem:[#allocation11] sm:$0xff]
        %v2078 = vld [vmem:[#allocation11 + $0x8] sm:$0xff]
        %v2079 = vld [vmem:[#allocation11 + $0x10] sm:$0xff]
        %2080 = vrot.lane.b32.xlu0 %v1823, 2
        %v2081 = vpop.permute.xlu0 %2080
        %2082 = vrot.lane.b32.xlu0 %v1824, 2
        %v2083 = vpop.permute.xlu0 %2082
        %vm2084 = vcmask 15360
        %v2085 = vsel %vm2084, %v2081, %v2083
        %v2086 = vsel %vm688, %v2085, 0
        %2088 = vmatpush.msra.mxu0 0.0
        %2089 = vmatpush.msra.mxu0 0.0
        %2090 = vmatpush.msra.mxu0 0.0
        %2091 = vmatpush.msra.mxu0 0.0
        %2092 = vmatpush.msra.mxu0 0.0
        %2093 = vmatpush.msra.mxu0 0.0
        %2094 = vmatpush.msra.mxu0 0.0
        %2095 = vmatpush.msra.mxu0 0.0
        %2096 = vmatpush.msra.mxu0 0.0
        %2097 = vmatpush.msra.mxu0 0.0
        %2098 = vmatpush.msra.mxu0 0.0
        %2099 = vmatpush.msra.mxu0 0.0
        %2100 = vmatpush.msra.mxu0 0.0
        %2101 = vmatpush.msra.mxu0 %v2079
        %2102 = vmatpush.msra.mxu0 %v2078
        %2103 = vmatpush.msra.mxu0 %v2077
        %2104 = vmatmul.f32.gmra.mxu0 %v2086
        %v2105 = vpop.f32.mrf.mxu0
        %v2106 = vadd.f32 0.0, %v2105
        %2107 = vdwg.mxu0
        %2109 = vrot.lane.b32.xlu0 %v2106, 126
        %v2110 = vpop.permute.xlu0 %2109
        %2112 = vst.msk [vmem:[#allocation2 + $0x18] sm:$0xff] %vm1034, %v2110
        %2113 = vst.msk [vmem:[#allocation2 + $0x20] sm:$0xff] %vm1837, %v2110
        %v2114 = vld [vmem:[#allocation11] sm:$0xff]
        %v2115 = vld [vmem:[#allocation11 + $0x8] sm:$0xff]
        %v2116 = vld [vmem:[#allocation11 + $0x10] sm:$0xff]
        %2117 = vrot.lane.b32.xlu0 %v1824, 112
        %v2118 = vpop.permute.xlu0 %2117
        %v2119 = vsel %vm688, %v2118, 0
        %2121 = vmatpush.msra.mxu0 0.0
        %2122 = vmatpush.msra.mxu0 0.0
        %2123 = vmatpush.msra.mxu0 0.0
        %2124 = vmatpush.msra.mxu0 0.0
        %2125 = vmatpush.msra.mxu0 0.0
        %2126 = vmatpush.msra.mxu0 0.0
        %2127 = vmatpush.msra.mxu0 0.0
        %2128 = vmatpush.msra.mxu0 0.0
        %2129 = vmatpush.msra.mxu0 0.0
        %2130 = vmatpush.msra.mxu0 0.0
        %2131 = vmatpush.msra.mxu0 0.0
        %2132 = vmatpush.msra.mxu0 0.0
        %2133 = vmatpush.msra.mxu0 0.0
        %2134 = vmatpush.msra.mxu0 %v2116
        %2135 = vmatpush.msra.mxu0 %v2115
        %2136 = vmatpush.msra.mxu0 %v2114
        %2137 = vmatmul.f32.gmra.mxu0 %v2119
        %v2138 = vpop.f32.mrf.mxu0
        %v2139 = vadd.f32 0.0, %v2138
        %2140 = vdwg.mxu0
        %2142 = vrot.lane.b32.xlu0 %v2139, 66
        %v2143 = vpop.permute.xlu0 %2142
        %vm2145 = vcmask 818704
        %2146 = vst.msk [vmem:[#allocation2 + $0x20] sm:$0xff] %vm2145, %v2143
        %v2147 = vld [vmem:[#allocation11] sm:$0xff]
        %v2148 = vld [vmem:[#allocation11 + $0x8] sm:$0xff]
        %v2149 = vld [vmem:[#allocation11 + $0x10] sm:$0xff]
        %2150 = vrot.lane.b32.xlu0 %v1824, 94
        %v2151 = vpop.permute.xlu0 %2150
        %v2152 = vsel %vm688, %v2151, 0
        %2154 = vmatpush.msra.mxu0 0.0
        %2155 = vmatpush.msra.mxu0 0.0
        %2156 = vmatpush.msra.mxu0 0.0
        %2157 = vmatpush.msra.mxu0 0.0
        %2158 = vmatpush.msra.mxu0 0.0
        %2159 = vmatpush.msra.mxu0 0.0
        %2160 = vmatpush.msra.mxu0 0.0
        %2161 = vmatpush.msra.mxu0 0.0
        %2162 = vmatpush.msra.mxu0 0.0
        %2163 = vmatpush.msra.mxu0 0.0
        %2164 = vmatpush.msra.mxu0 0.0
        %2165 = vmatpush.msra.mxu0 0.0
        %2166 = vmatpush.msra.mxu0 0.0
        %2167 = vmatpush.msra.mxu0 %v2149
        %2168 = vmatpush.msra.mxu0 %v2148
        %2169 = vmatpush.msra.mxu0 %v2147
        %2170 = vmatmul.f32.gmra.mxu0 %v2152
        %v2171 = vpop.f32.mrf.mxu0
        %v2172 = vadd.f32 0.0, %v2171
        %2173 = vdwg.mxu0
        %2175 = vrot.lane.b32.xlu0 %v2172, 6
        %v2176 = vpop.permute.xlu0 %2175
        %vm2178 = vcmask 326704
        %2179 = vst.msk [vmem:[#allocation2 + $0x28] sm:$0xff] %vm2178, %v2176
        %v2180 = vld [vmem:[#allocation11] sm:$0xff]
        %v2181 = vld [vmem:[#allocation11 + $0x8] sm:$0xff]
        %v2182 = vld [vmem:[#allocation11 + $0x10] sm:$0xff]
        %2183 = vrot.lane.b32.xlu0 %v1824, 76
        %v2184 = vpop.permute.xlu0 %2183
        %v2185 = vsel %vm688, %v2184, 0
        %2187 = vmatpush.msra.mxu0 0.0
        %2188 = vmatpush.msra.mxu0 0.0
        %2189 = vmatpush.msra.mxu0 0.0
        %2190 = vmatpush.msra.mxu0 0.0
        %2191 = vmatpush.msra.mxu0 0.0
        %2192 = vmatpush.msra.mxu0 0.0
        %2193 = vmatpush.msra.mxu0 0.0
        %2194 = vmatpush.msra.mxu0 0.0
        %2195 = vmatpush.msra.mxu0 0.0
        %2196 = vmatpush.msra.mxu0 0.0
        %2197 = vmatpush.msra.mxu0 0.0
        %2198 = vmatpush.msra.mxu0 0.0
        %2199 = vmatpush.msra.mxu0 0.0
        %2200 = vmatpush.msra.mxu0 %v2182
        %2201 = vmatpush.msra.mxu0 %v2181
        %2202 = vmatpush.msra.mxu0 %v2180
        %2203 = vmatmul.f32.gmra.mxu0 %v2185
        %v2204 = vpop.f32.mrf.mxu0
        %v2205 = vadd.f32 0.0, %v2204
        %2206 = vdwg.mxu0
        %2208 = vrot.lane.b32.xlu0 %v2205, 74
        %v2209 = vpop.permute.xlu0 %2208
        %vm2211 = vcmask 884304
        %2212 = vst.msk [vmem:[#allocation2 + $0x28] sm:$0xff] %vm2211, %v2209
        %v2213 = vld [vmem:[#allocation11] sm:$0xff]
        %v2214 = vld [vmem:[#allocation11 + $0x8] sm:$0xff]
        %v2215 = vld [vmem:[#allocation11 + $0x10] sm:$0xff]
        %2216 = vrot.lane.b32.xlu0 %v1824, 58
        %v2217 = vpop.permute.xlu0 %2216
        %v2218 = vsel %vm688, %v2217, 0
        %2220 = vmatpush.msra.mxu0 0.0
        %2221 = vmatpush.msra.mxu0 0.0
        %2222 = vmatpush.msra.mxu0 0.0
        %2223 = vmatpush.msra.mxu0 0.0
        %2224 = vmatpush.msra.mxu0 0.0
        %2225 = vmatpush.msra.mxu0 0.0
        %2226 = vmatpush.msra.mxu0 0.0
        %2227 = vmatpush.msra.mxu0 0.0
        %2228 = vmatpush.msra.mxu0 0.0
        %2229 = vmatpush.msra.mxu0 0.0
        %2230 = vmatpush.msra.mxu0 0.0
        %2231 = vmatpush.msra.mxu0 0.0
        %2232 = vmatpush.msra.mxu0 0.0
        %2233 = vmatpush.msra.mxu0 %v2215
        %2234 = vmatpush.msra.mxu0 %v2214
        %2235 = vmatpush.msra.mxu0 %v2213
        %2236 = vmatmul.f32.gmra.mxu0 %v2218
        %v2237 = vpop.f32.mrf.mxu0
        %v2238 = vadd.f32 0.0, %v2237
        %2239 = vdwg.mxu0
        %2241 = vrot.lane.b32.xlu0 %v2238, 14
        %v2242 = vpop.permute.xlu0 %2241
        %vm2244 = vcmask 392304
        %2245 = vst.msk [vmem:[#allocation2 + $0x30] sm:$0xff] %vm2244, %v2242
        %v2246 = vld [vmem:[#allocation11] sm:$0xff]
        %v2247 = vld [vmem:[#allocation11 + $0x8] sm:$0xff]
        %v2248 = vld [vmem:[#allocation11 + $0x10] sm:$0xff]
        %2249 = vrot.lane.b32.xlu0 %v1824, 40
        %v2250 = vpop.permute.xlu0 %2249
        %v2251 = vsel %vm688, %v2250, 0
        %2253 = vmatpush.msra.mxu0 0.0
        %2254 = vmatpush.msra.mxu0 0.0
        %2255 = vmatpush.msra.mxu0 0.0
        %2256 = vmatpush.msra.mxu0 0.0
        %2257 = vmatpush.msra.mxu0 0.0
        %2258 = vmatpush.msra.mxu0 0.0
        %2259 = vmatpush.msra.mxu0 0.0
        %2260 = vmatpush.msra.mxu0 0.0
        %2261 = vmatpush.msra.mxu0 0.0
        %2262 = vmatpush.msra.mxu0 0.0
        %2263 = vmatpush.msra.mxu0 0.0
        %2264 = vmatpush.msra.mxu0 0.0
        %2265 = vmatpush.msra.mxu0 0.0
        %2266 = vmatpush.msra.mxu0 %v2248
        %2267 = vmatpush.msra.mxu0 %v2247
        %2268 = vmatpush.msra.mxu0 %v2246
        %2269 = vmatmul.f32.gmra.mxu0 %v2251
        %v2270 = vpop.f32.mrf.mxu0
        %v2271 = vadd.f32 0.0, %v2270
        %2272 = vdwg.mxu0
        %2274 = vrot.lane.b32.xlu0 %v2271, 82
        %v2275 = vpop.permute.xlu0 %2274
        %vm2277 = vcmask 949904
        %2278 = vst.msk [vmem:[#allocation2 + $0x30] sm:$0xff] %vm2277, %v2275
        %v2279 = vld [vmem:[#allocation11] sm:$0xff]
        %v2280 = vld [vmem:[#allocation11 + $0x8] sm:$0xff]
        %v2281 = vld [vmem:[#allocation11 + $0x10] sm:$0xff]
        %2283 = vrot.lane.b32.xlu0 %v1824, 22
        %v2284 = vpop.permute.xlu0 %2283
        %2285 = vrot.lane.b32.xlu0 %v1838, 22
        %v2286 = vpop.permute.xlu0 %2285
        %vm2287 = vcmask 179200
        %v2288 = vsel %vm2287, %v2284, %v2286
        %v2289 = vsel %vm688, %v2288, 0
        %2291 = vmatpush.msra.mxu0 0.0
        %2292 = vmatpush.msra.mxu0 0.0
        %2293 = vmatpush.msra.mxu0 0.0
        %2294 = vmatpush.msra.mxu0 0.0
        %2295 = vmatpush.msra.mxu0 0.0
        %2296 = vmatpush.msra.mxu0 0.0
        %2297 = vmatpush.msra.mxu0 0.0
        %2298 = vmatpush.msra.mxu0 0.0
        %2299 = vmatpush.msra.mxu0 0.0
        %2300 = vmatpush.msra.mxu0 0.0
        %2301 = vmatpush.msra.mxu0 0.0
        %2302 = vmatpush.msra.mxu0 0.0
        %2303 = vmatpush.msra.mxu0 0.0
        %2304 = vmatpush.msra.mxu0 %v2281
        %2305 = vmatpush.msra.mxu0 %v2280
        %2306 = vmatpush.msra.mxu0 %v2279
        %2307 = vmatmul.f32.gmra.mxu0 %v2289
        %v2308 = vpop.f32.mrf.mxu0
        %v2309 = vadd.f32 0.0, %v2308
        %2310 = vdwg.mxu0
        %2312 = vrot.lane.b32.xlu0 %v2309, 22
        %v2313 = vpop.permute.xlu0 %2312
        %vm2315 = vcmask 457904
        %2316 = vst.msk [vmem:[#allocation2 + $0x38] sm:$0xff] %vm2315, %v2313
        %v2317 = vld [vmem:[#allocation11] sm:$0xff]
        %v2318 = vld [vmem:[#allocation11 + $0x8] sm:$0xff]
        %v2319 = vld [vmem:[#allocation11 + $0x10] sm:$0xff]
        %2320 = vrot.lane.b32.xlu0 %v1824, 4
        %v2321 = vpop.permute.xlu0 %2320
        %2322 = vrot.lane.b32.xlu0 %v1838, 4
        %v2323 = vpop.permute.xlu0 %2322
        %vm2324 = vcmask 31744
        %v2325 = vsel %vm2324, %v2321, %v2323
        %v2326 = vsel %vm688, %v2325, 0
        %2328 = vmatpush.msra.mxu0 0.0
        %2329 = vmatpush.msra.mxu0 0.0
        %2330 = vmatpush.msra.mxu0 0.0
        %2331 = vmatpush.msra.mxu0 0.0
        %2332 = vmatpush.msra.mxu0 0.0
        %2333 = vmatpush.msra.mxu0 0.0
        %2334 = vmatpush.msra.mxu0 0.0
        %2335 = vmatpush.msra.mxu0 0.0
        %2336 = vmatpush.msra.mxu0 0.0
        %2337 = vmatpush.msra.mxu0 0.0
        %2338 = vmatpush.msra.mxu0 0.0
        %2339 = vmatpush.msra.mxu0 0.0
        %2340 = vmatpush.msra.mxu0 0.0
        %2341 = vmatpush.msra.mxu0 %v2319
        %2342 = vmatpush.msra.mxu0 %v2318
        %2343 = vmatpush.msra.mxu0 %v2317
        %2344 = vmatmul.f32.gmra.mxu0 %v2326
        %v2345 = vpop.f32.mrf.mxu0
        %v2346 = vadd.f32 0.0, %v2345
        %2347 = vdwg.mxu0
        %2349 = vrot.lane.b32.xlu0 %v2346, 90
        %v2350 = vpop.permute.xlu0 %2349
        %vm2352 = vcmask 1015504
        %2353 = vst.msk [vmem:[#allocation2 + $0x38] sm:$0xff] %vm2352, %v2350
        %v2354 = vld [vmem:[#allocation11] sm:$0xff]
        %v2355 = vld [vmem:[#allocation11 + $0x8] sm:$0xff]
        %v2356 = vld [vmem:[#allocation11 + $0x10] sm:$0xff]
        %2357 = vrot.lane.b32.xlu0 %v1838, 114
        %v2358 = vpop.permute.xlu0 %2357
        %v2359 = vsel %vm688, %v2358, 0
        %2361 = vmatpush.msra.mxu0 0.0
        %2362 = vmatpush.msra.mxu0 0.0
        %2363 = vmatpush.msra.mxu0 0.0
        %2364 = vmatpush.msra.mxu0 0.0
        %2365 = vmatpush.msra.mxu0 0.0
        %2366 = vmatpush.msra.mxu0 0.0
        %2367 = vmatpush.msra.mxu0 0.0
        %2368 = vmatpush.msra.mxu0 0.0
        %2369 = vmatpush.msra.mxu0 0.0
        %2370 = vmatpush.msra.mxu0 0.0
        %2371 = vmatpush.msra.mxu0 0.0
        %2372 = vmatpush.msra.mxu0 0.0
        %2373 = vmatpush.msra.mxu0 0.0
        %2374 = vmatpush.msra.mxu0 %v2356
        %2375 = vmatpush.msra.mxu0 %v2355
        %2376 = vmatpush.msra.mxu0 %v2354
        %2377 = vmatmul.f32.gmra.mxu0 %v2359
        %v2378 = vpop.f32.mrf.mxu0
        %v2379 = vadd.f32 0.0, %v2378
        %2380 = vdwg.mxu0
        %2382 = vrot.lane.b32.xlu0 %v2379, 30
        %v2383 = vpop.permute.xlu0 %2382
        %vm2385 = vcmask 523504
        %2386 = vst.msk [vmem:[#allocation2 + $0x40] sm:$0xff] %vm2385, %v2383
        %v2387 = vld [vmem:[#allocation2] sm:$0xff]
        %v2388 = vld [vmem:[#allocation2 + $0x8] sm:$0xff]
        %v2389 = vld [vmem:[#allocation2 + $0x10] sm:$0xff]
        %v2390 = vld [vmem:[#allocation2 + $0x18] sm:$0xff]
        %v2391 = vld [vmem:[#allocation2 + $0x20] sm:$0xff]
        %v2392 = vld [vmem:[#allocation2 + $0x28] sm:$0xff]
        %v2393 = vld [vmem:[#allocation2 + $0x30] sm:$0xff]
        %v2394 = vld [vmem:[#allocation2 + $0x38] sm:$0xff]
        %v2395 = vld [vmem:[#allocation2 + $0x40] sm:$0xff]
        %2405 = vrot.lane.b32.xlu0 %v2387, 127
        %v2406 = vpop.permute.xlu0 %2405
        %2407 = vrot.lane.b32.xlu0 %v2388, 127
        %v2408 = vpop.permute.xlu0 %2407
        %2409 = vrot.lane.b32.xlu0 %v2389, 127
        %v2410 = vpop.permute.xlu0 %2409
        %2411 = vrot.lane.b32.xlu0 %v2390, 127
        %v2412 = vpop.permute.xlu0 %2411
        %2413 = vrot.lane.b32.xlu0 %v2391, 127
        %v2414 = vpop.permute.xlu0 %2413
        %2415 = vrot.lane.b32.xlu0 %v2392, 127
        %v2416 = vpop.permute.xlu0 %2415
        %2417 = vrot.lane.b32.xlu0 %v2393, 127
        %v2418 = vpop.permute.xlu0 %2417
        %2419 = vrot.lane.b32.xlu0 %v2394, 127
        %v2420 = vpop.permute.xlu0 %2419
        %2421 = vrot.lane.b32.xlu0 %v2395, 127
        %v2422 = vpop.permute.xlu0 %2421
        %v2423 = vsel %vm1177, %v2406, %v2408
        %v2424 = vsel %vm1177, %v2408, %v2410
        %v2425 = vsel %vm1177, %v2410, %v2412
        %v2426 = vsel %vm1177, %v2412, %v2414
        %v2427 = vsel %vm1177, %v2414, %v2416
        %v2428 = vsel %vm1177, %v2416, %v2418
        %v2429 = vsel %vm1177, %v2418, %v2420
        %v2430 = vsel %vm1177, %v2420, %v2422
        %2440 = vrot.lane.b32.xlu0 %v2387, 126
        %v2441 = vpop.permute.xlu0 %2440
        %2442 = vrot.lane.b32.xlu0 %v2388, 126
        %v2443 = vpop.permute.xlu0 %2442
        %2444 = vrot.lane.b32.xlu0 %v2389, 126
        %v2445 = vpop.permute.xlu0 %2444
        %2446 = vrot.lane.b32.xlu0 %v2390, 126
        %v2447 = vpop.permute.xlu0 %2446
        %2448 = vrot.lane.b32.xlu0 %v2391, 126
        %v2449 = vpop.permute.xlu0 %2448
        %2450 = vrot.lane.b32.xlu0 %v2392, 126
        %v2451 = vpop.permute.xlu0 %2450
        %2452 = vrot.lane.b32.xlu0 %v2393, 126
        %v2453 = vpop.permute.xlu0 %2452
        %2454 = vrot.lane.b32.xlu0 %v2394, 126
        %v2455 = vpop.permute.xlu0 %2454
        %2456 = vrot.lane.b32.xlu0 %v2395, 126
        %v2457 = vpop.permute.xlu0 %2456
        %v2458 = vsel %vm1189, %v2441, %v2443
        %v2459 = vsel %vm1189, %v2443, %v2445
        %v2460 = vsel %vm1189, %v2445, %v2447
        %v2461 = vsel %vm1189, %v2447, %v2449
        %v2462 = vsel %vm1189, %v2449, %v2451
        %v2463 = vsel %vm1189, %v2451, %v2453
        %v2464 = vsel %vm1189, %v2453, %v2455
        %v2465 = vsel %vm1189, %v2455, %v2457
        %v2475 = vld [vmem:[%s12] sm:$0xff]
        %2477 = vrot.lane.b32.xlu0 %v2475, 104
        %v2478 = vpop.permute.xlu0 %2477
        %2479 = vrot.lane.b32.xlu0 %v2387, 94
        %v2480 = vpop.permute.xlu0 %2479
        %2481 = vrot.lane.b32.xlu0 %v2388, 94
        %v2482 = vpop.permute.xlu0 %2481
        %2483 = vrot.lane.b32.xlu0 %v2389, 94
        %v2484 = vpop.permute.xlu0 %2483
        %2485 = vrot.lane.b32.xlu0 %v2390, 94
        %v2486 = vpop.permute.xlu0 %2485
        %2487 = vrot.lane.b32.xlu0 %v2391, 94
        %v2488 = vpop.permute.xlu0 %2487
        %2489 = vrot.lane.b32.xlu0 %v2392, 94
        %v2490 = vpop.permute.xlu0 %2489
        %2491 = vrot.lane.b32.xlu0 %v2393, 94
        %v2492 = vpop.permute.xlu0 %2491
        %2493 = vrot.lane.b32.xlu0 %v2394, 94
        %v2494 = vpop.permute.xlu0 %2493
        %2495 = vrot.lane.b32.xlu0 %v2395, 94
        %v2496 = vpop.permute.xlu0 %2495
        %2497 = vrot.lane.b32.xlu0 %v2423, 94
        %v2498 = vpop.permute.xlu0 %2497
        %2499 = vrot.lane.b32.xlu0 %v2424, 94
        %v2500 = vpop.permute.xlu0 %2499
        %2501 = vrot.lane.b32.xlu0 %v2425, 94
        %v2502 = vpop.permute.xlu0 %2501
        %2503 = vrot.lane.b32.xlu0 %v2426, 94
        %v2504 = vpop.permute.xlu0 %2503
        %2505 = vrot.lane.b32.xlu0 %v2427, 94
        %v2506 = vpop.permute.xlu0 %2505
        %2507 = vrot.lane.b32.xlu0 %v2428, 94
        %v2508 = vpop.permute.xlu0 %2507
        %2509 = vrot.lane.b32.xlu0 %v2429, 94
        %v2510 = vpop.permute.xlu0 %2509
        %2511 = vrot.lane.b32.xlu0 %v2430, 94
        %v2512 = vpop.permute.xlu0 %2511
        %2513 = vrot.lane.b32.xlu0 %v2422, 94
        %v2514 = vpop.permute.xlu0 %2513
        %2515 = vrot.lane.b32.xlu0 %v2458, 94
        %v2516 = vpop.permute.xlu0 %2515
        %2517 = vrot.lane.b32.xlu0 %v2459, 94
        %v2518 = vpop.permute.xlu0 %2517
        %2519 = vrot.lane.b32.xlu0 %v2460, 94
        %v2520 = vpop.permute.xlu0 %2519
        %2521 = vrot.lane.b32.xlu0 %v2461, 94
        %v2522 = vpop.permute.xlu0 %2521
        %2523 = vrot.lane.b32.xlu0 %v2462, 94
        %v2524 = vpop.permute.xlu0 %2523
        %2525 = vrot.lane.b32.xlu0 %v2463, 94
        %v2526 = vpop.permute.xlu0 %2525
        %2527 = vrot.lane.b32.xlu0 %v2464, 94
        %v2528 = vpop.permute.xlu0 %2527
        %2529 = vrot.lane.b32.xlu0 %v2465, 94
        %v2530 = vpop.permute.xlu0 %2529
        %2531 = vrot.lane.b32.xlu0 %v2457, 94
        %v2532 = vpop.permute.xlu0 %2531
        %vm2533 = vcmask 769024
        %v2534 = vsel %vm2533, %v2480, %v2482
        %v2535 = vsel %vm2533, %v2482, %v2484
        %v2536 = vsel %vm2533, %v2484, %v2486
        %v2537 = vsel %vm2533, %v2486, %v2488
        %v2538 = vsel %vm2533, %v2488, %v2490
        %v2539 = vsel %vm2533, %v2490, %v2492
        %v2540 = vsel %vm2533, %v2492, %v2494
        %v2541 = vsel %vm2533, %v2494, %v2496
        %v2542 = vsel %vm2533, %v2498, %v2500
        %v2543 = vsel %vm2533, %v2500, %v2502
        %v2544 = vsel %vm2533, %v2502, %v2504
        %v2545 = vsel %vm2533, %v2504, %v2506
        %v2546 = vsel %vm2533, %v2506, %v2508
        %v2547 = vsel %vm2533, %v2508, %v2510
        %v2548 = vsel %vm2533, %v2510, %v2512
        %v2549 = vsel %vm2533, %v2512, %v2514
        %v2550 = vsel %vm2533, %v2516, %v2518
        %v2551 = vsel %vm2533, %v2518, %v2520
        %v2552 = vsel %vm2533, %v2520, %v2522
        %v2553 = vsel %vm2533, %v2522, %v2524
        %v2554 = vsel %vm2533, %v2524, %v2526
        %v2555 = vsel %vm2533, %v2526, %v2528
        %v2556 = vsel %vm2533, %v2528, %v2530
        %v2557 = vsel %vm2533, %v2530, %v2532
        %v2585 = vsel %vm688, %v2478, 0
        %2587 = vmatpush.msra.mxu0 0.0
        %2588 = vmatpush.msra.mxu0 0.0
        %2589 = vmatpush.msra.mxu0 0.0
        %2590 = vmatpush.msra.mxu0 0.0
        %2591 = vmatpush.msra.mxu0 0.0
        %2592 = vmatpush.msra.mxu0 0.0
        %2593 = vmatpush.msra.mxu0 0.0
        %2594 = vmatpush.msra.mxu0 0.0
        %2595 = vmatpush.msra.mxu0 0.0
        %2596 = vmatpush.msra.mxu0 0.0
        %2597 = vmatpush.msra.mxu0 0.0
        %2598 = vmatpush.msra.mxu0 0.0
        %2599 = vmatpush.msra.mxu0 0.0
        %2600 = vmatpush.msra.mxu0 %v2550
        %2601 = vmatpush.msra.mxu0 %v2542
        %2602 = vmatpush.msra.mxu0 %v2534
        %2603 = vmatmul.f32.gmra.mxu0 %v2585
        %v2604 = vpop.f32.mrf.mxu0
        %v2605 = vadd.f32 0.0, %v2604
        %2606 = vdwg.mxu0
        %2607 = vmatpush.msra.mxu0 0.0
        %2608 = vmatpush.msra.mxu0 0.0
        %2609 = vmatpush.msra.mxu0 0.0
        %2610 = vmatpush.msra.mxu0 0.0
        %2611 = vmatpush.msra.mxu0 0.0
        %2612 = vmatpush.msra.mxu0 0.0
        %2613 = vmatpush.msra.mxu0 0.0
        %2614 = vmatpush.msra.mxu0 0.0
        %2615 = vmatpush.msra.mxu0 0.0
        %2616 = vmatpush.msra.mxu0 0.0
        %2617 = vmatpush.msra.mxu0 0.0
        %2618 = vmatpush.msra.mxu0 0.0
        %2619 = vmatpush.msra.mxu0 0.0
        %2620 = vmatpush.msra.mxu0 %v2551
        %2621 = vmatpush.msra.mxu0 %v2543
        %2622 = vmatpush.msra.mxu0 %v2535
        %2623 = vmatmul.f32.gmra.mxu0 %v2585
        %v2624 = vpop.f32.mrf.mxu0
        %v2625 = vadd.f32 0.0, %v2624
        %2626 = vdwg.mxu0
        %2627 = vmatpush.msra.mxu0 0.0
        %2628 = vmatpush.msra.mxu0 0.0
        %2629 = vmatpush.msra.mxu0 0.0
        %2630 = vmatpush.msra.mxu0 0.0
        %2631 = vmatpush.msra.mxu0 0.0
        %2632 = vmatpush.msra.mxu0 0.0
        %2633 = vmatpush.msra.mxu0 0.0
        %2634 = vmatpush.msra.mxu0 0.0
        %2635 = vmatpush.msra.mxu0 0.0
        %2636 = vmatpush.msra.mxu0 0.0
        %2637 = vmatpush.msra.mxu0 0.0
        %2638 = vmatpush.msra.mxu0 0.0
        %2639 = vmatpush.msra.mxu0 0.0
        %2640 = vmatpush.msra.mxu0 %v2552
        %2641 = vmatpush.msra.mxu0 %v2544
        %2642 = vmatpush.msra.mxu0 %v2536
        %2643 = vmatmul.f32.gmra.mxu0 %v2585
        %v2644 = vpop.f32.mrf.mxu0
        %v2645 = vadd.f32 0.0, %v2644
        %2646 = vdwg.mxu0
        %2647 = vmatpush.msra.mxu0 0.0
        %2648 = vmatpush.msra.mxu0 0.0
        %2649 = vmatpush.msra.mxu0 0.0
        %2650 = vmatpush.msra.mxu0 0.0
        %2651 = vmatpush.msra.mxu0 0.0
        %2652 = vmatpush.msra.mxu0 0.0
        %2653 = vmatpush.msra.mxu0 0.0
        %2654 = vmatpush.msra.mxu0 0.0
        %2655 = vmatpush.msra.mxu0 0.0
        %2656 = vmatpush.msra.mxu0 0.0
        %2657 = vmatpush.msra.mxu0 0.0
        %2658 = vmatpush.msra.mxu0 0.0
        %2659 = vmatpush.msra.mxu0 0.0
        %2660 = vmatpush.msra.mxu0 %v2553
        %2661 = vmatpush.msra.mxu0 %v2545
        %2662 = vmatpush.msra.mxu0 %v2537
        %2663 = vmatmul.f32.gmra.mxu0 %v2585
        %v2664 = vpop.f32.mrf.mxu0
        %v2665 = vadd.f32 0.0, %v2664
        %2666 = vdwg.mxu0
        %2667 = vmatpush.msra.mxu0 0.0
        %2668 = vmatpush.msra.mxu0 0.0
        %2669 = vmatpush.msra.mxu0 0.0
        %2670 = vmatpush.msra.mxu0 0.0
        %2671 = vmatpush.msra.mxu0 0.0
        %2672 = vmatpush.msra.mxu0 0.0
        %2673 = vmatpush.msra.mxu0 0.0
        %2674 = vmatpush.msra.mxu0 0.0
        %2675 = vmatpush.msra.mxu0 0.0
        %2676 = vmatpush.msra.mxu0 0.0
        %2677 = vmatpush.msra.mxu0 0.0
        %2678 = vmatpush.msra.mxu0 0.0
        %2679 = vmatpush.msra.mxu0 0.0
        %2680 = vmatpush.msra.mxu0 %v2554
        %2681 = vmatpush.msra.mxu0 %v2546
        %2682 = vmatpush.msra.mxu0 %v2538
        %2683 = vmatmul.f32.gmra.mxu0 %v2585
        %v2684 = vpop.f32.mrf.mxu0
        %v2685 = vadd.f32 0.0, %v2684
        %2686 = vdwg.mxu0
        %2687 = vmatpush.msra.mxu0 0.0
        %2688 = vmatpush.msra.mxu0 0.0
        %2689 = vmatpush.msra.mxu0 0.0
        %2690 = vmatpush.msra.mxu0 0.0
        %2691 = vmatpush.msra.mxu0 0.0
        %2692 = vmatpush.msra.mxu0 0.0
        %2693 = vmatpush.msra.mxu0 0.0
        %2694 = vmatpush.msra.mxu0 0.0
        %2695 = vmatpush.msra.mxu0 0.0
        %2696 = vmatpush.msra.mxu0 0.0
        %2697 = vmatpush.msra.mxu0 0.0
        %2698 = vmatpush.msra.mxu0 0.0
        %2699 = vmatpush.msra.mxu0 0.0
        %2700 = vmatpush.msra.mxu0 %v2555
        %2701 = vmatpush.msra.mxu0 %v2547
        %2702 = vmatpush.msra.mxu0 %v2539
        %2703 = vmatmul.f32.gmra.mxu0 %v2585
        %v2704 = vpop.f32.mrf.mxu0
        %v2705 = vadd.f32 0.0, %v2704
        %2706 = vdwg.mxu0
        %2707 = vmatpush.msra.mxu0 0.0
        %2708 = vmatpush.msra.mxu0 0.0
        %2709 = vmatpush.msra.mxu0 0.0
        %2710 = vmatpush.msra.mxu0 0.0
        %2711 = vmatpush.msra.mxu0 0.0
        %2712 = vmatpush.msra.mxu0 0.0
        %2713 = vmatpush.msra.mxu0 0.0
        %2714 = vmatpush.msra.mxu0 0.0
        %2715 = vmatpush.msra.mxu0 0.0
        %2716 = vmatpush.msra.mxu0 0.0
        %2717 = vmatpush.msra.mxu0 0.0
        %2718 = vmatpush.msra.mxu0 0.0
        %2719 = vmatpush.msra.mxu0 0.0
        %2720 = vmatpush.msra.mxu0 %v2556
        %2721 = vmatpush.msra.mxu0 %v2548
        %2722 = vmatpush.msra.mxu0 %v2540
        %2723 = vmatmul.f32.gmra.mxu0 %v2585
        %v2724 = vpop.f32.mrf.mxu0
        %v2725 = vadd.f32 0.0, %v2724
        %2726 = vdwg.mxu0
        %2727 = vmatpush.msra.mxu0 0.0
        %2728 = vmatpush.msra.mxu0 0.0
        %2729 = vmatpush.msra.mxu0 0.0
        %2730 = vmatpush.msra.mxu0 0.0
        %2731 = vmatpush.msra.mxu0 0.0
        %2732 = vmatpush.msra.mxu0 0.0
        %2733 = vmatpush.msra.mxu0 0.0
        %2734 = vmatpush.msra.mxu0 0.0
        %2735 = vmatpush.msra.mxu0 0.0
        %2736 = vmatpush.msra.mxu0 0.0
        %2737 = vmatpush.msra.mxu0 0.0
        %2738 = vmatpush.msra.mxu0 0.0
        %2739 = vmatpush.msra.mxu0 0.0
        %2740 = vmatpush.msra.mxu0 %v2557
        %2741 = vmatpush.msra.mxu0 %v2549
        %2742 = vmatpush.msra.mxu0 %v2541
        %2743 = vmatmul.f32.gmra.mxu0 %v2585
        %v2744 = vpop.f32.mrf.mxu0
        %v2745 = vadd.f32 0.0, %v2744
        %2746 = vdwg.mxu0
        %2747 = vmatpush.msra.mxu0 0.0
        %2748 = vmatpush.msra.mxu0 0.0
        %2749 = vmatpush.msra.mxu0 0.0
        %2750 = vmatpush.msra.mxu0 0.0
        %2751 = vmatpush.msra.mxu0 0.0
        %2752 = vmatpush.msra.mxu0 0.0
        %2753 = vmatpush.msra.mxu0 0.0
        %2754 = vmatpush.msra.mxu0 0.0
        %2755 = vmatpush.msra.mxu0 0.0
        %2756 = vmatpush.msra.mxu0 0.0
        %2757 = vmatpush.msra.mxu0 0.0
        %2758 = vmatpush.msra.mxu0 0.0
        %2759 = vmatpush.msra.mxu0 0.0
        %2760 = vmatpush.msra.mxu0 %v2532
        %2761 = vmatpush.msra.mxu0 %v2514
        %2762 = vmatpush.msra.mxu0 %v2496
        %2763 = vmatmul.f32.gmra.mxu0 %v2585
        %v2764 = vpop.f32.mrf.mxu0
        %v2765 = vadd.f32 0.0, %v2764
        %2766 = vdwg.mxu0
        %v2767 = vsel %vm688, %v2475, 0
        %2769 = vmatpush.msra.mxu0 0.0
        %2770 = vmatpush.msra.mxu0 0.0
        %2771 = vmatpush.msra.mxu0 0.0
        %2772 = vmatpush.msra.mxu0 0.0
        %2773 = vmatpush.msra.mxu0 0.0
        %2774 = vmatpush.msra.mxu0 0.0
        %2775 = vmatpush.msra.mxu0 0.0
        %2776 = vmatpush.msra.mxu0 0.0
        %2777 = vmatpush.msra.mxu0 0.0
        %2778 = vmatpush.msra.mxu0 0.0
        %2779 = vmatpush.msra.mxu0 0.0
        %2780 = vmatpush.msra.mxu0 0.0
        %2781 = vmatpush.msra.mxu0 0.0
        %2782 = vmatpush.msra.mxu0 %v2458
        %2783 = vmatpush.msra.mxu0 %v2423
        %2784 = vmatpush.msra.mxu0 %v2387
        %2785 = vmatmul.f32.gmra.mxu0 %v2767
        %v2786 = vpop.f32.mrf.mxu0
        %v2787 = vadd.f32 %v2605, %v2786
        %2788 = vdwg.mxu0
        %2789 = vmatpush.msra.mxu0 0.0
        %2790 = vmatpush.msra.mxu0 0.0
        %2791 = vmatpush.msra.mxu0 0.0
        %2792 = vmatpush.msra.mxu0 0.0
        %2793 = vmatpush.msra.mxu0 0.0
        %2794 = vmatpush.msra.mxu0 0.0
        %2795 = vmatpush.msra.mxu0 0.0
        %2796 = vmatpush.msra.mxu0 0.0
        %2797 = vmatpush.msra.mxu0 0.0
        %2798 = vmatpush.msra.mxu0 0.0
        %2799 = vmatpush.msra.mxu0 0.0
        %2800 = vmatpush.msra.mxu0 0.0
        %2801 = vmatpush.msra.mxu0 0.0
        %2802 = vmatpush.msra.mxu0 %v2459
        %2803 = vmatpush.msra.mxu0 %v2424
        %2804 = vmatpush.msra.mxu0 %v2388
        %2805 = vmatmul.f32.gmra.mxu0 %v2767
        %v2806 = vpop.f32.mrf.mxu0
        %v2807 = vadd.f32 %v2625, %v2806
        %2808 = vdwg.mxu0
        %2809 = vmatpush.msra.mxu0 0.0
        %2810 = vmatpush.msra.mxu0 0.0
        %2811 = vmatpush.msra.mxu0 0.0
        %2812 = vmatpush.msra.mxu0 0.0
        %2813 = vmatpush.msra.mxu0 0.0
        %2814 = vmatpush.msra.mxu0 0.0
        %2815 = vmatpush.msra.mxu0 0.0
        %2816 = vmatpush.msra.mxu0 0.0
        %2817 = vmatpush.msra.mxu0 0.0
        %2818 = vmatpush.msra.mxu0 0.0
        %2819 = vmatpush.msra.mxu0 0.0
        %2820 = vmatpush.msra.mxu0 0.0
        %2821 = vmatpush.msra.mxu0 0.0
        %2822 = vmatpush.msra.mxu0 %v2460
        %2823 = vmatpush.msra.mxu0 %v2425
        %2824 = vmatpush.msra.mxu0 %v2389
        %2825 = vmatmul.f32.gmra.mxu0 %v2767
        %v2826 = vpop.f32.mrf.mxu0
        %v2827 = vadd.f32 %v2645, %v2826
        %2828 = vdwg.mxu0
        %2829 = vmatpush.msra.mxu0 0.0
        %2830 = vmatpush.msra.mxu0 0.0
        %2831 = vmatpush.msra.mxu0 0.0
        %2832 = vmatpush.msra.mxu0 0.0
        %2833 = vmatpush.msra.mxu0 0.0
        %2834 = vmatpush.msra.mxu0 0.0
        %2835 = vmatpush.msra.mxu0 0.0
        %2836 = vmatpush.msra.mxu0 0.0
        %2837 = vmatpush.msra.mxu0 0.0
        %2838 = vmatpush.msra.mxu0 0.0
        %2839 = vmatpush.msra.mxu0 0.0
        %2840 = vmatpush.msra.mxu0 0.0
        %2841 = vmatpush.msra.mxu0 0.0
        %2842 = vmatpush.msra.mxu0 %v2461
        %2843 = vmatpush.msra.mxu0 %v2426
        %2844 = vmatpush.msra.mxu0 %v2390
        %2845 = vmatmul.f32.gmra.mxu0 %v2767
        %v2846 = vpop.f32.mrf.mxu0
        %v2847 = vadd.f32 %v2665, %v2846
        %2848 = vdwg.mxu0
        %2849 = vmatpush.msra.mxu0 0.0
        %2850 = vmatpush.msra.mxu0 0.0
        %2851 = vmatpush.msra.mxu0 0.0
        %2852 = vmatpush.msra.mxu0 0.0
        %2853 = vmatpush.msra.mxu0 0.0
        %2854 = vmatpush.msra.mxu0 0.0
        %2855 = vmatpush.msra.mxu0 0.0
        %2856 = vmatpush.msra.mxu0 0.0
        %2857 = vmatpush.msra.mxu0 0.0
        %2858 = vmatpush.msra.mxu0 0.0
        %2859 = vmatpush.msra.mxu0 0.0
        %2860 = vmatpush.msra.mxu0 0.0
        %2861 = vmatpush.msra.mxu0 0.0
        %2862 = vmatpush.msra.mxu0 %v2462
        %2863 = vmatpush.msra.mxu0 %v2427
        %2864 = vmatpush.msra.mxu0 %v2391
        %2865 = vmatmul.f32.gmra.mxu0 %v2767
        %v2866 = vpop.f32.mrf.mxu0
        %v2867 = vadd.f32 %v2685, %v2866
        %2868 = vdwg.mxu0
        %2869 = vmatpush.msra.mxu0 0.0
        %2870 = vmatpush.msra.mxu0 0.0
        %2871 = vmatpush.msra.mxu0 0.0
        %2872 = vmatpush.msra.mxu0 0.0
        %2873 = vmatpush.msra.mxu0 0.0
        %2874 = vmatpush.msra.mxu0 0.0
        %2875 = vmatpush.msra.mxu0 0.0
        %2876 = vmatpush.msra.mxu0 0.0
        %2877 = vmatpush.msra.mxu0 0.0
        %2878 = vmatpush.msra.mxu0 0.0
        %2879 = vmatpush.msra.mxu0 0.0
        %2880 = vmatpush.msra.mxu0 0.0
        %2881 = vmatpush.msra.mxu0 0.0
        %2882 = vmatpush.msra.mxu0 %v2463
        %2883 = vmatpush.msra.mxu0 %v2428
        %2884 = vmatpush.msra.mxu0 %v2392
        %2885 = vmatmul.f32.gmra.mxu0 %v2767
        %v2886 = vpop.f32.mrf.mxu0
        %v2887 = vadd.f32 %v2705, %v2886
        %2888 = vdwg.mxu0
        %2889 = vmatpush.msra.mxu0 0.0
        %2890 = vmatpush.msra.mxu0 0.0
        %2891 = vmatpush.msra.mxu0 0.0
        %2892 = vmatpush.msra.mxu0 0.0
        %2893 = vmatpush.msra.mxu0 0.0
        %2894 = vmatpush.msra.mxu0 0.0
        %2895 = vmatpush.msra.mxu0 0.0
        %2896 = vmatpush.msra.mxu0 0.0
        %2897 = vmatpush.msra.mxu0 0.0
        %2898 = vmatpush.msra.mxu0 0.0
        %2899 = vmatpush.msra.mxu0 0.0
        %2900 = vmatpush.msra.mxu0 0.0
        %2901 = vmatpush.msra.mxu0 0.0
        %2902 = vmatpush.msra.mxu0 %v2464
        %2903 = vmatpush.msra.mxu0 %v2429
        %2904 = vmatpush.msra.mxu0 %v2393
        %2905 = vmatmul.f32.gmra.mxu0 %v2767
        %v2906 = vpop.f32.mrf.mxu0
        %v2907 = vadd.f32 %v2725, %v2906
        %2908 = vdwg.mxu0
        %2909 = vmatpush.msra.mxu0 0.0
        %2910 = vmatpush.msra.mxu0 0.0
        %2911 = vmatpush.msra.mxu0 0.0
        %2912 = vmatpush.msra.mxu0 0.0
        %2913 = vmatpush.msra.mxu0 0.0
        %2914 = vmatpush.msra.mxu0 0.0
        %2915 = vmatpush.msra.mxu0 0.0
        %2916 = vmatpush.msra.mxu0 0.0
        %2917 = vmatpush.msra.mxu0 0.0
        %2918 = vmatpush.msra.mxu0 0.0
        %2919 = vmatpush.msra.mxu0 0.0
        %2920 = vmatpush.msra.mxu0 0.0
        %2921 = vmatpush.msra.mxu0 0.0
        %2922 = vmatpush.msra.mxu0 %v2465
        %2923 = vmatpush.msra.mxu0 %v2430
        %2924 = vmatpush.msra.mxu0 %v2394
        %2925 = vmatmul.f32.gmra.mxu0 %v2767
        %v2926 = vpop.f32.mrf.mxu0
        %v2927 = vadd.f32 %v2745, %v2926
        %2928 = vdwg.mxu0
        %2929 = vmatpush.msra.mxu0 0.0
        %2930 = vmatpush.msra.mxu0 0.0
        %2931 = vmatpush.msra.mxu0 0.0
        %2932 = vmatpush.msra.mxu0 0.0
        %2933 = vmatpush.msra.mxu0 0.0
        %2934 = vmatpush.msra.mxu0 0.0
        %2935 = vmatpush.msra.mxu0 0.0
        %2936 = vmatpush.msra.mxu0 0.0
        %2937 = vmatpush.msra.mxu0 0.0
        %2938 = vmatpush.msra.mxu0 0.0
        %2939 = vmatpush.msra.mxu0 0.0
        %2940 = vmatpush.msra.mxu0 0.0
        %2941 = vmatpush.msra.mxu0 0.0
        %2942 = vmatpush.msra.mxu0 %v2457
        %2943 = vmatpush.msra.mxu0 %v2422
        %2944 = vmatpush.msra.mxu0 %v2395
        %2945 = vmatmul.f32.gmra.mxu0 %v2767
        %v2946 = vpop.f32.mrf.mxu0
        %v2947 = vadd.f32 %v2765, %v2946
        %2948 = vdwg.mxu0
        %v2949 = vld [vmem:[#allocation2] sm:$0xff]
        %v2950 = vld [vmem:[#allocation2 + $0x8] sm:$0xff]
        %v2951 = vld [vmem:[#allocation2 + $0x10] sm:$0xff]
        %v2952 = vld [vmem:[#allocation2 + $0x18] sm:$0xff]
        %v2953 = vld [vmem:[#allocation2 + $0x20] sm:$0xff]
        %v2954 = vld [vmem:[#allocation2 + $0x28] sm:$0xff]
        %v2955 = vld [vmem:[#allocation2 + $0x30] sm:$0xff]
        %v2956 = vld [vmem:[#allocation2 + $0x38] sm:$0xff]
        %v2957 = vld [vmem:[#allocation2 + $0x40] sm:$0xff]
        %v2958 = vld [vmem:[#allocation2 + $0x48] sm:$0xff]
        %2969 = vrot.lane.b32.xlu0 %v2949, 127
        %v2970 = vpop.permute.xlu0 %2969
        %2971 = vrot.lane.b32.xlu0 %v2950, 127
        %v2972 = vpop.permute.xlu0 %2971
        %2973 = vrot.lane.b32.xlu0 %v2951, 127
        %v2974 = vpop.permute.xlu0 %2973
        %2975 = vrot.lane.b32.xlu0 %v2952, 127
        %v2976 = vpop.permute.xlu0 %2975
        %2977 = vrot.lane.b32.xlu0 %v2953, 127
        %v2978 = vpop.permute.xlu0 %2977
        %2979 = vrot.lane.b32.xlu0 %v2954, 127
        %v2980 = vpop.permute.xlu0 %2979
        %2981 = vrot.lane.b32.xlu0 %v2955, 127
        %v2982 = vpop.permute.xlu0 %2981
        %2983 = vrot.lane.b32.xlu0 %v2956, 127
        %v2984 = vpop.permute.xlu0 %2983
        %2985 = vrot.lane.b32.xlu0 %v2957, 127
        %v2986 = vpop.permute.xlu0 %2985
        %2987 = vrot.lane.b32.xlu0 %v2958, 127
        %v2988 = vpop.permute.xlu0 %2987
        %v2989 = vsel %vm1177, %v2970, %v2972
        %v2990 = vsel %vm1177, %v2972, %v2974
        %v2991 = vsel %vm1177, %v2974, %v2976
        %v2992 = vsel %vm1177, %v2976, %v2978
        %v2993 = vsel %vm1177, %v2978, %v2980
        %v2994 = vsel %vm1177, %v2980, %v2982
        %v2995 = vsel %vm1177, %v2982, %v2984
        %v2996 = vsel %vm1177, %v2984, %v2986
        %v2997 = vsel %vm1177, %v2986, %v2988
        %2998 = vrot.lane.b32.xlu0 %v2949, 126
        %v2999 = vpop.permute.xlu0 %2998
        %3000 = vrot.lane.b32.xlu0 %v2950, 126
        %v3001 = vpop.permute.xlu0 %3000
        %3002 = vrot.lane.b32.xlu0 %v2951, 126
        %v3003 = vpop.permute.xlu0 %3002
        %3004 = vrot.lane.b32.xlu0 %v2952, 126
        %v3005 = vpop.permute.xlu0 %3004
        %3006 = vrot.lane.b32.xlu0 %v2953, 126
        %v3007 = vpop.permute.xlu0 %3006
        %3008 = vrot.lane.b32.xlu0 %v2954, 126
        %v3009 = vpop.permute.xlu0 %3008
        %3010 = vrot.lane.b32.xlu0 %v2955, 126
        %v3011 = vpop.permute.xlu0 %3010
        %3012 = vrot.lane.b32.xlu0 %v2956, 126
        %v3013 = vpop.permute.xlu0 %3012
        %3014 = vrot.lane.b32.xlu0 %v2957, 126
        %v3015 = vpop.permute.xlu0 %3014
        %3016 = vrot.lane.b32.xlu0 %v2958, 126
        %v3017 = vpop.permute.xlu0 %3016
        %v3018 = vsel %vm1189, %v2999, %v3001
        %v3019 = vsel %vm1189, %v3001, %v3003
        %v3020 = vsel %vm1189, %v3003, %v3005
        %v3021 = vsel %vm1189, %v3005, %v3007
        %v3022 = vsel %vm1189, %v3007, %v3009
        %v3023 = vsel %vm1189, %v3009, %v3011
        %v3024 = vsel %vm1189, %v3011, %v3013
        %v3025 = vsel %vm1189, %v3013, %v3015
        %v3026 = vsel %vm1189, %v3015, %v3017
        %3027 = vrot.lane.b32.xlu0 %v2475, 80
        %v3028 = vpop.permute.xlu0 %3027
        %3029 = vrot.lane.b32.xlu0 %v2949, 60
        %v3030 = vpop.permute.xlu0 %3029
        %3031 = vrot.lane.b32.xlu0 %v2950, 60
        %v3032 = vpop.permute.xlu0 %3031
        %3033 = vrot.lane.b32.xlu0 %v2951, 60
        %v3034 = vpop.permute.xlu0 %3033
        %3035 = vrot.lane.b32.xlu0 %v2952, 60
        %v3036 = vpop.permute.xlu0 %3035
        %3037 = vrot.lane.b32.xlu0 %v2953, 60
        %v3038 = vpop.permute.xlu0 %3037
        %3039 = vrot.lane.b32.xlu0 %v2954, 60
        %v3040 = vpop.permute.xlu0 %3039
        %3041 = vrot.lane.b32.xlu0 %v2955, 60
        %v3042 = vpop.permute.xlu0 %3041
        %3043 = vrot.lane.b32.xlu0 %v2956, 60
        %v3044 = vpop.permute.xlu0 %3043
        %3045 = vrot.lane.b32.xlu0 %v2957, 60
        %v3046 = vpop.permute.xlu0 %3045
        %3047 = vrot.lane.b32.xlu0 %v2958, 60
        %v3048 = vpop.permute.xlu0 %3047
        %3049 = vrot.lane.b32.xlu0 %v2989, 60
        %v3050 = vpop.permute.xlu0 %3049
        %3051 = vrot.lane.b32.xlu0 %v2990, 60
        %v3052 = vpop.permute.xlu0 %3051
        %3053 = vrot.lane.b32.xlu0 %v2991, 60
        %v3054 = vpop.permute.xlu0 %3053
        %3055 = vrot.lane.b32.xlu0 %v2992, 60
        %v3056 = vpop.permute.xlu0 %3055
        %3057 = vrot.lane.b32.xlu0 %v2993, 60
        %v3058 = vpop.permute.xlu0 %3057
        %3059 = vrot.lane.b32.xlu0 %v2994, 60
        %v3060 = vpop.permute.xlu0 %3059
        %3061 = vrot.lane.b32.xlu0 %v2995, 60
        %v3062 = vpop.permute.xlu0 %3061
        %3063 = vrot.lane.b32.xlu0 %v2996, 60
        %v3064 = vpop.permute.xlu0 %3063
        %3065 = vrot.lane.b32.xlu0 %v2997, 60
        %v3066 = vpop.permute.xlu0 %3065
        %3067 = vrot.lane.b32.xlu0 %v2988, 60
        %v3068 = vpop.permute.xlu0 %3067
        %3069 = vrot.lane.b32.xlu0 %v3018, 60
        %v3070 = vpop.permute.xlu0 %3069
        %3071 = vrot.lane.b32.xlu0 %v3019, 60
        %v3072 = vpop.permute.xlu0 %3071
        %3073 = vrot.lane.b32.xlu0 %v3020, 60
        %v3074 = vpop.permute.xlu0 %3073
        %3075 = vrot.lane.b32.xlu0 %v3021, 60
        %v3076 = vpop.permute.xlu0 %3075
        %3077 = vrot.lane.b32.xlu0 %v3022, 60
        %v3078 = vpop.permute.xlu0 %3077
        %3079 = vrot.lane.b32.xlu0 %v3023, 60
        %v3080 = vpop.permute.xlu0 %3079
        %3081 = vrot.lane.b32.xlu0 %v3024, 60
        %v3082 = vpop.permute.xlu0 %3081
        %3083 = vrot.lane.b32.xlu0 %v3025, 60
        %v3084 = vpop.permute.xlu0 %3083
        %3085 = vrot.lane.b32.xlu0 %v3026, 60
        %v3086 = vpop.permute.xlu0 %3085
        %3087 = vrot.lane.b32.xlu0 %v3017, 60
        %v3088 = vpop.permute.xlu0 %3087
        %vm3089 = vcmask 490496
        %v3090 = vsel %vm3089, %v3030, %v3032
        %v3091 = vsel %vm3089, %v3032, %v3034
        %v3092 = vsel %vm3089, %v3034, %v3036
        %v3093 = vsel %vm3089, %v3036, %v3038
        %v3094 = vsel %vm3089, %v3038, %v3040
        %v3095 = vsel %vm3089, %v3040, %v3042
        %v3096 = vsel %vm3089, %v3042, %v3044
        %v3097 = vsel %vm3089, %v3044, %v3046
        %v3098 = vsel %vm3089, %v3046, %v3048
        %v3099 = vsel %vm3089, %v3050, %v3052
        %v3100 = vsel %vm3089, %v3052, %v3054
        %v3101 = vsel %vm3089, %v3054, %v3056
        %v3102 = vsel %vm3089, %v3056, %v3058
        %v3103 = vsel %vm3089, %v3058, %v3060
        %v3104 = vsel %vm3089, %v3060, %v3062
        %v3105 = vsel %vm3089, %v3062, %v3064
        %v3106 = vsel %vm3089, %v3064, %v3066
        %v3107 = vsel %vm3089, %v3066, %v3068
        %v3108 = vsel %vm3089, %v3070, %v3072
        %v3109 = vsel %vm3089, %v3072, %v3074
        %v3110 = vsel %vm3089, %v3074, %v3076
        %v3111 = vsel %vm3089, %v3076, %v3078
        %v3112 = vsel %vm3089, %v3078, %v3080
        %v3113 = vsel %vm3089, %v3080, %v3082
        %v3114 = vsel %vm3089, %v3082, %v3084
        %v3115 = vsel %vm3089, %v3084, %v3086
        %v3116 = vsel %vm3089, %v3086, %v3088
        %v3144 = vsel %vm688, %v3028, 0
        %3146 = vmatpush.msra.mxu0 0.0
        %3147 = vmatpush.msra.mxu0 0.0
        %3148 = vmatpush.msra.mxu0 0.0
        %3149 = vmatpush.msra.mxu0 0.0
        %3150 = vmatpush.msra.mxu0 0.0
        %3151 = vmatpush.msra.mxu0 0.0
        %3152 = vmatpush.msra.mxu0 0.0
        %3153 = vmatpush.msra.mxu0 0.0
        %3154 = vmatpush.msra.mxu0 0.0
        %3155 = vmatpush.msra.mxu0 0.0
        %3156 = vmatpush.msra.mxu0 0.0
        %3157 = vmatpush.msra.mxu0 0.0
        %3158 = vmatpush.msra.mxu0 0.0
        %3159 = vmatpush.msra.mxu0 %v3108
        %3160 = vmatpush.msra.mxu0 %v3099
        %3161 = vmatpush.msra.mxu0 %v3090
        %3162 = vmatmul.f32.gmra.mxu0 %v3144
        %v3163 = vpop.f32.mrf.mxu0
        %v3164 = vadd.f32 0.0, %v3163
        %3165 = vdwg.mxu0
        %3166 = vmatpush.msra.mxu0 0.0
        %3167 = vmatpush.msra.mxu0 0.0
        %3168 = vmatpush.msra.mxu0 0.0
        %3169 = vmatpush.msra.mxu0 0.0
        %3170 = vmatpush.msra.mxu0 0.0
        %3171 = vmatpush.msra.mxu0 0.0
        %3172 = vmatpush.msra.mxu0 0.0
        %3173 = vmatpush.msra.mxu0 0.0
        %3174 = vmatpush.msra.mxu0 0.0
        %3175 = vmatpush.msra.mxu0 0.0
        %3176 = vmatpush.msra.mxu0 0.0
        %3177 = vmatpush.msra.mxu0 0.0
        %3178 = vmatpush.msra.mxu0 0.0
        %3179 = vmatpush.msra.mxu0 %v3109
        %3180 = vmatpush.msra.mxu0 %v3100
        %3181 = vmatpush.msra.mxu0 %v3091
        %3182 = vmatmul.f32.gmra.mxu0 %v3144
        %v3183 = vpop.f32.mrf.mxu0
        %v3184 = vadd.f32 0.0, %v3183
        %3185 = vdwg.mxu0
        %3186 = vmatpush.msra.mxu0 0.0
        %3187 = vmatpush.msra.mxu0 0.0
        %3188 = vmatpush.msra.mxu0 0.0
        %3189 = vmatpush.msra.mxu0 0.0
        %3190 = vmatpush.msra.mxu0 0.0
        %3191 = vmatpush.msra.mxu0 0.0
        %3192 = vmatpush.msra.mxu0 0.0
        %3193 = vmatpush.msra.mxu0 0.0
        %3194 = vmatpush.msra.mxu0 0.0
        %3195 = vmatpush.msra.mxu0 0.0
        %3196 = vmatpush.msra.mxu0 0.0
        %3197 = vmatpush.msra.mxu0 0.0
        %3198 = vmatpush.msra.mxu0 0.0
        %3199 = vmatpush.msra.mxu0 %v3110
        %3200 = vmatpush.msra.mxu0 %v3101
        %3201 = vmatpush.msra.mxu0 %v3092
        %3202 = vmatmul.f32.gmra.mxu0 %v3144
        %v3203 = vpop.f32.mrf.mxu0
        %v3204 = vadd.f32 0.0, %v3203
        %3205 = vdwg.mxu0
        %3206 = vmatpush.msra.mxu0 0.0
        %3207 = vmatpush.msra.mxu0 0.0
        %3208 = vmatpush.msra.mxu0 0.0
        %3209 = vmatpush.msra.mxu0 0.0
        %3210 = vmatpush.msra.mxu0 0.0
        %3211 = vmatpush.msra.mxu0 0.0
        %3212 = vmatpush.msra.mxu0 0.0
        %3213 = vmatpush.msra.mxu0 0.0
        %3214 = vmatpush.msra.mxu0 0.0
        %3215 = vmatpush.msra.mxu0 0.0
        %3216 = vmatpush.msra.mxu0 0.0
        %3217 = vmatpush.msra.mxu0 0.0
        %3218 = vmatpush.msra.mxu0 0.0
        %3219 = vmatpush.msra.mxu0 %v3111
        %3220 = vmatpush.msra.mxu0 %v3102
        %3221 = vmatpush.msra.mxu0 %v3093
        %3222 = vmatmul.f32.gmra.mxu0 %v3144
        %v3223 = vpop.f32.mrf.mxu0
        %v3224 = vadd.f32 0.0, %v3223
        %3225 = vdwg.mxu0
        %3226 = vmatpush.msra.mxu0 0.0
        %3227 = vmatpush.msra.mxu0 0.0
        %3228 = vmatpush.msra.mxu0 0.0
        %3229 = vmatpush.msra.mxu0 0.0
        %3230 = vmatpush.msra.mxu0 0.0
        %3231 = vmatpush.msra.mxu0 0.0
        %3232 = vmatpush.msra.mxu0 0.0
        %3233 = vmatpush.msra.mxu0 0.0
        %3234 = vmatpush.msra.mxu0 0.0
        %3235 = vmatpush.msra.mxu0 0.0
        %3236 = vmatpush.msra.mxu0 0.0
        %3237 = vmatpush.msra.mxu0 0.0
        %3238 = vmatpush.msra.mxu0 0.0
        %3239 = vmatpush.msra.mxu0 %v3112
        %3240 = vmatpush.msra.mxu0 %v3103
        %3241 = vmatpush.msra.mxu0 %v3094
        %3242 = vmatmul.f32.gmra.mxu0 %v3144
        %v3243 = vpop.f32.mrf.mxu0
        %v3244 = vadd.f32 0.0, %v3243
        %3245 = vdwg.mxu0
        %3246 = vmatpush.msra.mxu0 0.0
        %3247 = vmatpush.msra.mxu0 0.0
        %3248 = vmatpush.msra.mxu0 0.0
        %3249 = vmatpush.msra.mxu0 0.0
        %3250 = vmatpush.msra.mxu0 0.0
        %3251 = vmatpush.msra.mxu0 0.0
        %3252 = vmatpush.msra.mxu0 0.0
        %3253 = vmatpush.msra.mxu0 0.0
        %3254 = vmatpush.msra.mxu0 0.0
        %3255 = vmatpush.msra.mxu0 0.0
        %3256 = vmatpush.msra.mxu0 0.0
        %3257 = vmatpush.msra.mxu0 0.0
        %3258 = vmatpush.msra.mxu0 0.0
        %3259 = vmatpush.msra.mxu0 %v3113
        %3260 = vmatpush.msra.mxu0 %v3104
        %3261 = vmatpush.msra.mxu0 %v3095
        %3262 = vmatmul.f32.gmra.mxu0 %v3144
        %v3263 = vpop.f32.mrf.mxu0
        %v3264 = vadd.f32 0.0, %v3263
        %3265 = vdwg.mxu0
        %3266 = vmatpush.msra.mxu0 0.0
        %3267 = vmatpush.msra.mxu0 0.0
        %3268 = vmatpush.msra.mxu0 0.0
        %3269 = vmatpush.msra.mxu0 0.0
        %3270 = vmatpush.msra.mxu0 0.0
        %3271 = vmatpush.msra.mxu0 0.0
        %3272 = vmatpush.msra.mxu0 0.0
        %3273 = vmatpush.msra.mxu0 0.0
        %3274 = vmatpush.msra.mxu0 0.0
        %3275 = vmatpush.msra.mxu0 0.0
        %3276 = vmatpush.msra.mxu0 0.0
        %3277 = vmatpush.msra.mxu0 0.0
        %3278 = vmatpush.msra.mxu0 0.0
        %3279 = vmatpush.msra.mxu0 %v3114
        %3280 = vmatpush.msra.mxu0 %v3105
        %3281 = vmatpush.msra.mxu0 %v3096
        %3282 = vmatmul.f32.gmra.mxu0 %v3144
        %v3283 = vpop.f32.mrf.mxu0
        %v3284 = vadd.f32 0.0, %v3283
        %3285 = vdwg.mxu0
        %3286 = vmatpush.msra.mxu0 0.0
        %3287 = vmatpush.msra.mxu0 0.0
        %3288 = vmatpush.msra.mxu0 0.0
        %3289 = vmatpush.msra.mxu0 0.0
        %3290 = vmatpush.msra.mxu0 0.0
        %3291 = vmatpush.msra.mxu0 0.0
        %3292 = vmatpush.msra.mxu0 0.0
        %3293 = vmatpush.msra.mxu0 0.0
        %3294 = vmatpush.msra.mxu0 0.0
        %3295 = vmatpush.msra.mxu0 0.0
        %3296 = vmatpush.msra.mxu0 0.0
        %3297 = vmatpush.msra.mxu0 0.0
        %3298 = vmatpush.msra.mxu0 0.0
        %3299 = vmatpush.msra.mxu0 %v3115
        %3300 = vmatpush.msra.mxu0 %v3106
        %3301 = vmatpush.msra.mxu0 %v3097
        %3302 = vmatmul.f32.gmra.mxu0 %v3144
        %v3303 = vpop.f32.mrf.mxu0
        %v3304 = vadd.f32 0.0, %v3303
        %3305 = vdwg.mxu0
        %3306 = vmatpush.msra.mxu0 0.0
        %3307 = vmatpush.msra.mxu0 0.0
        %3308 = vmatpush.msra.mxu0 0.0
        %3309 = vmatpush.msra.mxu0 0.0
        %3310 = vmatpush.msra.mxu0 0.0
        %3311 = vmatpush.msra.mxu0 0.0
        %3312 = vmatpush.msra.mxu0 0.0
        %3313 = vmatpush.msra.mxu0 0.0
        %3314 = vmatpush.msra.mxu0 0.0
        %3315 = vmatpush.msra.mxu0 0.0
        %3316 = vmatpush.msra.mxu0 0.0
        %3317 = vmatpush.msra.mxu0 0.0
        %3318 = vmatpush.msra.mxu0 0.0
        %3319 = vmatpush.msra.mxu0 %v3116
        %3320 = vmatpush.msra.mxu0 %v3107
        %3321 = vmatpush.msra.mxu0 %v3098
        %3322 = vmatmul.f32.gmra.mxu0 %v3144
        %v3323 = vpop.f32.mrf.mxu0
        %v3324 = vadd.f32 0.0, %v3323
        %3325 = vdwg.mxu0
        %v3326 = vadd.f32 %v2787, %v3164
        %v3327 = vadd.f32 %v2807, %v3184
        %v3328 = vadd.f32 %v2827, %v3204
        %v3329 = vadd.f32 %v2847, %v3224
        %v3330 = vadd.f32 %v2867, %v3244
        %v3331 = vadd.f32 %v2887, %v3264
        %v3332 = vadd.f32 %v2907, %v3284
        %v3333 = vadd.f32 %v2927, %v3304
        %v3334 = vadd.f32 %v2947, %v3324
        %v3335 = vld [vmem:[%s13] sm:$0xff]
        %3337 = vset.pattern.permute.xlu0 0
        %3338 = vperm.xlu0 %3337, %v3335
        %v3339 = vpop.permute.xlu0 %3338
        %v3341 = vadd.f32 %v3326, %v3339
        %v3342 = vadd.f32 %v3327, %v3339
        %v3343 = vadd.f32 %v3328, %v3339
        %v3344 = vadd.f32 %v3329, %v3339
        %v3345 = vadd.f32 %v3330, %v3339
        %v3346 = vadd.f32 %v3331, %v3339
        %v3347 = vadd.f32 %v3332, %v3339
        %v3348 = vadd.f32 %v3333, %v3339
        %v3349 = vadd.f32 %v3334, %v3339
        %v3350 = vmax.f32 %v3341, 0.0
        %v3351 = vmax.f32 %v3342, 0.0
        %v3352 = vmax.f32 %v3343, 0.0
        %v3353 = vmax.f32 %v3344, 0.0
        %v3354 = vmax.f32 %v3345, 0.0
        %v3355 = vmax.f32 %v3346, 0.0
        %v3356 = vmax.f32 %v3347, 0.0
        %v3357 = vmax.f32 %v3348, 0.0
        %v3358 = vmax.f32 %v3349, 0.0
        %3359 = vst [vmem:[%s533] sm:$0xff] %v3350
        %3360 = vst [vmem:[%s533 + $0x8] sm:$0xff] %v3351
        %3361 = vst [vmem:[%s533 + $0x10] sm:$0xff] %v3352
        %3362 = vst [vmem:[%s533 + $0x18] sm:$0xff] %v3353
        %3363 = vst [vmem:[%s533 + $0x20] sm:$0xff] %v3354
        %3364 = vst [vmem:[%s533 + $0x28] sm:$0xff] %v3355
        %3365 = vst [vmem:[%s533 + $0x30] sm:$0xff] %v3356
        %3366 = vst [vmem:[%s533 + $0x38] sm:$0xff] %v3357
        %vm3367 = vcmask 523264
        %3368 = vst.msk [vmem:[%s533 + $0x40] sm:$0xff] %vm3367, %v3358
        %s3369 = sand.u32 %s338, 1
        %s3370 = scalar_lea.sflag [#allocation5], %s3369
        %s3371 = sand.u32 %s338, 1
        %s3372 = smul.addr %s3371, 72
        %s3373 = scalar_lea.vmem [#allocation12], %s3372
        // Predicated region
        $region97: #{tpu_custom_call.1} parent=75 // pred_check
          %p3374 = pneg %p348
        $region98: #{tpu_custom_call.1} parent=75 // pred_check_branch
          %3376 = sbr.rel (%p3374) target = $region100
        $region99: #{tpu_custom_call.1} parent=75 // pred_region
          %3378 = vsyncadd %s3370, 0
          %s3379 = smul.addr %s31, 9
          %s3380 = smul.addr %s3379, 8
          %s3381 = scalar_lea.hbm %s14, %s3380
          %s3383 = sshll.u32 %s3373, 4
          %s3384 = int_to_ptr.vmem [resolvable:$true] %s3383
          %s3385 = sshll.u32 %s3381, 4
          %s3386 = int_to_ptr.hbm [resolvable:$true] %s3385
          %3388 = dma.vmem_to_hbm [thread:$0]  %s3384, 1152, %s3386, %s3370
        $region100: #{tpu_custom_call.1} parent=75 // pred_fallthru
          _
      $region76: #{tpu_custom_call.1} parent=5 // pred_fallthru
        _
      %p3389 = scmp.le.s32.totalorder 2, %s26
      // Predicated region
      $region101: #{tpu_custom_call.1} parent=5 // pred_check
        %p3390 = pneg %p3389
      $region102: #{tpu_custom_call.1} parent=5 // pred_check_branch
        %3392 = sbr.rel (%p3390) target = $region104
      $region103: #{tpu_custom_call.1} parent=5 // pred_region
        %s3393 = ssub.s32 %s26, 2
        // Predicated region
        $region105: #{tpu_custom_call.1} parent=103 // pred_check
          %p3394 = pneg %p354
        $region106: #{tpu_custom_call.1} parent=103 // pred_check_branch
          %3396 = sbr.rel (%p3394) target = $region108
        $region107: #{tpu_custom_call.1} parent=103 // pred_region
          %s3397 = sand.u32 %s339, 1
          %s3398 = scalar_lea.sflag [#allocation5], %s3397
          %s3399 = sand.u32 %s339, 1
          %s3400 = smul.addr %s3399, 72
          %s3401 = scalar_lea.vmem [#allocation12], %s3400
          %3403 = dma.done %s3398, 1152
        $region108: #{tpu_custom_call.1} parent=103 // pred_fallthru
          _
      $region104: #{tpu_custom_call.1} parent=5 // pred_fallthru
        _
    $region6: #{tpu_custom_call.1} parent=1 // loop_footer
      %s30 = sadd.s32 1, %s26
    $region7: #{tpu_custom_call.1} parent=1 // loop_footer_branch
      %25 = sbr.rel target = $region3
    $region8: #{tpu_custom_call.1} parent=1 // loop_exit
      _
    %3404 = vsyncpa [#allocation4], 1
    %s3405 = scalar_lea.sflag [#allocation4], 1
    %3406 = vsyncpa %s3405, 1
    %3407 = vsyncpa [#allocation7], 1
    %3408 = vsyncpa [#allocation10], 1
    %3409 = vsyncpa [#allocation5], 1
    %s3410 = scalar_lea.sflag [#allocation5], 1
    %3411 = vsyncpa %s3410, 1

</llo_original>
